<compile_context>
chip_gen: v7x
topology: tpu7x:2x2x1
jax: 0.10.0
libtpu: 0.0.40
codegen_flags: <defaults>
</compile_context>

<pallas_src>
import numpy as np
import jax
import jax.numpy as jnp
from jax import lax
from jax.experimental import pallas as pl
from jax.experimental.pallas import tpu as pltpu

LN_EPS = 1e-5


# ---------------------------------------------------------------------------
# Kernel builder (H, W and channel counts are static).
# ---------------------------------------------------------------------------
def _make_kernel(H, W, Cin, Chid, Cout):
    S = H * W

    def shift_flat(a, d):
        # a: (C, S) row-major flattened image.  Returns a' with
        #   a'[c, p] = a[c, p + d]
        # Wrapped positions are zeroed by the caller's border mask, so only
        # in-bounds (non-wrapping) positions matter.
        if d == 0:
            return a
        # pltpu.roll follows jnp.roll: roll(a, s)[p] = a[(p - s) % S] => s = -d.
        return pltpu.roll(a, (-d) % S, 1)

    def kernel(x_ref, wds_ref, bds_ref, g_ref, b_ref,
               w1_ref, b1_ref, w2_ref, b2_ref, wres_ref, bres_ref, o_ref):
        # x_ref    : (1, Cin, S)      input image (NCHW memory, flattened HW)
        # wds_ref  : (Cin, 49)        depthwise 7x7 weights     bds_ref: (Cin, 1)
        # g_ref/b_ref : (Cin, 1)      LayerNorm affine
        # w1_ref   : (9, Chid, Cin)   conv1 3x3 per-tap weights b1_ref : (Chid, 1)
        # w2_ref   : (9, Cout, Chid)  conv2 3x3 per-tap weights b2_ref : (Cout, 1)
        # wres_ref : (Cout, Cin)      residual 1x1 weights      bres_ref:(Cout, 1)
        # o_ref    : (1, Cout, S)
        x = x_ref[0].astype(jnp.float32)                        # (Cin, S)

        # ---- border-validity masks, generated in-kernel (separable) --------
        pos = lax.broadcasted_iota(jnp.int32, (1, S), 1).astype(jnp.float32)
        row = jnp.floor((pos + 0.5) * (1.0 / W))                # exact small ints
        col = pos - row * W

        def _f(cond):
            return jnp.where(cond, 1.0, 0.0).astype(jnp.float32)

        rmask = {dh: _f((row + dh >= 0.0) & (row + dh <= H - 1.0))
                 for dh in range(-3, 4)}
        cmask = {dw: _f((col + dw >= 0.0) & (col + dw <= W - 1.0))
                 for dw in range(-3, 4)}

        def tap(a, dh, dw):
            # shifted-and-masked slab for spatial offset (dh, dw)
            return shift_flat(a, dh * W + dw) * (rmask[dh] * cmask[dw])

        # ---- depthwise 7x7 conv (groups = Cin), padding = 3  [VPU] ---------
        wds = wds_ref[...].astype(jnp.float32)                  # (Cin, 49)
        h = jnp.zeros((Cin, S), jnp.float32)
        for dh in range(-3, 4):
            for dw in range(-3, 4):
                t = (dh + 3) * 7 + (dw + 3)
                h = h + tap(x, dh, dw) * wds[:, t:t + 1]        # (Cin,1) lane bcast
        h = h + bds_ref[...]

        # ---- LayerNorm over channels (biased var, eps=1e-5)  [XLU reduce] ---
        inv_c = 1.0 / Cin
        mean = jnp.sum(h, axis=0, keepdims=True) * inv_c        # (1, S)
        diff = h - mean
        var = jnp.sum(diff * diff, axis=0, keepdims=True) * inv_c
        h = diff * lax.rsqrt(var + LN_EPS) * g_ref[...] + b_ref[...]

        # ---- conv1 3x3 (Cin -> Chid), padding = 1  [MXU per-tap matmul] -----
        acc1 = jnp.zeros((Chid, S), jnp.float32)
        for dh in range(-1, 2):
            for dw in range(-1, 2):
                t = (dh + 1) * 3 + (dw + 1)
                acc1 = acc1 + jnp.dot(w1_ref[t], tap(h, dh, dw),
                                      preferred_element_type=jnp.float32)
        y1 = acc1 + b1_ref[...]

        # ---- exact GELU (erf via Abramowitz-Stegun 7.1.26, |err| < 2e-7) ----
        z = y1 * 0.7071067811865476
        az = jnp.abs(z)
        tp = 1.0 / (1.0 + 0.3275911 * az)
        poly = ((((1.061405429 * tp - 1.453152027) * tp + 1.421413741) * tp
                 - 0.284496736) * tp + 0.254829592) * tp
        erf_abs = 1.0 - poly * jnp.exp(-az * az)
        erf_z = jnp.where(z >= 0.0, erf_abs, -erf_abs)
        y1 = 0.5 * y1 * (1.0 + erf_z)                           # (Chid, S)

        # ---- conv2 3x3 (Chid -> Cout) + residual 1x1 (Cin -> Cout)  [MXU] ---
        acc2 = jnp.dot(wres_ref[...], x, preferred_element_type=jnp.float32)
        for dh in range(-1, 2):
            for dw in range(-1, 2):
                t = (dh + 1) * 3 + (dw + 1)
                acc2 = acc2 + jnp.dot(w2_ref[t], tap(y1, dh, dw),
                                      preferred_element_type=jnp.float32)
        out = acc2 + b2_ref[...] + bres_ref[...]                # (Cout, S)

        o_ref[...] = out[None].astype(o_ref.dtype)              # (1, Cout, S)

    return kernel


def _padded_block_bytes(shape, itemsize=4):
    """Bytes of a VMEM block after (8, 128) padding of the last two dims."""
    sub = -(-int(shape[-2]) // 8) * 8
    lane = -(-int(shape[-1]) // 128) * 128
    lead = 1
    for d in shape[:-2]:
        lead *= int(d)
    return lead * sub * lane * itemsize


# ---------------------------------------------------------------------------
# Wrapper: NCHW in, NCHW out.  Only free reshapes on the activation path.
# ---------------------------------------------------------------------------
def convnext_block_forward(x, params):
    """x: (N, dim, H, W) float32.  Returns (N, dim_out, H, W)."""
    N, Cin, H, W = x.shape
    S = H * W
    w_ds, b_ds = params['w_ds'], params['b_ds']      # (Cin,1,7,7), (Cin,)
    g, b = params['g'], params['b']                  # (1,Cin,1,1) each
    w1, b1 = params['w1'], params['b1']              # (Chid,Cin,3,3), (Chid,)
    w2, b2 = params['w2'], params['b2']              # (Cout,Chid,3,3), (Cout,)
    w_res, b_res = params['w_res'], params['b_res']  # (Cout,Cin,1,1), (Cout,)
    Chid, Cout = w1.shape[0], w2.shape[0]

    # One-off parameter re-layout (lane-dense / MXU-ready; in a real model this
    # is done once at init).
    wds_k = w_ds.reshape(Cin, 49)                                  # tap t = kh*7+kw
    w1_k = jnp.transpose(w1, (2, 3, 0, 1)).reshape(9, Chid, Cin)   # per-tap (Chid,Cin)
    w2_k = jnp.transpose(w2, (2, 3, 0, 1)).reshape(9, Cout, Chid)  # per-tap (Cout,Chid)
    wres_k = w_res[:, :, 0, 0]                                     # (Cout, Cin)
    bds_k = b_ds.reshape(Cin, 1)
    g_k, b_k = g.reshape(Cin, 1), b.reshape(Cin, 1)
    b1_k, b2_k = b1.reshape(Chid, 1), b2.reshape(Cout, 1)
    bres_k = b_res.reshape(Cout, 1)

    x_flat = x.reshape(N, Cin, S)                                  # free reshape

    kern = _make_kernel(H, W, Cin, Chid, Cout)

    in_block_shapes = [
        (1, Cin, S), (Cin, 49), (Cin, 1), (Cin, 1), (Cin, 1),
        (9, Chid, Cin), (Chid, 1), (9, Cout, Chid), (Cout, 1),
        (Cout, Cin), (Cout, 1),
    ]
    block_bytes = sum(_padded_block_bytes(s) for s in in_block_shapes)
    block_bytes += _padded_block_bytes((1, Cout, S))
    # Double-buffered blocks + headroom for in-kernel intermediates.
    vmem_limit = int(min(64 * 1024 * 1024, 2 * block_bytes + 16 * 1024 * 1024))

    flops = 2 * N * S * (49 * Cin + 9 * Cin * Chid + 9 * Chid * Cout
                         + Cin * Cout) + N * S * (10 * Cin + 15 * Chid + 4 * Cout)
    bytes_accessed = 4 * (x_flat.size + N * Cout * S + wds_k.size + w1_k.size
                          + w2_k.size + wres_k.size + 4 * Cin + 2 * Chid
                          + 3 * Cout)
    cost = pl.CostEstimate(flops=flops, transcendentals=N * S * Chid,
                           bytes_accessed=bytes_accessed)

    out_flat = pl.pallas_call(
        kern,
        out_shape=jax.ShapeDtypeStruct((N, Cout, S), x.dtype),
        grid_spec=pltpu.PrefetchScalarGridSpec(
            num_scalar_prefetch=0,
            grid=(N,),
            in_specs=[
                pl.BlockSpec((1, Cin, S), lambda n: (n, 0, 0)),       # x
                pl.BlockSpec((Cin, 49), lambda n: (0, 0)),            # w_ds
                pl.BlockSpec((Cin, 1), lambda n: (0, 0)),             # b_ds
                pl.BlockSpec((Cin, 1), lambda n: (0, 0)),             # g
                pl.BlockSpec((Cin, 1), lambda n: (0, 0)),             # b
                pl.BlockSpec((9, Chid, Cin), lambda n: (0, 0, 0)),    # w1
                pl.BlockSpec((Chid, 1), lambda n: (0, 0)),            # b1
                pl.BlockSpec((9, Cout, Chid), lambda n: (0, 0, 0)),   # w2
                pl.BlockSpec((Cout, 1), lambda n: (0, 0)),            # b2
                pl.BlockSpec((Cout, Cin), lambda n: (0, 0)),          # w_res
                pl.BlockSpec((Cout, 1), lambda n: (0, 0)),            # b_res
            ],
            out_specs=pl.BlockSpec((1, Cout, S), lambda n: (n, 0, 0)),
        ),
        compiler_params=pltpu.CompilerParams(
            dimension_semantics=("parallel",),
            vmem_limit_bytes=vmem_limit,
        ),
        cost_estimate=cost,
    )(x_flat, wds_k, bds_k, g_k, b_k, w1_k, b1_k, w2_k, b2_k, wres_k, bres_k)

    return out_flat.reshape(N, Cout, H, W)                          # free reshape


# ---------------------------------------------------------------------------
# Pure-JAX (XLA) reference mirroring the PyTorch module.
# ---------------------------------------------------------------------------
def _reference(x, p):
    dn = ('NCHW', 'OIHW', 'NCHW')
    hi = lax.Precision.HIGHEST
    C = x.shape[1]
    h = lax.conv_general_dilated(
        x, p['w_ds'], (1, 1), ((3, 3), (3, 3)), dimension_numbers=dn,
        feature_group_count=C, precision=hi) + p['b_ds'][None, :, None, None]
    mean = jnp.mean(h, axis=1, keepdims=True)
    var = jnp.mean((h - mean) ** 2, axis=1, keepdims=True)
    h = (h - mean) / jnp.sqrt(var + LN_EPS) * p['g'] + p['b']
    h = lax.conv_general_dilated(
        h, p['w1'], (1, 1), ((1, 1), (1, 1)), dimension_numbers=dn,
        precision=hi) + p['b1'][None, :, None, None]
    h = jax.nn.gelu(h, approximate=False)
    h = lax.conv_general_dilated(
        h, p['w2'], (1, 1), ((1, 1), (1, 1)), dimension_numbers=dn,
        precision=hi) + p['b2'][None, :, None, None]
    res = lax.conv_general_dilated(
        x, p['w_res'], (1, 1), ((0, 0), (0, 0)), dimension_numbers=dn,
        precision=hi) + p['b_res'][None, :, None, None]
    return h + res


if __name__ == "__main__":
    # ConvNextBlock(dim=4, dim_out=8, time_emb_dim=None, mult=2, norm=True)
    N, dim, H, W = 2, 4, 16, 16
    dim_out, mult = 8, 2
    dim_hidden = dim_out * mult

    key = jax.random.PRNGKey(0)
    ks = jax.random.split(key, 11)

    def conv_init(kw_, kb_, shape, fan_in):
        bound = 1.0 / np.sqrt(fan_in)
        w = jax.random.uniform(kw_, shape, jnp.float32, -bound, bound)
        bb = jax.random.uniform(kb_, (shape[0],), jnp.float32, -bound, bound)
        return w, bb

    x = jax.random.normal(ks[0], (N, dim, H, W), jnp.float32)
    w_ds, b_ds = conv_init(ks[1], ks[2], (dim, 1, 7, 7), 1 * 7 * 7)
    w1, b1 = conv_init(ks[3], ks[4], (dim_hidden, dim, 3, 3), dim * 9)
    w2, b2 = conv_init(ks[5], ks[6], (dim_out, dim_hidden, 3, 3), dim_hidden * 9)
    w_res, b_res = conv_init(ks[7], ks[8], (dim_out, dim, 1, 1), dim)
    # LayerNorm params (default init is ones/zeros; perturb to exercise the path).
    g = 1.0 + 0.1 * jax.random.normal(ks[9], (1, dim, 1, 1), jnp.float32)
    b = 0.1 * jax.random.normal(ks[10], (1, dim, 1, 1), jnp.float32)

    params = dict(w_ds=w_ds, b_ds=b_ds, g=g, b=b, w1=w1, b1=b1,
                  w2=w2, b2=b2, w_res=w_res, b_res=b_res)

    out = convnext_block_forward(x, params)
    out = jax.block_until_ready(out)

    ref = jax.block_until_ready(_reference(x, params))

    assert out.shape == (N, dim_out, H, W)
    err = float(jnp.max(jnp.abs(out - ref)))
    assert jnp.allclose(out, ref, atol=2e-3, rtol=2e-3), f"max abs err = {err}"

    print("KERNEL_OK")
</pallas_src>

<mosaic_0001>
module attributes {stable_mosaic.version = 11 : i64} {
  func.func @kernel(%arg0: i32, %arg1: memref<1x4x256xf32, #tpu.memory_space<vmem>>, %arg2: memref<4x49xf32, #tpu.memory_space<vmem>>, %arg3: memref<4x1xf32, #tpu.memory_space<vmem>>, %arg4: memref<4x1xf32, #tpu.memory_space<vmem>>, %arg5: memref<4x1xf32, #tpu.memory_space<vmem>>, %arg6: memref<9x16x4xf32, #tpu.memory_space<vmem>>, %arg7: memref<16x1xf32, #tpu.memory_space<vmem>>, %arg8: memref<9x8x16xf32, #tpu.memory_space<vmem>>, %arg9: memref<8x1xf32, #tpu.memory_space<vmem>>, %arg10: memref<8x4xf32, #tpu.memory_space<vmem>>, %arg11: memref<8x1xf32, #tpu.memory_space<vmem>>, %arg12: memref<1x8x256xf32, #tpu.memory_space<vmem>>) attributes {dimension_semantics = [#tpu.dimension_semantics<parallel>], iteration_bounds = array<i64: 2>, scalar_prefetch = 0 : i64, scratch_operands = 0 : i64, tpu.core_type = #tpu.core_type<tc>, window_params = [{transform_indices = @transform_0, window_bounds = array<i64: 1, 4, 256>}, {pipeline_mode = #tpu.pipeline_mode<synchronous>, transform_indices = @transform_1, window_bounds = array<i64: 4, 49>}, {pipeline_mode = #tpu.pipeline_mode<synchronous>, transform_indices = @transform_2, window_bounds = array<i64: 4, 1>}, {pipeline_mode = #tpu.pipeline_mode<synchronous>, transform_indices = @transform_3, window_bounds = array<i64: 4, 1>}, {pipeline_mode = #tpu.pipeline_mode<synchronous>, transform_indices = @transform_4, window_bounds = array<i64: 4, 1>}, {pipeline_mode = #tpu.pipeline_mode<synchronous>, transform_indices = @transform_5, window_bounds = array<i64: 9, 16, 4>}, {pipeline_mode = #tpu.pipeline_mode<synchronous>, transform_indices = @transform_6, window_bounds = array<i64: 16, 1>}, {pipeline_mode = #tpu.pipeline_mode<synchronous>, transform_indices = @transform_7, window_bounds = array<i64: 9, 8, 16>}, {pipeline_mode = #tpu.pipeline_mode<synchronous>, transform_indices = @transform_8, window_bounds = array<i64: 8, 1>}, {pipeline_mode = #tpu.pipeline_mode<synchronous>, transform_indices = @transform_9, window_bounds = array<i64: 8, 4>}, {pipeline_mode = #tpu.pipeline_mode<synchronous>, transform_indices = @transform_10, window_bounds = array<i64: 8, 1>}, {transform_indices = @transform_11, window_bounds = array<i64: 1, 8, 256>}]} {
    %c0 = arith.constant 0 : index
    %c0_0 = arith.constant 0 : index
    %c0_1 = arith.constant 0 : index
    %0 = vector.load %arg1[%c0, %c0_0, %c0_1] : memref<1x4x256xf32, #tpu.memory_space<vmem>>, vector<1x4x256xf32>
    %1 = vector.shape_cast %0 : vector<1x4x256xf32> to vector<4x256xf32>
    %2 = tpu.iota {dimensions = array<i32: 1>} : vector<1x256xi32>
    %3 = arith.sitofp %2 : vector<1x256xi32> to vector<1x256xf32>
    %cst = arith.constant 5.000000e-01 : f32
    %4 = vector.broadcast %cst : f32 to vector<1x256xf32>
    %5 = arith.addf %3, %4 : vector<1x256xf32>
    %cst_2 = arith.constant 6.250000e-02 : f32
    %6 = vector.broadcast %cst_2 : f32 to vector<1x256xf32>
    %7 = arith.mulf %5, %6 : vector<1x256xf32>
    %8 = math.floor %7 : vector<1x256xf32>
    %cst_3 = arith.constant 1.600000e+01 : f32
    %9 = vector.broadcast %cst_3 : f32 to vector<1x256xf32>
    %10 = arith.mulf %8, %9 : vector<1x256xf32>
    %11 = arith.subf %3, %10 : vector<1x256xf32>
    %cst_4 = arith.constant -3.000000e+00 : f32
    %12 = vector.broadcast %cst_4 : f32 to vector<1x256xf32>
    %13 = arith.addf %8, %12 : vector<1x256xf32>
    %cst_5 = arith.constant 0.000000e+00 : f32
    %14 = vector.broadcast %cst_5 : f32 to vector<1x256xf32>
    %15 = arith.cmpf oge, %13, %14 : vector<1x256xf32>
    %cst_6 = arith.constant -3.000000e+00 : f32
    %16 = vector.broadcast %cst_6 : f32 to vector<1x256xf32>
    %17 = arith.addf %8, %16 : vector<1x256xf32>
    %cst_7 = arith.constant 1.500000e+01 : f32
    %18 = vector.broadcast %cst_7 : f32 to vector<1x256xf32>
    %19 = arith.cmpf ole, %17, %18 : vector<1x256xf32>
    %20 = arith.andi %15, %19 : vector<1x256xi1>
    %cst_8 = arith.constant 1.000000e+00 : f32
    %cst_9 = arith.constant 0.000000e+00 : f32
    %21 = vector.broadcast %cst_8 : f32 to vector<1x256xf32>
    %22 = vector.broadcast %cst_9 : f32 to vector<1x256xf32>
    %23 = arith.select %20, %21, %22 : vector<1x256xi1>, vector<1x256xf32>
    %cst_10 = arith.constant -2.000000e+00 : f32
    %24 = vector.broadcast %cst_10 : f32 to vector<1x256xf32>
    %25 = arith.addf %8, %24 : vector<1x256xf32>
    %cst_11 = arith.constant 0.000000e+00 : f32
    %26 = vector.broadcast %cst_11 : f32 to vector<1x256xf32>
    %27 = arith.cmpf oge, %25, %26 : vector<1x256xf32>
    %cst_12 = arith.constant -2.000000e+00 : f32
    %28 = vector.broadcast %cst_12 : f32 to vector<1x256xf32>
    %29 = arith.addf %8, %28 : vector<1x256xf32>
    %cst_13 = arith.constant 1.500000e+01 : f32
    %30 = vector.broadcast %cst_13 : f32 to vector<1x256xf32>
    %31 = arith.cmpf ole, %29, %30 : vector<1x256xf32>
    %32 = arith.andi %27, %31 : vector<1x256xi1>
    %cst_14 = arith.constant 1.000000e+00 : f32
    %cst_15 = arith.constant 0.000000e+00 : f32
    %33 = vector.broadcast %cst_14 : f32 to vector<1x256xf32>
    %34 = vector.broadcast %cst_15 : f32 to vector<1x256xf32>
    %35 = arith.select %32, %33, %34 : vector<1x256xi1>, vector<1x256xf32>
    %cst_16 = arith.constant -1.000000e+00 : f32
    %36 = vector.broadcast %cst_16 : f32 to vector<1x256xf32>
    %37 = arith.addf %8, %36 : vector<1x256xf32>
    %cst_17 = arith.constant 0.000000e+00 : f32
    %38 = vector.broadcast %cst_17 : f32 to vector<1x256xf32>
    %39 = arith.cmpf oge, %37, %38 : vector<1x256xf32>
    %cst_18 = arith.constant -1.000000e+00 : f32
    %40 = vector.broadcast %cst_18 : f32 to vector<1x256xf32>
    %41 = arith.addf %8, %40 : vector<1x256xf32>
    %cst_19 = arith.constant 1.500000e+01 : f32
    %42 = vector.broadcast %cst_19 : f32 to vector<1x256xf32>
    %43 = arith.cmpf ole, %41, %42 : vector<1x256xf32>
    %44 = arith.andi %39, %43 : vector<1x256xi1>
    %cst_20 = arith.constant 1.000000e+00 : f32
    %cst_21 = arith.constant 0.000000e+00 : f32
    %45 = vector.broadcast %cst_20 : f32 to vector<1x256xf32>
    %46 = vector.broadcast %cst_21 : f32 to vector<1x256xf32>
    %47 = arith.select %44, %45, %46 : vector<1x256xi1>, vector<1x256xf32>
    %cst_22 = arith.constant 0.000000e+00 : f32
    %48 = vector.broadcast %cst_22 : f32 to vector<1x256xf32>
    %49 = arith.addf %8, %48 : vector<1x256xf32>
    %cst_23 = arith.constant 0.000000e+00 : f32
    %50 = vector.broadcast %cst_23 : f32 to vector<1x256xf32>
    %51 = arith.cmpf oge, %49, %50 : vector<1x256xf32>
    %cst_24 = arith.constant 0.000000e+00 : f32
    %52 = vector.broadcast %cst_24 : f32 to vector<1x256xf32>
    %53 = arith.addf %8, %52 : vector<1x256xf32>
    %cst_25 = arith.constant 1.500000e+01 : f32
    %54 = vector.broadcast %cst_25 : f32 to vector<1x256xf32>
    %55 = arith.cmpf ole, %53, %54 : vector<1x256xf32>
    %56 = arith.andi %51, %55 : vector<1x256xi1>
    %cst_26 = arith.constant 1.000000e+00 : f32
    %cst_27 = arith.constant 0.000000e+00 : f32
    %57 = vector.broadcast %cst_26 : f32 to vector<1x256xf32>
    %58 = vector.broadcast %cst_27 : f32 to vector<1x256xf32>
    %59 = arith.select %56, %57, %58 : vector<1x256xi1>, vector<1x256xf32>
    %cst_28 = arith.constant 1.000000e+00 : f32
    %60 = vector.broadcast %cst_28 : f32 to vector<1x256xf32>
    %61 = arith.addf %8, %60 : vector<1x256xf32>
    %cst_29 = arith.constant 0.000000e+00 : f32
    %62 = vector.broadcast %cst_29 : f32 to vector<1x256xf32>
    %63 = arith.cmpf oge, %61, %62 : vector<1x256xf32>
    %cst_30 = arith.constant 1.000000e+00 : f32
    %64 = vector.broadcast %cst_30 : f32 to vector<1x256xf32>
    %65 = arith.addf %8, %64 : vector<1x256xf32>
    %cst_31 = arith.constant 1.500000e+01 : f32
    %66 = vector.broadcast %cst_31 : f32 to vector<1x256xf32>
    %67 = arith.cmpf ole, %65, %66 : vector<1x256xf32>
    %68 = arith.andi %63, %67 : vector<1x256xi1>
    %cst_32 = arith.constant 1.000000e+00 : f32
    %cst_33 = arith.constant 0.000000e+00 : f32
    %69 = vector.broadcast %cst_32 : f32 to vector<1x256xf32>
    %70 = vector.broadcast %cst_33 : f32 to vector<1x256xf32>
    %71 = arith.select %68, %69, %70 : vector<1x256xi1>, vector<1x256xf32>
    %cst_34 = arith.constant 2.000000e+00 : f32
    %72 = vector.broadcast %cst_34 : f32 to vector<1x256xf32>
    %73 = arith.addf %8, %72 : vector<1x256xf32>
    %cst_35 = arith.constant 0.000000e+00 : f32
    %74 = vector.broadcast %cst_35 : f32 to vector<1x256xf32>
    %75 = arith.cmpf oge, %73, %74 : vector<1x256xf32>
    %cst_36 = arith.constant 2.000000e+00 : f32
    %76 = vector.broadcast %cst_36 : f32 to vector<1x256xf32>
    %77 = arith.addf %8, %76 : vector<1x256xf32>
    %cst_37 = arith.constant 1.500000e+01 : f32
    %78 = vector.broadcast %cst_37 : f32 to vector<1x256xf32>
    %79 = arith.cmpf ole, %77, %78 : vector<1x256xf32>
    %80 = arith.andi %75, %79 : vector<1x256xi1>
    %cst_38 = arith.constant 1.000000e+00 : f32
    %cst_39 = arith.constant 0.000000e+00 : f32
    %81 = vector.broadcast %cst_38 : f32 to vector<1x256xf32>
    %82 = vector.broadcast %cst_39 : f32 to vector<1x256xf32>
    %83 = arith.select %80, %81, %82 : vector<1x256xi1>, vector<1x256xf32>
    %cst_40 = arith.constant 3.000000e+00 : f32
    %84 = vector.broadcast %cst_40 : f32 to vector<1x256xf32>
    %85 = arith.addf %8, %84 : vector<1x256xf32>
    %cst_41 = arith.constant 0.000000e+00 : f32
    %86 = vector.broadcast %cst_41 : f32 to vector<1x256xf32>
    %87 = arith.cmpf oge, %85, %86 : vector<1x256xf32>
    %cst_42 = arith.constant 3.000000e+00 : f32
    %88 = vector.broadcast %cst_42 : f32 to vector<1x256xf32>
    %89 = arith.addf %8, %88 : vector<1x256xf32>
    %cst_43 = arith.constant 1.500000e+01 : f32
    %90 = vector.broadcast %cst_43 : f32 to vector<1x256xf32>
    %91 = arith.cmpf ole, %89, %90 : vector<1x256xf32>
    %92 = arith.andi %87, %91 : vector<1x256xi1>
    %cst_44 = arith.constant 1.000000e+00 : f32
    %cst_45 = arith.constant 0.000000e+00 : f32
    %93 = vector.broadcast %cst_44 : f32 to vector<1x256xf32>
    %94 = vector.broadcast %cst_45 : f32 to vector<1x256xf32>
    %95 = arith.select %92, %93, %94 : vector<1x256xi1>, vector<1x256xf32>
    %cst_46 = arith.constant -3.000000e+00 : f32
    %96 = vector.broadcast %cst_46 : f32 to vector<1x256xf32>
    %97 = arith.addf %11, %96 : vector<1x256xf32>
    %cst_47 = arith.constant 0.000000e+00 : f32
    %98 = vector.broadcast %cst_47 : f32 to vector<1x256xf32>
    %99 = arith.cmpf oge, %97, %98 : vector<1x256xf32>
    %cst_48 = arith.constant -3.000000e+00 : f32
    %100 = vector.broadcast %cst_48 : f32 to vector<1x256xf32>
    %101 = arith.addf %11, %100 : vector<1x256xf32>
    %cst_49 = arith.constant 1.500000e+01 : f32
    %102 = vector.broadcast %cst_49 : f32 to vector<1x256xf32>
    %103 = arith.cmpf ole, %101, %102 : vector<1x256xf32>
    %104 = arith.andi %99, %103 : vector<1x256xi1>
    %cst_50 = arith.constant 1.000000e+00 : f32
    %cst_51 = arith.constant 0.000000e+00 : f32
    %105 = vector.broadcast %cst_50 : f32 to vector<1x256xf32>
    %106 = vector.broadcast %cst_51 : f32 to vector<1x256xf32>
    %107 = arith.select %104, %105, %106 : vector<1x256xi1>, vector<1x256xf32>
    %cst_52 = arith.constant -2.000000e+00 : f32
    %108 = vector.broadcast %cst_52 : f32 to vector<1x256xf32>
    %109 = arith.addf %11, %108 : vector<1x256xf32>
    %cst_53 = arith.constant 0.000000e+00 : f32
    %110 = vector.broadcast %cst_53 : f32 to vector<1x256xf32>
    %111 = arith.cmpf oge, %109, %110 : vector<1x256xf32>
    %cst_54 = arith.constant -2.000000e+00 : f32
    %112 = vector.broadcast %cst_54 : f32 to vector<1x256xf32>
    %113 = arith.addf %11, %112 : vector<1x256xf32>
    %cst_55 = arith.constant 1.500000e+01 : f32
    %114 = vector.broadcast %cst_55 : f32 to vector<1x256xf32>
    %115 = arith.cmpf ole, %113, %114 : vector<1x256xf32>
    %116 = arith.andi %111, %115 : vector<1x256xi1>
    %cst_56 = arith.constant 1.000000e+00 : f32
    %cst_57 = arith.constant 0.000000e+00 : f32
    %117 = vector.broadcast %cst_56 : f32 to vector<1x256xf32>
    %118 = vector.broadcast %cst_57 : f32 to vector<1x256xf32>
    %119 = arith.select %116, %117, %118 : vector<1x256xi1>, vector<1x256xf32>
    %cst_58 = arith.constant -1.000000e+00 : f32
    %120 = vector.broadcast %cst_58 : f32 to vector<1x256xf32>
    %121 = arith.addf %11, %120 : vector<1x256xf32>
    %cst_59 = arith.constant 0.000000e+00 : f32
    %122 = vector.broadcast %cst_59 : f32 to vector<1x256xf32>
    %123 = arith.cmpf oge, %121, %122 : vector<1x256xf32>
    %cst_60 = arith.constant -1.000000e+00 : f32
    %124 = vector.broadcast %cst_60 : f32 to vector<1x256xf32>
    %125 = arith.addf %11, %124 : vector<1x256xf32>
    %cst_61 = arith.constant 1.500000e+01 : f32
    %126 = vector.broadcast %cst_61 : f32 to vector<1x256xf32>
    %127 = arith.cmpf ole, %125, %126 : vector<1x256xf32>
    %128 = arith.andi %123, %127 : vector<1x256xi1>
    %cst_62 = arith.constant 1.000000e+00 : f32
    %cst_63 = arith.constant 0.000000e+00 : f32
    %129 = vector.broadcast %cst_62 : f32 to vector<1x256xf32>
    %130 = vector.broadcast %cst_63 : f32 to vector<1x256xf32>
    %131 = arith.select %128, %129, %130 : vector<1x256xi1>, vector<1x256xf32>
    %cst_64 = arith.constant 0.000000e+00 : f32
    %132 = vector.broadcast %cst_64 : f32 to vector<1x256xf32>
    %133 = arith.addf %11, %132 : vector<1x256xf32>
    %cst_65 = arith.constant 0.000000e+00 : f32
    %134 = vector.broadcast %cst_65 : f32 to vector<1x256xf32>
    %135 = arith.cmpf oge, %133, %134 : vector<1x256xf32>
    %cst_66 = arith.constant 0.000000e+00 : f32
    %136 = vector.broadcast %cst_66 : f32 to vector<1x256xf32>
    %137 = arith.addf %11, %136 : vector<1x256xf32>
    %cst_67 = arith.constant 1.500000e+01 : f32
    %138 = vector.broadcast %cst_67 : f32 to vector<1x256xf32>
    %139 = arith.cmpf ole, %137, %138 : vector<1x256xf32>
    %140 = arith.andi %135, %139 : vector<1x256xi1>
    %cst_68 = arith.constant 1.000000e+00 : f32
    %cst_69 = arith.constant 0.000000e+00 : f32
    %141 = vector.broadcast %cst_68 : f32 to vector<1x256xf32>
    %142 = vector.broadcast %cst_69 : f32 to vector<1x256xf32>
    %143 = arith.select %140, %141, %142 : vector<1x256xi1>, vector<1x256xf32>
    %cst_70 = arith.constant 1.000000e+00 : f32
    %144 = vector.broadcast %cst_70 : f32 to vector<1x256xf32>
    %145 = arith.addf %11, %144 : vector<1x256xf32>
    %cst_71 = arith.constant 0.000000e+00 : f32
    %146 = vector.broadcast %cst_71 : f32 to vector<1x256xf32>
    %147 = arith.cmpf oge, %145, %146 : vector<1x256xf32>
    %cst_72 = arith.constant 1.000000e+00 : f32
    %148 = vector.broadcast %cst_72 : f32 to vector<1x256xf32>
    %149 = arith.addf %11, %148 : vector<1x256xf32>
    %cst_73 = arith.constant 1.500000e+01 : f32
    %150 = vector.broadcast %cst_73 : f32 to vector<1x256xf32>
    %151 = arith.cmpf ole, %149, %150 : vector<1x256xf32>
    %152 = arith.andi %147, %151 : vector<1x256xi1>
    %cst_74 = arith.constant 1.000000e+00 : f32
    %cst_75 = arith.constant 0.000000e+00 : f32
    %153 = vector.broadcast %cst_74 : f32 to vector<1x256xf32>
    %154 = vector.broadcast %cst_75 : f32 to vector<1x256xf32>
    %155 = arith.select %152, %153, %154 : vector<1x256xi1>, vector<1x256xf32>
    %cst_76 = arith.constant 2.000000e+00 : f32
    %156 = vector.broadcast %cst_76 : f32 to vector<1x256xf32>
    %157 = arith.addf %11, %156 : vector<1x256xf32>
    %cst_77 = arith.constant 0.000000e+00 : f32
    %158 = vector.broadcast %cst_77 : f32 to vector<1x256xf32>
    %159 = arith.cmpf oge, %157, %158 : vector<1x256xf32>
    %cst_78 = arith.constant 2.000000e+00 : f32
    %160 = vector.broadcast %cst_78 : f32 to vector<1x256xf32>
    %161 = arith.addf %11, %160 : vector<1x256xf32>
    %cst_79 = arith.constant 1.500000e+01 : f32
    %162 = vector.broadcast %cst_79 : f32 to vector<1x256xf32>
    %163 = arith.cmpf ole, %161, %162 : vector<1x256xf32>
    %164 = arith.andi %159, %163 : vector<1x256xi1>
    %cst_80 = arith.constant 1.000000e+00 : f32
    %cst_81 = arith.constant 0.000000e+00 : f32
    %165 = vector.broadcast %cst_80 : f32 to vector<1x256xf32>
    %166 = vector.broadcast %cst_81 : f32 to vector<1x256xf32>
    %167 = arith.select %164, %165, %166 : vector<1x256xi1>, vector<1x256xf32>
    %cst_82 = arith.constant 3.000000e+00 : f32
    %168 = vector.broadcast %cst_82 : f32 to vector<1x256xf32>
    %169 = arith.addf %11, %168 : vector<1x256xf32>
    %cst_83 = arith.constant 0.000000e+00 : f32
    %170 = vector.broadcast %cst_83 : f32 to vector<1x256xf32>
    %171 = arith.cmpf oge, %169, %170 : vector<1x256xf32>
    %cst_84 = arith.constant 3.000000e+00 : f32
    %172 = vector.broadcast %cst_84 : f32 to vector<1x256xf32>
    %173 = arith.addf %11, %172 : vector<1x256xf32>
    %cst_85 = arith.constant 1.500000e+01 : f32
    %174 = vector.broadcast %cst_85 : f32 to vector<1x256xf32>
    %175 = arith.cmpf ole, %173, %174 : vector<1x256xf32>
    %176 = arith.andi %171, %175 : vector<1x256xi1>
    %cst_86 = arith.constant 1.000000e+00 : f32
    %cst_87 = arith.constant 0.000000e+00 : f32
    %177 = vector.broadcast %cst_86 : f32 to vector<1x256xf32>
    %178 = vector.broadcast %cst_87 : f32 to vector<1x256xf32>
    %179 = arith.select %176, %177, %178 : vector<1x256xi1>, vector<1x256xf32>
    %c0_88 = arith.constant 0 : index
    %c0_89 = arith.constant 0 : index
    %180 = vector.load %arg2[%c0_88, %c0_89] : memref<4x49xf32, #tpu.memory_space<vmem>>, vector<4x49xf32>
    %cst_90 = arith.constant 0.000000e+00 : f32
    %181 = vector.broadcast %cst_90 : f32 to vector<4x256xf32>
    %c51_i32 = arith.constant 51 : i32
    %182 = tpu.dynamic_rotate %1 by %c51_i32 dim 1 : vector<4x256xf32>, i32 -> vector<4x256xf32>
    %183 = arith.mulf %23, %107 : vector<1x256xf32>
    %184 = vector.broadcast %183 : vector<1x256xf32> to vector<4x256xf32>
    %185 = arith.mulf %182, %184 : vector<4x256xf32>
    %186 = vector.extract_strided_slice %180 {offsets = [0, 0], sizes = [4, 1], strides = [1, 1]} : vector<4x49xf32> to vector<4x1xf32>
    %187 = vector.broadcast %186 : vector<4x1xf32> to vector<4x256xf32>
    %188 = arith.mulf %185, %187 : vector<4x256xf32>
    %189 = arith.addf %181, %188 : vector<4x256xf32>
    %c50_i32 = arith.constant 50 : i32
    %190 = tpu.dynamic_rotate %1 by %c50_i32 dim 1 : vector<4x256xf32>, i32 -> vector<4x256xf32>
    %191 = arith.mulf %23, %119 : vector<1x256xf32>
    %192 = vector.broadcast %191 : vector<1x256xf32> to vector<4x256xf32>
    %193 = arith.mulf %190, %192 : vector<4x256xf32>
    %194 = vector.extract_strided_slice %180 {offsets = [0, 1], sizes = [4, 1], strides = [1, 1]} : vector<4x49xf32> to vector<4x1xf32>
    %195 = vector.broadcast %194 : vector<4x1xf32> to vector<4x256xf32>
    %196 = arith.mulf %193, %195 : vector<4x256xf32>
    %197 = arith.addf %189, %196 : vector<4x256xf32>
    %c49_i32 = arith.constant 49 : i32
    %198 = tpu.dynamic_rotate %1 by %c49_i32 dim 1 : vector<4x256xf32>, i32 -> vector<4x256xf32>
    %199 = arith.mulf %23, %131 : vector<1x256xf32>
    %200 = vector.broadcast %199 : vector<1x256xf32> to vector<4x256xf32>
    %201 = arith.mulf %198, %200 : vector<4x256xf32>
    %202 = vector.extract_strided_slice %180 {offsets = [0, 2], sizes = [4, 1], strides = [1, 1]} : vector<4x49xf32> to vector<4x1xf32>
    %203 = vector.broadcast %202 : vector<4x1xf32> to vector<4x256xf32>
    %204 = arith.mulf %201, %203 : vector<4x256xf32>
    %205 = arith.addf %197, %204 : vector<4x256xf32>
    %c48_i32 = arith.constant 48 : i32
    %206 = tpu.dynamic_rotate %1 by %c48_i32 dim 1 : vector<4x256xf32>, i32 -> vector<4x256xf32>
    %207 = arith.mulf %23, %143 : vector<1x256xf32>
    %208 = vector.broadcast %207 : vector<1x256xf32> to vector<4x256xf32>
    %209 = arith.mulf %206, %208 : vector<4x256xf32>
    %210 = vector.extract_strided_slice %180 {offsets = [0, 3], sizes = [4, 1], strides = [1, 1]} : vector<4x49xf32> to vector<4x1xf32>
    %211 = vector.broadcast %210 : vector<4x1xf32> to vector<4x256xf32>
    %212 = arith.mulf %209, %211 : vector<4x256xf32>
    %213 = arith.addf %205, %212 : vector<4x256xf32>
    %c47_i32 = arith.constant 47 : i32
    %214 = tpu.dynamic_rotate %1 by %c47_i32 dim 1 : vector<4x256xf32>, i32 -> vector<4x256xf32>
    %215 = arith.mulf %23, %155 : vector<1x256xf32>
    %216 = vector.broadcast %215 : vector<1x256xf32> to vector<4x256xf32>
    %217 = arith.mulf %214, %216 : vector<4x256xf32>
    %218 = vector.extract_strided_slice %180 {offsets = [0, 4], sizes = [4, 1], strides = [1, 1]} : vector<4x49xf32> to vector<4x1xf32>
    %219 = vector.broadcast %218 : vector<4x1xf32> to vector<4x256xf32>
    %220 = arith.mulf %217, %219 : vector<4x256xf32>
    %221 = arith.addf %213, %220 : vector<4x256xf32>
    %c46_i32 = arith.constant 46 : i32
    %222 = tpu.dynamic_rotate %1 by %c46_i32 dim 1 : vector<4x256xf32>, i32 -> vector<4x256xf32>
    %223 = arith.mulf %23, %167 : vector<1x256xf32>
    %224 = vector.broadcast %223 : vector<1x256xf32> to vector<4x256xf32>
    %225 = arith.mulf %222, %224 : vector<4x256xf32>
    %226 = vector.extract_strided_slice %180 {offsets = [0, 5], sizes = [4, 1], strides = [1, 1]} : vector<4x49xf32> to vector<4x1xf32>
    %227 = vector.broadcast %226 : vector<4x1xf32> to vector<4x256xf32>
    %228 = arith.mulf %225, %227 : vector<4x256xf32>
    %229 = arith.addf %221, %228 : vector<4x256xf32>
    %c45_i32 = arith.constant 45 : i32
    %230 = tpu.dynamic_rotate %1 by %c45_i32 dim 1 : vector<4x256xf32>, i32 -> vector<4x256xf32>
    %231 = arith.mulf %23, %179 : vector<1x256xf32>
    %232 = vector.broadcast %231 : vector<1x256xf32> to vector<4x256xf32>
    %233 = arith.mulf %230, %232 : vector<4x256xf32>
    %234 = vector.extract_strided_slice %180 {offsets = [0, 6], sizes = [4, 1], strides = [1, 1]} : vector<4x49xf32> to vector<4x1xf32>
    %235 = vector.broadcast %234 : vector<4x1xf32> to vector<4x256xf32>
    %236 = arith.mulf %233, %235 : vector<4x256xf32>
    %237 = arith.addf %229, %236 : vector<4x256xf32>
    %c35_i32 = arith.constant 35 : i32
    %238 = tpu.dynamic_rotate %1 by %c35_i32 dim 1 : vector<4x256xf32>, i32 -> vector<4x256xf32>
    %239 = arith.mulf %35, %107 : vector<1x256xf32>
    %240 = vector.broadcast %239 : vector<1x256xf32> to vector<4x256xf32>
    %241 = arith.mulf %238, %240 : vector<4x256xf32>
    %242 = vector.extract_strided_slice %180 {offsets = [0, 7], sizes = [4, 1], strides = [1, 1]} : vector<4x49xf32> to vector<4x1xf32>
    %243 = vector.broadcast %242 : vector<4x1xf32> to vector<4x256xf32>
    %244 = arith.mulf %241, %243 : vector<4x256xf32>
    %245 = arith.addf %237, %244 : vector<4x256xf32>
    %c34_i32 = arith.constant 34 : i32
    %246 = tpu.dynamic_rotate %1 by %c34_i32 dim 1 : vector<4x256xf32>, i32 -> vector<4x256xf32>
    %247 = arith.mulf %35, %119 : vector<1x256xf32>
    %248 = vector.broadcast %247 : vector<1x256xf32> to vector<4x256xf32>
    %249 = arith.mulf %246, %248 : vector<4x256xf32>
    %250 = vector.extract_strided_slice %180 {offsets = [0, 8], sizes = [4, 1], strides = [1, 1]} : vector<4x49xf32> to vector<4x1xf32>
    %251 = vector.broadcast %250 : vector<4x1xf32> to vector<4x256xf32>
    %252 = arith.mulf %249, %251 : vector<4x256xf32>
    %253 = arith.addf %245, %252 : vector<4x256xf32>
    %c33_i32 = arith.constant 33 : i32
    %254 = tpu.dynamic_rotate %1 by %c33_i32 dim 1 : vector<4x256xf32>, i32 -> vector<4x256xf32>
    %255 = arith.mulf %35, %131 : vector<1x256xf32>
    %256 = vector.broadcast %255 : vector<1x256xf32> to vector<4x256xf32>
    %257 = arith.mulf %254, %256 : vector<4x256xf32>
    %258 = vector.extract_strided_slice %180 {offsets = [0, 9], sizes = [4, 1], strides = [1, 1]} : vector<4x49xf32> to vector<4x1xf32>
    %259 = vector.broadcast %258 : vector<4x1xf32> to vector<4x256xf32>
    %260 = arith.mulf %257, %259 : vector<4x256xf32>
    %261 = arith.addf %253, %260 : vector<4x256xf32>
    %c32_i32 = arith.constant 32 : i32
    %262 = tpu.dynamic_rotate %1 by %c32_i32 dim 1 : vector<4x256xf32>, i32 -> vector<4x256xf32>
    %263 = arith.mulf %35, %143 : vector<1x256xf32>
    %264 = vector.broadcast %263 : vector<1x256xf32> to vector<4x256xf32>
    %265 = arith.mulf %262, %264 : vector<4x256xf32>
    %266 = vector.extract_strided_slice %180 {offsets = [0, 10], sizes = [4, 1], strides = [1, 1]} : vector<4x49xf32> to vector<4x1xf32>
    %267 = vector.broadcast %266 : vector<4x1xf32> to vector<4x256xf32>
    %268 = arith.mulf %265, %267 : vector<4x256xf32>
    %269 = arith.addf %261, %268 : vector<4x256xf32>
    %c31_i32 = arith.constant 31 : i32
    %270 = tpu.dynamic_rotate %1 by %c31_i32 dim 1 : vector<4x256xf32>, i32 -> vector<4x256xf32>
    %271 = arith.mulf %35, %155 : vector<1x256xf32>
    %272 = vector.broadcast %271 : vector<1x256xf32> to vector<4x256xf32>
    %273 = arith.mulf %270, %272 : vector<4x256xf32>
    %274 = vector.extract_strided_slice %180 {offsets = [0, 11], sizes = [4, 1], strides = [1, 1]} : vector<4x49xf32> to vector<4x1xf32>
    %275 = vector.broadcast %274 : vector<4x1xf32> to vector<4x256xf32>
    %276 = arith.mulf %273, %275 : vector<4x256xf32>
    %277 = arith.addf %269, %276 : vector<4x256xf32>
    %c30_i32 = arith.constant 30 : i32
    %278 = tpu.dynamic_rotate %1 by %c30_i32 dim 1 : vector<4x256xf32>, i32 -> vector<4x256xf32>
    %279 = arith.mulf %35, %167 : vector<1x256xf32>
    %280 = vector.broadcast %279 : vector<1x256xf32> to vector<4x256xf32>
    %281 = arith.mulf %278, %280 : vector<4x256xf32>
    %282 = vector.extract_strided_slice %180 {offsets = [0, 12], sizes = [4, 1], strides = [1, 1]} : vector<4x49xf32> to vector<4x1xf32>
    %283 = vector.broadcast %282 : vector<4x1xf32> to vector<4x256xf32>
    %284 = arith.mulf %281, %283 : vector<4x256xf32>
    %285 = arith.addf %277, %284 : vector<4x256xf32>
    %c29_i32 = arith.constant 29 : i32
    %286 = tpu.dynamic_rotate %1 by %c29_i32 dim 1 : vector<4x256xf32>, i32 -> vector<4x256xf32>
    %287 = arith.mulf %35, %179 : vector<1x256xf32>
    %288 = vector.broadcast %287 : vector<1x256xf32> to vector<4x256xf32>
    %289 = arith.mulf %286, %288 : vector<4x256xf32>
    %290 = vector.extract_strided_slice %180 {offsets = [0, 13], sizes = [4, 1], strides = [1, 1]} : vector<4x49xf32> to vector<4x1xf32>
    %291 = vector.broadcast %290 : vector<4x1xf32> to vector<4x256xf32>
    %292 = arith.mulf %289, %291 : vector<4x256xf32>
    %293 = arith.addf %285, %292 : vector<4x256xf32>
    %c19_i32 = arith.constant 19 : i32
    %294 = tpu.dynamic_rotate %1 by %c19_i32 dim 1 : vector<4x256xf32>, i32 -> vector<4x256xf32>
    %295 = arith.mulf %47, %107 : vector<1x256xf32>
    %296 = vector.broadcast %295 : vector<1x256xf32> to vector<4x256xf32>
    %297 = arith.mulf %294, %296 : vector<4x256xf32>
    %298 = vector.extract_strided_slice %180 {offsets = [0, 14], sizes = [4, 1], strides = [1, 1]} : vector<4x49xf32> to vector<4x1xf32>
    %299 = vector.broadcast %298 : vector<4x1xf32> to vector<4x256xf32>
    %300 = arith.mulf %297, %299 : vector<4x256xf32>
    %301 = arith.addf %293, %300 : vector<4x256xf32>
    %c18_i32 = arith.constant 18 : i32
    %302 = tpu.dynamic_rotate %1 by %c18_i32 dim 1 : vector<4x256xf32>, i32 -> vector<4x256xf32>
    %303 = arith.mulf %47, %119 : vector<1x256xf32>
    %304 = vector.broadcast %303 : vector<1x256xf32> to vector<4x256xf32>
    %305 = arith.mulf %302, %304 : vector<4x256xf32>
    %306 = vector.extract_strided_slice %180 {offsets = [0, 15], sizes = [4, 1], strides = [1, 1]} : vector<4x49xf32> to vector<4x1xf32>
    %307 = vector.broadcast %306 : vector<4x1xf32> to vector<4x256xf32>
    %308 = arith.mulf %305, %307 : vector<4x256xf32>
    %309 = arith.addf %301, %308 : vector<4x256xf32>
    %c17_i32 = arith.constant 17 : i32
    %310 = tpu.dynamic_rotate %1 by %c17_i32 dim 1 : vector<4x256xf32>, i32 -> vector<4x256xf32>
    %311 = arith.mulf %47, %131 : vector<1x256xf32>
    %312 = vector.broadcast %311 : vector<1x256xf32> to vector<4x256xf32>
    %313 = arith.mulf %310, %312 : vector<4x256xf32>
    %314 = vector.extract_strided_slice %180 {offsets = [0, 16], sizes = [4, 1], strides = [1, 1]} : vector<4x49xf32> to vector<4x1xf32>
    %315 = vector.broadcast %314 : vector<4x1xf32> to vector<4x256xf32>
    %316 = arith.mulf %313, %315 : vector<4x256xf32>
    %317 = arith.addf %309, %316 : vector<4x256xf32>
    %c16_i32 = arith.constant 16 : i32
    %318 = tpu.dynamic_rotate %1 by %c16_i32 dim 1 : vector<4x256xf32>, i32 -> vector<4x256xf32>
    %319 = arith.mulf %47, %143 : vector<1x256xf32>
    %320 = vector.broadcast %319 : vector<1x256xf32> to vector<4x256xf32>
    %321 = arith.mulf %318, %320 : vector<4x256xf32>
    %322 = vector.extract_strided_slice %180 {offsets = [0, 17], sizes = [4, 1], strides = [1, 1]} : vector<4x49xf32> to vector<4x1xf32>
    %323 = vector.broadcast %322 : vector<4x1xf32> to vector<4x256xf32>
    %324 = arith.mulf %321, %323 : vector<4x256xf32>
    %325 = arith.addf %317, %324 : vector<4x256xf32>
    %c15_i32 = arith.constant 15 : i32
    %326 = tpu.dynamic_rotate %1 by %c15_i32 dim 1 : vector<4x256xf32>, i32 -> vector<4x256xf32>
    %327 = arith.mulf %47, %155 : vector<1x256xf32>
    %328 = vector.broadcast %327 : vector<1x256xf32> to vector<4x256xf32>
    %329 = arith.mulf %326, %328 : vector<4x256xf32>
    %330 = vector.extract_strided_slice %180 {offsets = [0, 18], sizes = [4, 1], strides = [1, 1]} : vector<4x49xf32> to vector<4x1xf32>
    %331 = vector.broadcast %330 : vector<4x1xf32> to vector<4x256xf32>
    %332 = arith.mulf %329, %331 : vector<4x256xf32>
    %333 = arith.addf %325, %332 : vector<4x256xf32>
    %c14_i32 = arith.constant 14 : i32
    %334 = tpu.dynamic_rotate %1 by %c14_i32 dim 1 : vector<4x256xf32>, i32 -> vector<4x256xf32>
    %335 = arith.mulf %47, %167 : vector<1x256xf32>
    %336 = vector.broadcast %335 : vector<1x256xf32> to vector<4x256xf32>
    %337 = arith.mulf %334, %336 : vector<4x256xf32>
    %338 = vector.extract_strided_slice %180 {offsets = [0, 19], sizes = [4, 1], strides = [1, 1]} : vector<4x49xf32> to vector<4x1xf32>
    %339 = vector.broadcast %338 : vector<4x1xf32> to vector<4x256xf32>
    %340 = arith.mulf %337, %339 : vector<4x256xf32>
    %341 = arith.addf %333, %340 : vector<4x256xf32>
    %c13_i32 = arith.constant 13 : i32
    %342 = tpu.dynamic_rotate %1 by %c13_i32 dim 1 : vector<4x256xf32>, i32 -> vector<4x256xf32>
    %343 = arith.mulf %47, %179 : vector<1x256xf32>
    %344 = vector.broadcast %343 : vector<1x256xf32> to vector<4x256xf32>
    %345 = arith.mulf %342, %344 : vector<4x256xf32>
    %346 = vector.extract_strided_slice %180 {offsets = [0, 20], sizes = [4, 1], strides = [1, 1]} : vector<4x49xf32> to vector<4x1xf32>
    %347 = vector.broadcast %346 : vector<4x1xf32> to vector<4x256xf32>
    %348 = arith.mulf %345, %347 : vector<4x256xf32>
    %349 = arith.addf %341, %348 : vector<4x256xf32>
    %c3_i32 = arith.constant 3 : i32
    %350 = tpu.dynamic_rotate %1 by %c3_i32 dim 1 : vector<4x256xf32>, i32 -> vector<4x256xf32>
    %351 = arith.mulf %59, %107 : vector<1x256xf32>
    %352 = vector.broadcast %351 : vector<1x256xf32> to vector<4x256xf32>
    %353 = arith.mulf %350, %352 : vector<4x256xf32>
    %354 = vector.extract_strided_slice %180 {offsets = [0, 21], sizes = [4, 1], strides = [1, 1]} : vector<4x49xf32> to vector<4x1xf32>
    %355 = vector.broadcast %354 : vector<4x1xf32> to vector<4x256xf32>
    %356 = arith.mulf %353, %355 : vector<4x256xf32>
    %357 = arith.addf %349, %356 : vector<4x256xf32>
    %c2_i32 = arith.constant 2 : i32
    %358 = tpu.dynamic_rotate %1 by %c2_i32 dim 1 : vector<4x256xf32>, i32 -> vector<4x256xf32>
    %359 = arith.mulf %59, %119 : vector<1x256xf32>
    %360 = vector.broadcast %359 : vector<1x256xf32> to vector<4x256xf32>
    %361 = arith.mulf %358, %360 : vector<4x256xf32>
    %362 = vector.extract_strided_slice %180 {offsets = [0, 22], sizes = [4, 1], strides = [1, 1]} : vector<4x49xf32> to vector<4x1xf32>
    %363 = vector.broadcast %362 : vector<4x1xf32> to vector<4x256xf32>
    %364 = arith.mulf %361, %363 : vector<4x256xf32>
    %365 = arith.addf %357, %364 : vector<4x256xf32>
    %c1_i32 = arith.constant 1 : i32
    %366 = tpu.dynamic_rotate %1 by %c1_i32 dim 1 : vector<4x256xf32>, i32 -> vector<4x256xf32>
    %367 = arith.mulf %59, %131 : vector<1x256xf32>
    %368 = vector.broadcast %367 : vector<1x256xf32> to vector<4x256xf32>
    %369 = arith.mulf %366, %368 : vector<4x256xf32>
    %370 = vector.extract_strided_slice %180 {offsets = [0, 23], sizes = [4, 1], strides = [1, 1]} : vector<4x49xf32> to vector<4x1xf32>
    %371 = vector.broadcast %370 : vector<4x1xf32> to vector<4x256xf32>
    %372 = arith.mulf %369, %371 : vector<4x256xf32>
    %373 = arith.addf %365, %372 : vector<4x256xf32>
    %374 = arith.mulf %59, %143 : vector<1x256xf32>
    %375 = vector.broadcast %374 : vector<1x256xf32> to vector<4x256xf32>
    %376 = arith.mulf %1, %375 : vector<4x256xf32>
    %377 = vector.extract_strided_slice %180 {offsets = [0, 24], sizes = [4, 1], strides = [1, 1]} : vector<4x49xf32> to vector<4x1xf32>
    %378 = vector.broadcast %377 : vector<4x1xf32> to vector<4x256xf32>
    %379 = arith.mulf %376, %378 : vector<4x256xf32>
    %380 = arith.addf %373, %379 : vector<4x256xf32>
    %c255_i32 = arith.constant 255 : i32
    %381 = tpu.dynamic_rotate %1 by %c255_i32 dim 1 : vector<4x256xf32>, i32 -> vector<4x256xf32>
    %382 = arith.mulf %59, %155 : vector<1x256xf32>
    %383 = vector.broadcast %382 : vector<1x256xf32> to vector<4x256xf32>
    %384 = arith.mulf %381, %383 : vector<4x256xf32>
    %385 = vector.extract_strided_slice %180 {offsets = [0, 25], sizes = [4, 1], strides = [1, 1]} : vector<4x49xf32> to vector<4x1xf32>
    %386 = vector.broadcast %385 : vector<4x1xf32> to vector<4x256xf32>
    %387 = arith.mulf %384, %386 : vector<4x256xf32>
    %388 = arith.addf %380, %387 : vector<4x256xf32>
    %c254_i32 = arith.constant 254 : i32
    %389 = tpu.dynamic_rotate %1 by %c254_i32 dim 1 : vector<4x256xf32>, i32 -> vector<4x256xf32>
    %390 = arith.mulf %59, %167 : vector<1x256xf32>
    %391 = vector.broadcast %390 : vector<1x256xf32> to vector<4x256xf32>
    %392 = arith.mulf %389, %391 : vector<4x256xf32>
    %393 = vector.extract_strided_slice %180 {offsets = [0, 26], sizes = [4, 1], strides = [1, 1]} : vector<4x49xf32> to vector<4x1xf32>
    %394 = vector.broadcast %393 : vector<4x1xf32> to vector<4x256xf32>
    %395 = arith.mulf %392, %394 : vector<4x256xf32>
    %396 = arith.addf %388, %395 : vector<4x256xf32>
    %c253_i32 = arith.constant 253 : i32
    %397 = tpu.dynamic_rotate %1 by %c253_i32 dim 1 : vector<4x256xf32>, i32 -> vector<4x256xf32>
    %398 = arith.mulf %59, %179 : vector<1x256xf32>
    %399 = vector.broadcast %398 : vector<1x256xf32> to vector<4x256xf32>
    %400 = arith.mulf %397, %399 : vector<4x256xf32>
    %401 = vector.extract_strided_slice %180 {offsets = [0, 27], sizes = [4, 1], strides = [1, 1]} : vector<4x49xf32> to vector<4x1xf32>
    %402 = vector.broadcast %401 : vector<4x1xf32> to vector<4x256xf32>
    %403 = arith.mulf %400, %402 : vector<4x256xf32>
    %404 = arith.addf %396, %403 : vector<4x256xf32>
    %c243_i32 = arith.constant 243 : i32
    %405 = tpu.dynamic_rotate %1 by %c243_i32 dim 1 : vector<4x256xf32>, i32 -> vector<4x256xf32>
    %406 = arith.mulf %71, %107 : vector<1x256xf32>
    %407 = vector.broadcast %406 : vector<1x256xf32> to vector<4x256xf32>
    %408 = arith.mulf %405, %407 : vector<4x256xf32>
    %409 = vector.extract_strided_slice %180 {offsets = [0, 28], sizes = [4, 1], strides = [1, 1]} : vector<4x49xf32> to vector<4x1xf32>
    %410 = vector.broadcast %409 : vector<4x1xf32> to vector<4x256xf32>
    %411 = arith.mulf %408, %410 : vector<4x256xf32>
    %412 = arith.addf %404, %411 : vector<4x256xf32>
    %c242_i32 = arith.constant 242 : i32
    %413 = tpu.dynamic_rotate %1 by %c242_i32 dim 1 : vector<4x256xf32>, i32 -> vector<4x256xf32>
    %414 = arith.mulf %71, %119 : vector<1x256xf32>
    %415 = vector.broadcast %414 : vector<1x256xf32> to vector<4x256xf32>
    %416 = arith.mulf %413, %415 : vector<4x256xf32>
    %417 = vector.extract_strided_slice %180 {offsets = [0, 29], sizes = [4, 1], strides = [1, 1]} : vector<4x49xf32> to vector<4x1xf32>
    %418 = vector.broadcast %417 : vector<4x1xf32> to vector<4x256xf32>
    %419 = arith.mulf %416, %418 : vector<4x256xf32>
    %420 = arith.addf %412, %419 : vector<4x256xf32>
    %c241_i32 = arith.constant 241 : i32
    %421 = tpu.dynamic_rotate %1 by %c241_i32 dim 1 : vector<4x256xf32>, i32 -> vector<4x256xf32>
    %422 = arith.mulf %71, %131 : vector<1x256xf32>
    %423 = vector.broadcast %422 : vector<1x256xf32> to vector<4x256xf32>
    %424 = arith.mulf %421, %423 : vector<4x256xf32>
    %425 = vector.extract_strided_slice %180 {offsets = [0, 30], sizes = [4, 1], strides = [1, 1]} : vector<4x49xf32> to vector<4x1xf32>
    %426 = vector.broadcast %425 : vector<4x1xf32> to vector<4x256xf32>
    %427 = arith.mulf %424, %426 : vector<4x256xf32>
    %428 = arith.addf %420, %427 : vector<4x256xf32>
    %c240_i32 = arith.constant 240 : i32
    %429 = tpu.dynamic_rotate %1 by %c240_i32 dim 1 : vector<4x256xf32>, i32 -> vector<4x256xf32>
    %430 = arith.mulf %71, %143 : vector<1x256xf32>
    %431 = vector.broadcast %430 : vector<1x256xf32> to vector<4x256xf32>
    %432 = arith.mulf %429, %431 : vector<4x256xf32>
    %433 = vector.extract_strided_slice %180 {offsets = [0, 31], sizes = [4, 1], strides = [1, 1]} : vector<4x49xf32> to vector<4x1xf32>
    %434 = vector.broadcast %433 : vector<4x1xf32> to vector<4x256xf32>
    %435 = arith.mulf %432, %434 : vector<4x256xf32>
    %436 = arith.addf %428, %435 : vector<4x256xf32>
    %c239_i32 = arith.constant 239 : i32
    %437 = tpu.dynamic_rotate %1 by %c239_i32 dim 1 : vector<4x256xf32>, i32 -> vector<4x256xf32>
    %438 = arith.mulf %71, %155 : vector<1x256xf32>
    %439 = vector.broadcast %438 : vector<1x256xf32> to vector<4x256xf32>
    %440 = arith.mulf %437, %439 : vector<4x256xf32>
    %441 = vector.extract_strided_slice %180 {offsets = [0, 32], sizes = [4, 1], strides = [1, 1]} : vector<4x49xf32> to vector<4x1xf32>
    %442 = vector.broadcast %441 : vector<4x1xf32> to vector<4x256xf32>
    %443 = arith.mulf %440, %442 : vector<4x256xf32>
    %444 = arith.addf %436, %443 : vector<4x256xf32>
    %c238_i32 = arith.constant 238 : i32
    %445 = tpu.dynamic_rotate %1 by %c238_i32 dim 1 : vector<4x256xf32>, i32 -> vector<4x256xf32>
    %446 = arith.mulf %71, %167 : vector<1x256xf32>
    %447 = vector.broadcast %446 : vector<1x256xf32> to vector<4x256xf32>
    %448 = arith.mulf %445, %447 : vector<4x256xf32>
    %449 = vector.extract_strided_slice %180 {offsets = [0, 33], sizes = [4, 1], strides = [1, 1]} : vector<4x49xf32> to vector<4x1xf32>
    %450 = vector.broadcast %449 : vector<4x1xf32> to vector<4x256xf32>
    %451 = arith.mulf %448, %450 : vector<4x256xf32>
    %452 = arith.addf %444, %451 : vector<4x256xf32>
    %c237_i32 = arith.constant 237 : i32
    %453 = tpu.dynamic_rotate %1 by %c237_i32 dim 1 : vector<4x256xf32>, i32 -> vector<4x256xf32>
    %454 = arith.mulf %71, %179 : vector<1x256xf32>
    %455 = vector.broadcast %454 : vector<1x256xf32> to vector<4x256xf32>
    %456 = arith.mulf %453, %455 : vector<4x256xf32>
    %457 = vector.extract_strided_slice %180 {offsets = [0, 34], sizes = [4, 1], strides = [1, 1]} : vector<4x49xf32> to vector<4x1xf32>
    %458 = vector.broadcast %457 : vector<4x1xf32> to vector<4x256xf32>
    %459 = arith.mulf %456, %458 : vector<4x256xf32>
    %460 = arith.addf %452, %459 : vector<4x256xf32>
    %c227_i32 = arith.constant 227 : i32
    %461 = tpu.dynamic_rotate %1 by %c227_i32 dim 1 : vector<4x256xf32>, i32 -> vector<4x256xf32>
    %462 = arith.mulf %83, %107 : vector<1x256xf32>
    %463 = vector.broadcast %462 : vector<1x256xf32> to vector<4x256xf32>
    %464 = arith.mulf %461, %463 : vector<4x256xf32>
    %465 = vector.extract_strided_slice %180 {offsets = [0, 35], sizes = [4, 1], strides = [1, 1]} : vector<4x49xf32> to vector<4x1xf32>
    %466 = vector.broadcast %465 : vector<4x1xf32> to vector<4x256xf32>
    %467 = arith.mulf %464, %466 : vector<4x256xf32>
    %468 = arith.addf %460, %467 : vector<4x256xf32>
    %c226_i32 = arith.constant 226 : i32
    %469 = tpu.dynamic_rotate %1 by %c226_i32 dim 1 : vector<4x256xf32>, i32 -> vector<4x256xf32>
    %470 = arith.mulf %83, %119 : vector<1x256xf32>
    %471 = vector.broadcast %470 : vector<1x256xf32> to vector<4x256xf32>
    %472 = arith.mulf %469, %471 : vector<4x256xf32>
    %473 = vector.extract_strided_slice %180 {offsets = [0, 36], sizes = [4, 1], strides = [1, 1]} : vector<4x49xf32> to vector<4x1xf32>
    %474 = vector.broadcast %473 : vector<4x1xf32> to vector<4x256xf32>
    %475 = arith.mulf %472, %474 : vector<4x256xf32>
    %476 = arith.addf %468, %475 : vector<4x256xf32>
    %c225_i32 = arith.constant 225 : i32
    %477 = tpu.dynamic_rotate %1 by %c225_i32 dim 1 : vector<4x256xf32>, i32 -> vector<4x256xf32>
    %478 = arith.mulf %83, %131 : vector<1x256xf32>
    %479 = vector.broadcast %478 : vector<1x256xf32> to vector<4x256xf32>
    %480 = arith.mulf %477, %479 : vector<4x256xf32>
    %481 = vector.extract_strided_slice %180 {offsets = [0, 37], sizes = [4, 1], strides = [1, 1]} : vector<4x49xf32> to vector<4x1xf32>
    %482 = vector.broadcast %481 : vector<4x1xf32> to vector<4x256xf32>
    %483 = arith.mulf %480, %482 : vector<4x256xf32>
    %484 = arith.addf %476, %483 : vector<4x256xf32>
    %c224_i32 = arith.constant 224 : i32
    %485 = tpu.dynamic_rotate %1 by %c224_i32 dim 1 : vector<4x256xf32>, i32 -> vector<4x256xf32>
    %486 = arith.mulf %83, %143 : vector<1x256xf32>
    %487 = vector.broadcast %486 : vector<1x256xf32> to vector<4x256xf32>
    %488 = arith.mulf %485, %487 : vector<4x256xf32>
    %489 = vector.extract_strided_slice %180 {offsets = [0, 38], sizes = [4, 1], strides = [1, 1]} : vector<4x49xf32> to vector<4x1xf32>
    %490 = vector.broadcast %489 : vector<4x1xf32> to vector<4x256xf32>
    %491 = arith.mulf %488, %490 : vector<4x256xf32>
    %492 = arith.addf %484, %491 : vector<4x256xf32>
    %c223_i32 = arith.constant 223 : i32
    %493 = tpu.dynamic_rotate %1 by %c223_i32 dim 1 : vector<4x256xf32>, i32 -> vector<4x256xf32>
    %494 = arith.mulf %83, %155 : vector<1x256xf32>
    %495 = vector.broadcast %494 : vector<1x256xf32> to vector<4x256xf32>
    %496 = arith.mulf %493, %495 : vector<4x256xf32>
    %497 = vector.extract_strided_slice %180 {offsets = [0, 39], sizes = [4, 1], strides = [1, 1]} : vector<4x49xf32> to vector<4x1xf32>
    %498 = vector.broadcast %497 : vector<4x1xf32> to vector<4x256xf32>
    %499 = arith.mulf %496, %498 : vector<4x256xf32>
    %500 = arith.addf %492, %499 : vector<4x256xf32>
    %c222_i32 = arith.constant 222 : i32
    %501 = tpu.dynamic_rotate %1 by %c222_i32 dim 1 : vector<4x256xf32>, i32 -> vector<4x256xf32>
    %502 = arith.mulf %83, %167 : vector<1x256xf32>
    %503 = vector.broadcast %502 : vector<1x256xf32> to vector<4x256xf32>
    %504 = arith.mulf %501, %503 : vector<4x256xf32>
    %505 = vector.extract_strided_slice %180 {offsets = [0, 40], sizes = [4, 1], strides = [1, 1]} : vector<4x49xf32> to vector<4x1xf32>
    %506 = vector.broadcast %505 : vector<4x1xf32> to vector<4x256xf32>
    %507 = arith.mulf %504, %506 : vector<4x256xf32>
    %508 = arith.addf %500, %507 : vector<4x256xf32>
    %c221_i32 = arith.constant 221 : i32
    %509 = tpu.dynamic_rotate %1 by %c221_i32 dim 1 : vector<4x256xf32>, i32 -> vector<4x256xf32>
    %510 = arith.mulf %83, %179 : vector<1x256xf32>
    %511 = vector.broadcast %510 : vector<1x256xf32> to vector<4x256xf32>
    %512 = arith.mulf %509, %511 : vector<4x256xf32>
    %513 = vector.extract_strided_slice %180 {offsets = [0, 41], sizes = [4, 1], strides = [1, 1]} : vector<4x49xf32> to vector<4x1xf32>
    %514 = vector.broadcast %513 : vector<4x1xf32> to vector<4x256xf32>
    %515 = arith.mulf %512, %514 : vector<4x256xf32>
    %516 = arith.addf %508, %515 : vector<4x256xf32>
    %c211_i32 = arith.constant 211 : i32
    %517 = tpu.dynamic_rotate %1 by %c211_i32 dim 1 : vector<4x256xf32>, i32 -> vector<4x256xf32>
    %518 = arith.mulf %95, %107 : vector<1x256xf32>
    %519 = vector.broadcast %518 : vector<1x256xf32> to vector<4x256xf32>
    %520 = arith.mulf %517, %519 : vector<4x256xf32>
    %521 = vector.extract_strided_slice %180 {offsets = [0, 42], sizes = [4, 1], strides = [1, 1]} : vector<4x49xf32> to vector<4x1xf32>
    %522 = vector.broadcast %521 : vector<4x1xf32> to vector<4x256xf32>
    %523 = arith.mulf %520, %522 : vector<4x256xf32>
    %524 = arith.addf %516, %523 : vector<4x256xf32>
    %c210_i32 = arith.constant 210 : i32
    %525 = tpu.dynamic_rotate %1 by %c210_i32 dim 1 : vector<4x256xf32>, i32 -> vector<4x256xf32>
    %526 = arith.mulf %95, %119 : vector<1x256xf32>
    %527 = vector.broadcast %526 : vector<1x256xf32> to vector<4x256xf32>
    %528 = arith.mulf %525, %527 : vector<4x256xf32>
    %529 = vector.extract_strided_slice %180 {offsets = [0, 43], sizes = [4, 1], strides = [1, 1]} : vector<4x49xf32> to vector<4x1xf32>
    %530 = vector.broadcast %529 : vector<4x1xf32> to vector<4x256xf32>
    %531 = arith.mulf %528, %530 : vector<4x256xf32>
    %532 = arith.addf %524, %531 : vector<4x256xf32>
    %c209_i32 = arith.constant 209 : i32
    %533 = tpu.dynamic_rotate %1 by %c209_i32 dim 1 : vector<4x256xf32>, i32 -> vector<4x256xf32>
    %534 = arith.mulf %95, %131 : vector<1x256xf32>
    %535 = vector.broadcast %534 : vector<1x256xf32> to vector<4x256xf32>
    %536 = arith.mulf %533, %535 : vector<4x256xf32>
    %537 = vector.extract_strided_slice %180 {offsets = [0, 44], sizes = [4, 1], strides = [1, 1]} : vector<4x49xf32> to vector<4x1xf32>
    %538 = vector.broadcast %537 : vector<4x1xf32> to vector<4x256xf32>
    %539 = arith.mulf %536, %538 : vector<4x256xf32>
    %540 = arith.addf %532, %539 : vector<4x256xf32>
    %c208_i32 = arith.constant 208 : i32
    %541 = tpu.dynamic_rotate %1 by %c208_i32 dim 1 : vector<4x256xf32>, i32 -> vector<4x256xf32>
    %542 = arith.mulf %95, %143 : vector<1x256xf32>
    %543 = vector.broadcast %542 : vector<1x256xf32> to vector<4x256xf32>
    %544 = arith.mulf %541, %543 : vector<4x256xf32>
    %545 = vector.extract_strided_slice %180 {offsets = [0, 45], sizes = [4, 1], strides = [1, 1]} : vector<4x49xf32> to vector<4x1xf32>
    %546 = vector.broadcast %545 : vector<4x1xf32> to vector<4x256xf32>
    %547 = arith.mulf %544, %546 : vector<4x256xf32>
    %548 = arith.addf %540, %547 : vector<4x256xf32>
    %c207_i32 = arith.constant 207 : i32
    %549 = tpu.dynamic_rotate %1 by %c207_i32 dim 1 : vector<4x256xf32>, i32 -> vector<4x256xf32>
    %550 = arith.mulf %95, %155 : vector<1x256xf32>
    %551 = vector.broadcast %550 : vector<1x256xf32> to vector<4x256xf32>
    %552 = arith.mulf %549, %551 : vector<4x256xf32>
    %553 = vector.extract_strided_slice %180 {offsets = [0, 46], sizes = [4, 1], strides = [1, 1]} : vector<4x49xf32> to vector<4x1xf32>
    %554 = vector.broadcast %553 : vector<4x1xf32> to vector<4x256xf32>
    %555 = arith.mulf %552, %554 : vector<4x256xf32>
    %556 = arith.addf %548, %555 : vector<4x256xf32>
    %c206_i32 = arith.constant 206 : i32
    %557 = tpu.dynamic_rotate %1 by %c206_i32 dim 1 : vector<4x256xf32>, i32 -> vector<4x256xf32>
    %558 = arith.mulf %95, %167 : vector<1x256xf32>
    %559 = vector.broadcast %558 : vector<1x256xf32> to vector<4x256xf32>
    %560 = arith.mulf %557, %559 : vector<4x256xf32>
    %561 = vector.extract_strided_slice %180 {offsets = [0, 47], sizes = [4, 1], strides = [1, 1]} : vector<4x49xf32> to vector<4x1xf32>
    %562 = vector.broadcast %561 : vector<4x1xf32> to vector<4x256xf32>
    %563 = arith.mulf %560, %562 : vector<4x256xf32>
    %564 = arith.addf %556, %563 : vector<4x256xf32>
    %c205_i32 = arith.constant 205 : i32
    %565 = tpu.dynamic_rotate %1 by %c205_i32 dim 1 : vector<4x256xf32>, i32 -> vector<4x256xf32>
    %566 = arith.mulf %95, %179 : vector<1x256xf32>
    %567 = vector.broadcast %566 : vector<1x256xf32> to vector<4x256xf32>
    %568 = arith.mulf %565, %567 : vector<4x256xf32>
    %569 = vector.extract_strided_slice %180 {offsets = [0, 48], sizes = [4, 1], strides = [1, 1]} : vector<4x49xf32> to vector<4x1xf32>
    %570 = vector.broadcast %569 : vector<4x1xf32> to vector<4x256xf32>
    %571 = arith.mulf %568, %570 : vector<4x256xf32>
    %572 = arith.addf %564, %571 : vector<4x256xf32>
    %c0_91 = arith.constant 0 : index
    %c0_92 = arith.constant 0 : index
    %573 = vector.load %arg3[%c0_91, %c0_92] : memref<4x1xf32, #tpu.memory_space<vmem>>, vector<4x1xf32>
    %574 = vector.broadcast %573 : vector<4x1xf32> to vector<4x256xf32>
    %575 = arith.addf %572, %574 : vector<4x256xf32>
    %cst_93 = arith.constant dense<0.000000e+00> : vector<256xf32>
    %576 = vector.multi_reduction <add>, %575, %cst_93 [0] : vector<4x256xf32> to vector<256xf32>
    %577 = vector.shape_cast %576 : vector<256xf32> to vector<1x256xf32>
    %cst_94 = arith.constant 2.500000e-01 : f32
    %578 = vector.broadcast %cst_94 : f32 to vector<1x256xf32>
    %579 = arith.mulf %577, %578 : vector<1x256xf32>
    %580 = vector.broadcast %579 : vector<1x256xf32> to vector<4x256xf32>
    %581 = arith.subf %575, %580 : vector<4x256xf32>
    %582 = arith.mulf %581, %581 : vector<4x256xf32>
    %cst_95 = arith.constant dense<0.000000e+00> : vector<256xf32>
    %583 = vector.multi_reduction <add>, %582, %cst_95 [0] : vector<4x256xf32> to vector<256xf32>
    %584 = vector.shape_cast %583 : vector<256xf32> to vector<1x256xf32>
    %cst_96 = arith.constant 2.500000e-01 : f32
    %585 = vector.broadcast %cst_96 : f32 to vector<1x256xf32>
    %586 = arith.mulf %584, %585 : vector<1x256xf32>
    %cst_97 = arith.constant 9.99999974E-6 : f32
    %587 = vector.broadcast %cst_97 : f32 to vector<1x256xf32>
    %588 = arith.addf %586, %587 : vector<1x256xf32>
    %589 = math.rsqrt %588 : vector<1x256xf32>
    %590 = vector.broadcast %589 : vector<1x256xf32> to vector<4x256xf32>
    %591 = arith.mulf %581, %590 : vector<4x256xf32>
    %c0_98 = arith.constant 0 : index
    %c0_99 = arith.constant 0 : index
    %592 = vector.load %arg4[%c0_98, %c0_99] : memref<4x1xf32, #tpu.memory_space<vmem>>, vector<4x1xf32>
    %593 = vector.broadcast %592 : vector<4x1xf32> to vector<4x256xf32>
    %594 = arith.mulf %591, %593 : vector<4x256xf32>
    %c0_100 = arith.constant 0 : index
    %c0_101 = arith.constant 0 : index
    %595 = vector.load %arg5[%c0_100, %c0_101] : memref<4x1xf32, #tpu.memory_space<vmem>>, vector<4x1xf32>
    %596 = vector.broadcast %595 : vector<4x1xf32> to vector<4x256xf32>
    %597 = arith.addf %594, %596 : vector<4x256xf32>
    %cst_102 = arith.constant 0.000000e+00 : f32
    %598 = vector.broadcast %cst_102 : f32 to vector<16x256xf32>
    %c0_103 = arith.constant 0 : index
    %c0_104 = arith.constant 0 : index
    %c0_105 = arith.constant 0 : index
    %599 = vector.load %arg6[%c0_103, %c0_104, %c0_105] : memref<9x16x4xf32, #tpu.memory_space<vmem>>, vector<1x16x4xf32>
    %600 = vector.shape_cast %599 : vector<1x16x4xf32> to vector<16x4xf32>
    %c17_i32_106 = arith.constant 17 : i32
    %601 = tpu.dynamic_rotate %597 by %c17_i32_106 dim 1 : vector<4x256xf32>, i32 -> vector<4x256xf32>
    %602 = arith.mulf %47, %131 : vector<1x256xf32>
    %603 = vector.broadcast %602 : vector<1x256xf32> to vector<4x256xf32>
    %604 = arith.mulf %601, %603 : vector<4x256xf32>
    %cst_107 = arith.constant dense<0.000000e+00> : vector<16x256xf32>
    %605 = tpu.matmul %600, %604, %cst_107 {dimension_numbers = #tpu.dot_dimension_numbers<[1], [0], [0], [1], [0, 0, 1, 1], [], []>} : vector<16x4xf32>, vector<4x256xf32>, vector<16x256xf32> -> vector<16x256xf32>
    %606 = arith.addf %598, %605 : vector<16x256xf32>
    %c1 = arith.constant 1 : index
    %c0_108 = arith.constant 0 : index
    %c0_109 = arith.constant 0 : index
    %607 = vector.load %arg6[%c1, %c0_108, %c0_109] : memref<9x16x4xf32, #tpu.memory_space<vmem>>, vector<1x16x4xf32>
    %608 = vector.shape_cast %607 : vector<1x16x4xf32> to vector<16x4xf32>
    %c16_i32_110 = arith.constant 16 : i32
    %609 = tpu.dynamic_rotate %597 by %c16_i32_110 dim 1 : vector<4x256xf32>, i32 -> vector<4x256xf32>
    %610 = arith.mulf %47, %143 : vector<1x256xf32>
    %611 = vector.broadcast %610 : vector<1x256xf32> to vector<4x256xf32>
    %612 = arith.mulf %609, %611 : vector<4x256xf32>
    %cst_111 = arith.constant dense<0.000000e+00> : vector<16x256xf32>
    %613 = tpu.matmul %608, %612, %cst_111 {dimension_numbers = #tpu.dot_dimension_numbers<[1], [0], [0], [1], [0, 0, 1, 1], [], []>} : vector<16x4xf32>, vector<4x256xf32>, vector<16x256xf32> -> vector<16x256xf32>
    %614 = arith.addf %606, %613 : vector<16x256xf32>
    %c2 = arith.constant 2 : index
    %c0_112 = arith.constant 0 : index
    %c0_113 = arith.constant 0 : index
    %615 = vector.load %arg6[%c2, %c0_112, %c0_113] : memref<9x16x4xf32, #tpu.memory_space<vmem>>, vector<1x16x4xf32>
    %616 = vector.shape_cast %615 : vector<1x16x4xf32> to vector<16x4xf32>
    %c15_i32_114 = arith.constant 15 : i32
    %617 = tpu.dynamic_rotate %597 by %c15_i32_114 dim 1 : vector<4x256xf32>, i32 -> vector<4x256xf32>
    %618 = arith.mulf %47, %155 : vector<1x256xf32>
    %619 = vector.broadcast %618 : vector<1x256xf32> to vector<4x256xf32>
    %620 = arith.mulf %617, %619 : vector<4x256xf32>
    %cst_115 = arith.constant dense<0.000000e+00> : vector<16x256xf32>
    %621 = tpu.matmul %616, %620, %cst_115 {dimension_numbers = #tpu.dot_dimension_numbers<[1], [0], [0], [1], [0, 0, 1, 1], [], []>} : vector<16x4xf32>, vector<4x256xf32>, vector<16x256xf32> -> vector<16x256xf32>
    %622 = arith.addf %614, %621 : vector<16x256xf32>
    %c3 = arith.constant 3 : index
    %c0_116 = arith.constant 0 : index
    %c0_117 = arith.constant 0 : index
    %623 = vector.load %arg6[%c3, %c0_116, %c0_117] : memref<9x16x4xf32, #tpu.memory_space<vmem>>, vector<1x16x4xf32>
    %624 = vector.shape_cast %623 : vector<1x16x4xf32> to vector<16x4xf32>
    %c1_i32_118 = arith.constant 1 : i32
    %625 = tpu.dynamic_rotate %597 by %c1_i32_118 dim 1 : vector<4x256xf32>, i32 -> vector<4x256xf32>
    %626 = arith.mulf %59, %131 : vector<1x256xf32>
    %627 = vector.broadcast %626 : vector<1x256xf32> to vector<4x256xf32>
    %628 = arith.mulf %625, %627 : vector<4x256xf32>
    %cst_119 = arith.constant dense<0.000000e+00> : vector<16x256xf32>
    %629 = tpu.matmul %624, %628, %cst_119 {dimension_numbers = #tpu.dot_dimension_numbers<[1], [0], [0], [1], [0, 0, 1, 1], [], []>} : vector<16x4xf32>, vector<4x256xf32>, vector<16x256xf32> -> vector<16x256xf32>
    %630 = arith.addf %622, %629 : vector<16x256xf32>
    %c4 = arith.constant 4 : index
    %c0_120 = arith.constant 0 : index
    %c0_121 = arith.constant 0 : index
    %631 = vector.load %arg6[%c4, %c0_120, %c0_121] : memref<9x16x4xf32, #tpu.memory_space<vmem>>, vector<1x16x4xf32>
    %632 = vector.shape_cast %631 : vector<1x16x4xf32> to vector<16x4xf32>
    %633 = arith.mulf %59, %143 : vector<1x256xf32>
    %634 = vector.broadcast %633 : vector<1x256xf32> to vector<4x256xf32>
    %635 = arith.mulf %597, %634 : vector<4x256xf32>
    %cst_122 = arith.constant dense<0.000000e+00> : vector<16x256xf32>
    %636 = tpu.matmul %632, %635, %cst_122 {dimension_numbers = #tpu.dot_dimension_numbers<[1], [0], [0], [1], [0, 0, 1, 1], [], []>} : vector<16x4xf32>, vector<4x256xf32>, vector<16x256xf32> -> vector<16x256xf32>
    %637 = arith.addf %630, %636 : vector<16x256xf32>
    %c5 = arith.constant 5 : index
    %c0_123 = arith.constant 0 : index
    %c0_124 = arith.constant 0 : index
    %638 = vector.load %arg6[%c5, %c0_123, %c0_124] : memref<9x16x4xf32, #tpu.memory_space<vmem>>, vector<1x16x4xf32>
    %639 = vector.shape_cast %638 : vector<1x16x4xf32> to vector<16x4xf32>
    %c255_i32_125 = arith.constant 255 : i32
    %640 = tpu.dynamic_rotate %597 by %c255_i32_125 dim 1 : vector<4x256xf32>, i32 -> vector<4x256xf32>
    %641 = arith.mulf %59, %155 : vector<1x256xf32>
    %642 = vector.broadcast %641 : vector<1x256xf32> to vector<4x256xf32>
    %643 = arith.mulf %640, %642 : vector<4x256xf32>
    %cst_126 = arith.constant dense<0.000000e+00> : vector<16x256xf32>
    %644 = tpu.matmul %639, %643, %cst_126 {dimension_numbers = #tpu.dot_dimension_numbers<[1], [0], [0], [1], [0, 0, 1, 1], [], []>} : vector<16x4xf32>, vector<4x256xf32>, vector<16x256xf32> -> vector<16x256xf32>
    %645 = arith.addf %637, %644 : vector<16x256xf32>
    %c6 = arith.constant 6 : index
    %c0_127 = arith.constant 0 : index
    %c0_128 = arith.constant 0 : index
    %646 = vector.load %arg6[%c6, %c0_127, %c0_128] : memref<9x16x4xf32, #tpu.memory_space<vmem>>, vector<1x16x4xf32>
    %647 = vector.shape_cast %646 : vector<1x16x4xf32> to vector<16x4xf32>
    %c241_i32_129 = arith.constant 241 : i32
    %648 = tpu.dynamic_rotate %597 by %c241_i32_129 dim 1 : vector<4x256xf32>, i32 -> vector<4x256xf32>
    %649 = arith.mulf %71, %131 : vector<1x256xf32>
    %650 = vector.broadcast %649 : vector<1x256xf32> to vector<4x256xf32>
    %651 = arith.mulf %648, %650 : vector<4x256xf32>
    %cst_130 = arith.constant dense<0.000000e+00> : vector<16x256xf32>
    %652 = tpu.matmul %647, %651, %cst_130 {dimension_numbers = #tpu.dot_dimension_numbers<[1], [0], [0], [1], [0, 0, 1, 1], [], []>} : vector<16x4xf32>, vector<4x256xf32>, vector<16x256xf32> -> vector<16x256xf32>
    %653 = arith.addf %645, %652 : vector<16x256xf32>
    %c7 = arith.constant 7 : index
    %c0_131 = arith.constant 0 : index
    %c0_132 = arith.constant 0 : index
    %654 = vector.load %arg6[%c7, %c0_131, %c0_132] : memref<9x16x4xf32, #tpu.memory_space<vmem>>, vector<1x16x4xf32>
    %655 = vector.shape_cast %654 : vector<1x16x4xf32> to vector<16x4xf32>
    %c240_i32_133 = arith.constant 240 : i32
    %656 = tpu.dynamic_rotate %597 by %c240_i32_133 dim 1 : vector<4x256xf32>, i32 -> vector<4x256xf32>
    %657 = arith.mulf %71, %143 : vector<1x256xf32>
    %658 = vector.broadcast %657 : vector<1x256xf32> to vector<4x256xf32>
    %659 = arith.mulf %656, %658 : vector<4x256xf32>
    %cst_134 = arith.constant dense<0.000000e+00> : vector<16x256xf32>
    %660 = tpu.matmul %655, %659, %cst_134 {dimension_numbers = #tpu.dot_dimension_numbers<[1], [0], [0], [1], [0, 0, 1, 1], [], []>} : vector<16x4xf32>, vector<4x256xf32>, vector<16x256xf32> -> vector<16x256xf32>
    %661 = arith.addf %653, %660 : vector<16x256xf32>
    %c8 = arith.constant 8 : index
    %c0_135 = arith.constant 0 : index
    %c0_136 = arith.constant 0 : index
    %662 = vector.load %arg6[%c8, %c0_135, %c0_136] : memref<9x16x4xf32, #tpu.memory_space<vmem>>, vector<1x16x4xf32>
    %663 = vector.shape_cast %662 : vector<1x16x4xf32> to vector<16x4xf32>
    %c239_i32_137 = arith.constant 239 : i32
    %664 = tpu.dynamic_rotate %597 by %c239_i32_137 dim 1 : vector<4x256xf32>, i32 -> vector<4x256xf32>
    %665 = arith.mulf %71, %155 : vector<1x256xf32>
    %666 = vector.broadcast %665 : vector<1x256xf32> to vector<4x256xf32>
    %667 = arith.mulf %664, %666 : vector<4x256xf32>
    %cst_138 = arith.constant dense<0.000000e+00> : vector<16x256xf32>
    %668 = tpu.matmul %663, %667, %cst_138 {dimension_numbers = #tpu.dot_dimension_numbers<[1], [0], [0], [1], [0, 0, 1, 1], [], []>} : vector<16x4xf32>, vector<4x256xf32>, vector<16x256xf32> -> vector<16x256xf32>
    %669 = arith.addf %661, %668 : vector<16x256xf32>
    %c0_139 = arith.constant 0 : index
    %c0_140 = arith.constant 0 : index
    %670 = vector.load %arg7[%c0_139, %c0_140] : memref<16x1xf32, #tpu.memory_space<vmem>>, vector<16x1xf32>
    %671 = vector.broadcast %670 : vector<16x1xf32> to vector<16x256xf32>
    %672 = arith.addf %669, %671 : vector<16x256xf32>
    %cst_141 = arith.constant 0.707106769 : f32
    %673 = vector.broadcast %cst_141 : f32 to vector<16x256xf32>
    %674 = arith.mulf %672, %673 : vector<16x256xf32>
    %675 = math.absf %674 : vector<16x256xf32>
    %cst_142 = arith.constant 0.327591091 : f32
    %676 = vector.broadcast %cst_142 : f32 to vector<16x256xf32>
    %677 = arith.mulf %676, %675 : vector<16x256xf32>
    %cst_143 = arith.constant 1.000000e+00 : f32
    %678 = vector.broadcast %cst_143 : f32 to vector<16x256xf32>
    %679 = arith.addf %678, %677 : vector<16x256xf32>
    %cst_144 = arith.constant 1.000000e+00 : f32
    %680 = vector.broadcast %cst_144 : f32 to vector<16x256xf32>
    %681 = arith.divf %680, %679 : vector<16x256xf32>
    %cst_145 = arith.constant 1.06140542 : f32
    %682 = vector.broadcast %cst_145 : f32 to vector<16x256xf32>
    %683 = arith.mulf %682, %681 : vector<16x256xf32>
    %cst_146 = arith.constant 1.45315206 : f32
    %684 = vector.broadcast %cst_146 : f32 to vector<16x256xf32>
    %685 = arith.subf %683, %684 : vector<16x256xf32>
    %686 = arith.mulf %685, %681 : vector<16x256xf32>
    %cst_147 = arith.constant 1.42141378 : f32
    %687 = vector.broadcast %cst_147 : f32 to vector<16x256xf32>
    %688 = arith.addf %686, %687 : vector<16x256xf32>
    %689 = arith.mulf %688, %681 : vector<16x256xf32>
    %cst_148 = arith.constant 0.284496725 : f32
    %690 = vector.broadcast %cst_148 : f32 to vector<16x256xf32>
    %691 = arith.subf %689, %690 : vector<16x256xf32>
    %692 = arith.mulf %691, %681 : vector<16x256xf32>
    %cst_149 = arith.constant 0.254829586 : f32
    %693 = vector.broadcast %cst_149 : f32 to vector<16x256xf32>
    %694 = arith.addf %692, %693 : vector<16x256xf32>
    %695 = arith.mulf %694, %681 : vector<16x256xf32>
    %cst_150 = arith.constant 0.000000e+00 : f32
    %696 = vector.broadcast %cst_150 : f32 to vector<16x256xf32>
    %697 = arith.subf %696, %675 : vector<16x256xf32>
    %698 = arith.mulf %697, %675 : vector<16x256xf32>
    %699 = math.exp %698 : vector<16x256xf32>
    %700 = arith.mulf %695, %699 : vector<16x256xf32>
    %cst_151 = arith.constant 1.000000e+00 : f32
    %701 = vector.broadcast %cst_151 : f32 to vector<16x256xf32>
    %702 = arith.subf %701, %700 : vector<16x256xf32>
    %cst_152 = arith.constant 0.000000e+00 : f32
    %703 = vector.broadcast %cst_152 : f32 to vector<16x256xf32>
    %704 = arith.cmpf oge, %674, %703 : vector<16x256xf32>
    %cst_153 = arith.constant 0.000000e+00 : f32
    %705 = vector.broadcast %cst_153 : f32 to vector<16x256xf32>
    %706 = arith.subf %705, %702 : vector<16x256xf32>
    %707 = arith.select %704, %702, %706 : vector<16x256xi1>, vector<16x256xf32>
    %cst_154 = arith.constant 5.000000e-01 : f32
    %708 = vector.broadcast %cst_154 : f32 to vector<16x256xf32>
    %709 = arith.mulf %708, %672 : vector<16x256xf32>
    %cst_155 = arith.constant 1.000000e+00 : f32
    %710 = vector.broadcast %cst_155 : f32 to vector<16x256xf32>
    %711 = arith.addf %710, %707 : vector<16x256xf32>
    %712 = arith.mulf %709, %711 : vector<16x256xf32>
    %c0_156 = arith.constant 0 : index
    %c0_157 = arith.constant 0 : index
    %713 = vector.load %arg10[%c0_156, %c0_157] : memref<8x4xf32, #tpu.memory_space<vmem>>, vector<8x4xf32>
    %cst_158 = arith.constant dense<0.000000e+00> : vector<8x256xf32>
    %714 = tpu.matmul %713, %1, %cst_158 {dimension_numbers = #tpu.dot_dimension_numbers<[1], [0], [0], [1], [0, 0, 1, 1], [], []>} : vector<8x4xf32>, vector<4x256xf32>, vector<8x256xf32> -> vector<8x256xf32>
    %c0_159 = arith.constant 0 : index
    %c0_160 = arith.constant 0 : index
    %c0_161 = arith.constant 0 : index
    %715 = vector.load %arg8[%c0_159, %c0_160, %c0_161] : memref<9x8x16xf32, #tpu.memory_space<vmem>>, vector<1x8x16xf32>
    %716 = vector.shape_cast %715 : vector<1x8x16xf32> to vector<8x16xf32>
    %c17_i32_162 = arith.constant 17 : i32
    %717 = tpu.dynamic_rotate %712 by %c17_i32_162 dim 1 : vector<16x256xf32>, i32 -> vector<16x256xf32>
    %718 = arith.mulf %47, %131 : vector<1x256xf32>
    %719 = vector.broadcast %718 : vector<1x256xf32> to vector<16x256xf32>
    %720 = arith.mulf %717, %719 : vector<16x256xf32>
    %cst_163 = arith.constant dense<0.000000e+00> : vector<8x256xf32>
    %721 = tpu.matmul %716, %720, %cst_163 {dimension_numbers = #tpu.dot_dimension_numbers<[1], [0], [0], [1], [0, 0, 1, 1], [], []>} : vector<8x16xf32>, vector<16x256xf32>, vector<8x256xf32> -> vector<8x256xf32>
    %722 = arith.addf %714, %721 : vector<8x256xf32>
    %c1_164 = arith.constant 1 : index
    %c0_165 = arith.constant 0 : index
    %c0_166 = arith.constant 0 : index
    %723 = vector.load %arg8[%c1_164, %c0_165, %c0_166] : memref<9x8x16xf32, #tpu.memory_space<vmem>>, vector<1x8x16xf32>
    %724 = vector.shape_cast %723 : vector<1x8x16xf32> to vector<8x16xf32>
    %c16_i32_167 = arith.constant 16 : i32
    %725 = tpu.dynamic_rotate %712 by %c16_i32_167 dim 1 : vector<16x256xf32>, i32 -> vector<16x256xf32>
    %726 = arith.mulf %47, %143 : vector<1x256xf32>
    %727 = vector.broadcast %726 : vector<1x256xf32> to vector<16x256xf32>
    %728 = arith.mulf %725, %727 : vector<16x256xf32>
    %cst_168 = arith.constant dense<0.000000e+00> : vector<8x256xf32>
    %729 = tpu.matmul %724, %728, %cst_168 {dimension_numbers = #tpu.dot_dimension_numbers<[1], [0], [0], [1], [0, 0, 1, 1], [], []>} : vector<8x16xf32>, vector<16x256xf32>, vector<8x256xf32> -> vector<8x256xf32>
    %730 = arith.addf %722, %729 : vector<8x256xf32>
    %c2_169 = arith.constant 2 : index
    %c0_170 = arith.constant 0 : index
    %c0_171 = arith.constant 0 : index
    %731 = vector.load %arg8[%c2_169, %c0_170, %c0_171] : memref<9x8x16xf32, #tpu.memory_space<vmem>>, vector<1x8x16xf32>
    %732 = vector.shape_cast %731 : vector<1x8x16xf32> to vector<8x16xf32>
    %c15_i32_172 = arith.constant 15 : i32
    %733 = tpu.dynamic_rotate %712 by %c15_i32_172 dim 1 : vector<16x256xf32>, i32 -> vector<16x256xf32>
    %734 = arith.mulf %47, %155 : vector<1x256xf32>
    %735 = vector.broadcast %734 : vector<1x256xf32> to vector<16x256xf32>
    %736 = arith.mulf %733, %735 : vector<16x256xf32>
    %cst_173 = arith.constant dense<0.000000e+00> : vector<8x256xf32>
    %737 = tpu.matmul %732, %736, %cst_173 {dimension_numbers = #tpu.dot_dimension_numbers<[1], [0], [0], [1], [0, 0, 1, 1], [], []>} : vector<8x16xf32>, vector<16x256xf32>, vector<8x256xf32> -> vector<8x256xf32>
    %738 = arith.addf %730, %737 : vector<8x256xf32>
    %c3_174 = arith.constant 3 : index
    %c0_175 = arith.constant 0 : index
    %c0_176 = arith.constant 0 : index
    %739 = vector.load %arg8[%c3_174, %c0_175, %c0_176] : memref<9x8x16xf32, #tpu.memory_space<vmem>>, vector<1x8x16xf32>
    %740 = vector.shape_cast %739 : vector<1x8x16xf32> to vector<8x16xf32>
    %c1_i32_177 = arith.constant 1 : i32
    %741 = tpu.dynamic_rotate %712 by %c1_i32_177 dim 1 : vector<16x256xf32>, i32 -> vector<16x256xf32>
    %742 = arith.mulf %59, %131 : vector<1x256xf32>
    %743 = vector.broadcast %742 : vector<1x256xf32> to vector<16x256xf32>
    %744 = arith.mulf %741, %743 : vector<16x256xf32>
    %cst_178 = arith.constant dense<0.000000e+00> : vector<8x256xf32>
    %745 = tpu.matmul %740, %744, %cst_178 {dimension_numbers = #tpu.dot_dimension_numbers<[1], [0], [0], [1], [0, 0, 1, 1], [], []>} : vector<8x16xf32>, vector<16x256xf32>, vector<8x256xf32> -> vector<8x256xf32>
    %746 = arith.addf %738, %745 : vector<8x256xf32>
    %c4_179 = arith.constant 4 : index
    %c0_180 = arith.constant 0 : index
    %c0_181 = arith.constant 0 : index
    %747 = vector.load %arg8[%c4_179, %c0_180, %c0_181] : memref<9x8x16xf32, #tpu.memory_space<vmem>>, vector<1x8x16xf32>
    %748 = vector.shape_cast %747 : vector<1x8x16xf32> to vector<8x16xf32>
    %749 = arith.mulf %59, %143 : vector<1x256xf32>
    %750 = vector.broadcast %749 : vector<1x256xf32> to vector<16x256xf32>
    %751 = arith.mulf %712, %750 : vector<16x256xf32>
    %cst_182 = arith.constant dense<0.000000e+00> : vector<8x256xf32>
    %752 = tpu.matmul %748, %751, %cst_182 {dimension_numbers = #tpu.dot_dimension_numbers<[1], [0], [0], [1], [0, 0, 1, 1], [], []>} : vector<8x16xf32>, vector<16x256xf32>, vector<8x256xf32> -> vector<8x256xf32>
    %753 = arith.addf %746, %752 : vector<8x256xf32>
    %c5_183 = arith.constant 5 : index
    %c0_184 = arith.constant 0 : index
    %c0_185 = arith.constant 0 : index
    %754 = vector.load %arg8[%c5_183, %c0_184, %c0_185] : memref<9x8x16xf32, #tpu.memory_space<vmem>>, vector<1x8x16xf32>
    %755 = vector.shape_cast %754 : vector<1x8x16xf32> to vector<8x16xf32>
    %c255_i32_186 = arith.constant 255 : i32
    %756 = tpu.dynamic_rotate %712 by %c255_i32_186 dim 1 : vector<16x256xf32>, i32 -> vector<16x256xf32>
    %757 = arith.mulf %59, %155 : vector<1x256xf32>
    %758 = vector.broadcast %757 : vector<1x256xf32> to vector<16x256xf32>
    %759 = arith.mulf %756, %758 : vector<16x256xf32>
    %cst_187 = arith.constant dense<0.000000e+00> : vector<8x256xf32>
    %760 = tpu.matmul %755, %759, %cst_187 {dimension_numbers = #tpu.dot_dimension_numbers<[1], [0], [0], [1], [0, 0, 1, 1], [], []>} : vector<8x16xf32>, vector<16x256xf32>, vector<8x256xf32> -> vector<8x256xf32>
    %761 = arith.addf %753, %760 : vector<8x256xf32>
    %c6_188 = arith.constant 6 : index
    %c0_189 = arith.constant 0 : index
    %c0_190 = arith.constant 0 : index
    %762 = vector.load %arg8[%c6_188, %c0_189, %c0_190] : memref<9x8x16xf32, #tpu.memory_space<vmem>>, vector<1x8x16xf32>
    %763 = vector.shape_cast %762 : vector<1x8x16xf32> to vector<8x16xf32>
    %c241_i32_191 = arith.constant 241 : i32
    %764 = tpu.dynamic_rotate %712 by %c241_i32_191 dim 1 : vector<16x256xf32>, i32 -> vector<16x256xf32>
    %765 = arith.mulf %71, %131 : vector<1x256xf32>
    %766 = vector.broadcast %765 : vector<1x256xf32> to vector<16x256xf32>
    %767 = arith.mulf %764, %766 : vector<16x256xf32>
    %cst_192 = arith.constant dense<0.000000e+00> : vector<8x256xf32>
    %768 = tpu.matmul %763, %767, %cst_192 {dimension_numbers = #tpu.dot_dimension_numbers<[1], [0], [0], [1], [0, 0, 1, 1], [], []>} : vector<8x16xf32>, vector<16x256xf32>, vector<8x256xf32> -> vector<8x256xf32>
    %769 = arith.addf %761, %768 : vector<8x256xf32>
    %c7_193 = arith.constant 7 : index
    %c0_194 = arith.constant 0 : index
    %c0_195 = arith.constant 0 : index
    %770 = vector.load %arg8[%c7_193, %c0_194, %c0_195] : memref<9x8x16xf32, #tpu.memory_space<vmem>>, vector<1x8x16xf32>
    %771 = vector.shape_cast %770 : vector<1x8x16xf32> to vector<8x16xf32>
    %c240_i32_196 = arith.constant 240 : i32
    %772 = tpu.dynamic_rotate %712 by %c240_i32_196 dim 1 : vector<16x256xf32>, i32 -> vector<16x256xf32>
    %773 = arith.mulf %71, %143 : vector<1x256xf32>
    %774 = vector.broadcast %773 : vector<1x256xf32> to vector<16x256xf32>
    %775 = arith.mulf %772, %774 : vector<16x256xf32>
    %cst_197 = arith.constant dense<0.000000e+00> : vector<8x256xf32>
    %776 = tpu.matmul %771, %775, %cst_197 {dimension_numbers = #tpu.dot_dimension_numbers<[1], [0], [0], [1], [0, 0, 1, 1], [], []>} : vector<8x16xf32>, vector<16x256xf32>, vector<8x256xf32> -> vector<8x256xf32>
    %777 = arith.addf %769, %776 : vector<8x256xf32>
    %c8_198 = arith.constant 8 : index
    %c0_199 = arith.constant 0 : index
    %c0_200 = arith.constant 0 : index
    %778 = vector.load %arg8[%c8_198, %c0_199, %c0_200] : memref<9x8x16xf32, #tpu.memory_space<vmem>>, vector<1x8x16xf32>
    %779 = vector.shape_cast %778 : vector<1x8x16xf32> to vector<8x16xf32>
    %c239_i32_201 = arith.constant 239 : i32
    %780 = tpu.dynamic_rotate %712 by %c239_i32_201 dim 1 : vector<16x256xf32>, i32 -> vector<16x256xf32>
    %781 = arith.mulf %71, %155 : vector<1x256xf32>
    %782 = vector.broadcast %781 : vector<1x256xf32> to vector<16x256xf32>
    %783 = arith.mulf %780, %782 : vector<16x256xf32>
    %cst_202 = arith.constant dense<0.000000e+00> : vector<8x256xf32>
    %784 = tpu.matmul %779, %783, %cst_202 {dimension_numbers = #tpu.dot_dimension_numbers<[1], [0], [0], [1], [0, 0, 1, 1], [], []>} : vector<8x16xf32>, vector<16x256xf32>, vector<8x256xf32> -> vector<8x256xf32>
    %785 = arith.addf %777, %784 : vector<8x256xf32>
    %c0_203 = arith.constant 0 : index
    %c0_204 = arith.constant 0 : index
    %786 = vector.load %arg9[%c0_203, %c0_204] : memref<8x1xf32, #tpu.memory_space<vmem>>, vector<8x1xf32>
    %787 = vector.broadcast %786 : vector<8x1xf32> to vector<8x256xf32>
    %788 = arith.addf %785, %787 : vector<8x256xf32>
    %c0_205 = arith.constant 0 : index
    %c0_206 = arith.constant 0 : index
    %789 = vector.load %arg11[%c0_205, %c0_206] : memref<8x1xf32, #tpu.memory_space<vmem>>, vector<8x1xf32>
    %790 = vector.broadcast %789 : vector<8x1xf32> to vector<8x256xf32>
    %791 = arith.addf %788, %790 : vector<8x256xf32>
    %792 = vector.shape_cast %791 : vector<8x256xf32> to vector<1x8x256xf32>
    %c0_207 = arith.constant 0 : index
    %c0_208 = arith.constant 0 : index
    %c0_209 = arith.constant 0 : index
    %793 = vector.load %arg12[%c0_207, %c0_208, %c0_209] : memref<1x8x256xf32, #tpu.memory_space<vmem>>, vector<1x8x256xf32>
    tpu.vector_store %arg12[%c0_207, %c0_208, %c0_209], %792 {strides = array<i32>} : memref<1x8x256xf32, #tpu.memory_space<vmem>>, vector<1x8x256xf32>,
    return
  }
  func.func @transform_0(%arg0: i32) -> (i32, i32, i32) {
    %c0_i32 = arith.constant 0 : i32
    %c0_i32_0 = arith.constant 0 : i32
    %c0_i32_1 = arith.constant 0 : i32
    return %arg0, %c0_i32, %c0_i32_0 : i32, i32, i32
  }
  func.func @transform_1(%arg0: i32) -> (i32, i32) {
    %c0_i32 = arith.constant 0 : i32
    %c0_i32_0 = arith.constant 0 : i32
    %c0_i32_1 = arith.constant 0 : i32
    return %c0_i32, %c0_i32_0 : i32, i32
  }
  func.func @transform_2(%arg0: i32) -> (i32, i32) {
    %c0_i32 = arith.constant 0 : i32
    %c0_i32_0 = arith.constant 0 : i32
    %c0_i32_1 = arith.constant 0 : i32
    return %c0_i32, %c0_i32_0 : i32, i32
  }
  func.func @transform_3(%arg0: i32) -> (i32, i32) {
    %c0_i32 = arith.constant 0 : i32
    %c0_i32_0 = arith.constant 0 : i32
    %c0_i32_1 = arith.constant 0 : i32
    return %c0_i32, %c0_i32_0 : i32, i32
  }
  func.func @transform_4(%arg0: i32) -> (i32, i32) {
    %c0_i32 = arith.constant 0 : i32
    %c0_i32_0 = arith.constant 0 : i32
    %c0_i32_1 = arith.constant 0 : i32
    return %c0_i32, %c0_i32_0 : i32, i32
  }
  func.func @transform_5(%arg0: i32) -> (i32, i32, i32) {
    %c0_i32 = arith.constant 0 : i32
    %c0_i32_0 = arith.constant 0 : i32
    %c0_i32_1 = arith.constant 0 : i32
    %c0_i32_2 = arith.constant 0 : i32
    return %c0_i32, %c0_i32_0, %c0_i32_1 : i32, i32, i32
  }
  func.func @transform_6(%arg0: i32) -> (i32, i32) {
    %c0_i32 = arith.constant 0 : i32
    %c0_i32_0 = arith.constant 0 : i32
    %c0_i32_1 = arith.constant 0 : i32
    return %c0_i32, %c0_i32_0 : i32, i32
  }
  func.func @transform_7(%arg0: i32) -> (i32, i32, i32) {
    %c0_i32 = arith.constant 0 : i32
    %c0_i32_0 = arith.constant 0 : i32
    %c0_i32_1 = arith.constant 0 : i32
    %c0_i32_2 = arith.constant 0 : i32
    return %c0_i32, %c0_i32_0, %c0_i32_1 : i32, i32, i32
  }
  func.func @transform_8(%arg0: i32) -> (i32, i32) {
    %c0_i32 = arith.constant 0 : i32
    %c0_i32_0 = arith.constant 0 : i32
    %c0_i32_1 = arith.constant 0 : i32
    return %c0_i32, %c0_i32_0 : i32, i32
  }
  func.func @transform_9(%arg0: i32) -> (i32, i32) {
    %c0_i32 = arith.constant 0 : i32
    %c0_i32_0 = arith.constant 0 : i32
    %c0_i32_1 = arith.constant 0 : i32
    return %c0_i32, %c0_i32_0 : i32, i32
  }
  func.func @transform_10(%arg0: i32) -> (i32, i32) {
    %c0_i32 = arith.constant 0 : i32
    %c0_i32_0 = arith.constant 0 : i32
    %c0_i32_1 = arith.constant 0 : i32
    return %c0_i32, %c0_i32_0 : i32, i32
  }
  func.func @transform_11(%arg0: i32) -> (i32, i32, i32) {
    %c0_i32 = arith.constant 0 : i32
    %c0_i32_0 = arith.constant 0 : i32
    %c0_i32_1 = arith.constant 0 : i32
    return %arg0, %c0_i32, %c0_i32_0 : i32, i32, i32
  }
}

</mosaic_0001>

<llo_original>
// kernel: tpu_custom_call.1
$region0: #{tpu_custom_call.1}
  #allocation0 [shape = 'u32[]', space=smem, size = 0x4, offset = 0x4, fixed_abs, tag = 'smem constant byte address 0x4 - core index']
  #allocation1 [shape = 'u32[144,128]{1,0:T(1,128)}', space=vmem, size = 0x12000, scoped, tag = 'internal scratch']
  %s0 = inlined_call_operand.vmem [shape: f32[2,4,256], index: 0, kind: input, shape index: {}]
  %s1 = inlined_call_operand.vmem [shape: f32[4,49], index: 1, kind: input, shape index: {}]
  %s2 = inlined_call_operand.vmem [shape: f32[4,1], index: 2, kind: input, shape index: {}]
  %s3 = inlined_call_operand.vmem [shape: f32[4,1], index: 3, kind: input, shape index: {}]
  %s4 = inlined_call_operand.vmem [shape: f32[4,1], index: 4, kind: input, shape index: {}]
  %s5 = inlined_call_operand.vmem [shape: f32[9,16,4], index: 5, kind: input, shape index: {}]
  %s6 = inlined_call_operand.vmem [shape: f32[16,1], index: 6, kind: input, shape index: {}]
  %s7 = inlined_call_operand.vmem [shape: f32[9,8,16], index: 7, kind: input, shape index: {}]
  %s8 = inlined_call_operand.vmem [shape: f32[8,1], index: 8, kind: input, shape index: {}]
  %s9 = inlined_call_operand.vmem [shape: f32[8,4], index: 9, kind: input, shape index: {}]
  %s10 = inlined_call_operand.vmem [shape: f32[8,1], index: 10, kind: input, shape index: {}]
  %s11 = inlined_call_operand.hbm [shape: f32[2,8,256], index: 11, kind: output, shape index: {}]
  %s12 = sld [smem:[#allocation0]]
  $region77: #{tpu_custom_call.1} parent=0
    _
  %s14 = ssub.s32 1, %s12
  %s15 = scalar_select 0, %s14, %s12
  $region1: #{tpu_custom_call.1} parent=0
    #allocation2 [shape = 'u8[16384]{0}', space=vmem, size = 0x4000, scoped, tag = 'output window, operand 0']
    #allocation3 [shape = 's32[2]{0}', space=sflag, size = 0x8, scoped, tag = 'scoped memory for tpu_custom_call.1']
    %16 = vsyncpa [#allocation3], 0
    %s17 = scalar_lea.sflag [#allocation3], 1
    %18 = vsyncpa %s17, 0
    loop: start=0, step=1, limit=4
    $region2: #{tpu_custom_call.1} parent=1 // loop_pre_header
      _
    $region3: #{tpu_custom_call.1} parent=1 // loop_header
      %s20 = sphi 0, %s24
      %p21 = scmp.ge.s32.totalorder %s20, 4
      %s30 = sphi 0, %s32
      %s33 = sphi 0, %s30
      %s34 = sphi 0, %s33
      %s50 = sphi 0, %s34
      %s54 = sphi 0, %s54
      %s56 = sphi 0, %s54
      %s57 = sphi 0, %s56
      %s71 = sphi 0, %s57
      %s75 = sphi 0, %s75
      %s77 = sphi 0, %s75
      %s78 = sphi 0, %s77
      %s92 = sphi 0, %s78
      %s96 = sphi 0, %s96
      %s98 = sphi 0, %s96
      %s99 = sphi 0, %s98
      %s113 = sphi 0, %s99
      %s117 = sphi 0, %s117
      %s119 = sphi 0, %s117
      %s120 = sphi 0, %s119
      %s134 = sphi 0, %s120
      %s138 = sphi 0, %s138
      %s140 = sphi 0, %s138
      %s141 = sphi 0, %s140
      %s155 = sphi 0, %s141
      %s159 = sphi 0, %s159
      %s161 = sphi 0, %s159
      %s162 = sphi 0, %s161
      %s176 = sphi 0, %s162
      %s180 = sphi 0, %s180
      %s182 = sphi 0, %s180
      %s183 = sphi 0, %s182
      %s197 = sphi 0, %s183
      %s201 = sphi 0, %s201
      %s203 = sphi 0, %s201
      %s204 = sphi 0, %s203
      %s218 = sphi 0, %s204
      %s222 = sphi 0, %s222
      %s224 = sphi 0, %s222
      %s225 = sphi 0, %s224
      %s239 = sphi 0, %s225
      %s243 = sphi 0, %s243
      %s245 = sphi 0, %s243
      %s246 = sphi 0, %s245
      %s260 = sphi 0, %s246
      %s266 = sphi 0, %s268
      %s269 = sphi 0, %s266
      %s270 = sphi 0, %s269
      %s286 = sphi 0, %s270
    $region4: #{tpu_custom_call.1} parent=1 // loop_header_branch
      %23 = sbr.rel (%p21) target = $region8
    $region5: #{tpu_custom_call.1} parent=1 // loop_body
      %s25 = ssub.s32 %s20, 1
      %s26 = ssub.s32 %s20, 2
      %s27 = sadd.s32 %s20, 1
      %s28 = ssub.s32 %s20, %s27
      %p29 = scmp.eq.s32.totalorder %s28, 0
      %s31 = sadd.s32 %s30, 1
      %s32 = scalar_select %p29, %s30, %s31
      %p35 = pneg %p29
      %p36 = scmp.eq.s32.totalorder %s20, 1
      %p37 = por %p35, %p36
      %p38 = scmp.ne.s32.totalorder %s30, %s33
      %p39 = scmp.eq.s32.totalorder %s20, 0
      %p40 = por %p38, %p39
      %p41 = scmp.ne.s32.totalorder %s30, %s33
      %p42 = scmp.eq.s32.totalorder %s25, 1
      %p43 = por %p41, %p42
      %p44 = scmp.ne.s32.totalorder %s33, %s34
      %p45 = scmp.eq.s32.totalorder %s25, 0
      %p46 = por %p44, %p45
      %p47 = scmp.ne.s32.totalorder %s33, %s34
      %p48 = scmp.eq.s32.totalorder %s26, 1
      %p49 = por %p47, %p48
      %p51 = scmp.ne.s32.totalorder %s34, %s50
      %p52 = scmp.eq.s32.totalorder %s26, 0
      %p53 = por %p51, %p52
      %s55 = sadd.s32 %s54, 1
      %p58 = scmp.eq.s32.totalorder %s20, 1
      %p59 = scmp.ne.s32.totalorder %s54, %s56
      %p60 = scmp.eq.s32.totalorder %s20, 0
      %p61 = por %p59, %p60
      %p62 = scmp.ne.s32.totalorder %s54, %s56
      %p63 = scmp.eq.s32.totalorder %s25, 1
      %p64 = por %p62, %p63
      %p65 = scmp.ne.s32.totalorder %s56, %s57
      %p66 = scmp.eq.s32.totalorder %s25, 0
      %p67 = por %p65, %p66
      %p68 = scmp.ne.s32.totalorder %s56, %s57
      %p69 = scmp.eq.s32.totalorder %s26, 1
      %p70 = por %p68, %p69
      %p72 = scmp.ne.s32.totalorder %s57, %s71
      %p73 = scmp.eq.s32.totalorder %s26, 0
      %p74 = por %p72, %p73
      %s76 = sadd.s32 %s75, 1
      %p79 = scmp.eq.s32.totalorder %s20, 1
      %p80 = scmp.ne.s32.totalorder %s75, %s77
      %p81 = scmp.eq.s32.totalorder %s20, 0
      %p82 = por %p80, %p81
      %p83 = scmp.ne.s32.totalorder %s75, %s77
      %p84 = scmp.eq.s32.totalorder %s25, 1
      %p85 = por %p83, %p84
      %p86 = scmp.ne.s32.totalorder %s77, %s78
      %p87 = scmp.eq.s32.totalorder %s25, 0
      %p88 = por %p86, %p87
      %p89 = scmp.ne.s32.totalorder %s77, %s78
      %p90 = scmp.eq.s32.totalorder %s26, 1
      %p91 = por %p89, %p90
      %p93 = scmp.ne.s32.totalorder %s78, %s92
      %p94 = scmp.eq.s32.totalorder %s26, 0
      %p95 = por %p93, %p94
      %s97 = sadd.s32 %s96, 1
      %p100 = scmp.eq.s32.totalorder %s20, 1
      %p101 = scmp.ne.s32.totalorder %s96, %s98
      %p102 = scmp.eq.s32.totalorder %s20, 0
      %p103 = por %p101, %p102
      %p104 = scmp.ne.s32.totalorder %s96, %s98
      %p105 = scmp.eq.s32.totalorder %s25, 1
      %p106 = por %p104, %p105
      %p107 = scmp.ne.s32.totalorder %s98, %s99
      %p108 = scmp.eq.s32.totalorder %s25, 0
      %p109 = por %p107, %p108
      %p110 = scmp.ne.s32.totalorder %s98, %s99
      %p111 = scmp.eq.s32.totalorder %s26, 1
      %p112 = por %p110, %p111
      %p114 = scmp.ne.s32.totalorder %s99, %s113
      %p115 = scmp.eq.s32.totalorder %s26, 0
      %p116 = por %p114, %p115
      %s118 = sadd.s32 %s117, 1
      %p121 = scmp.eq.s32.totalorder %s20, 1
      %p122 = scmp.ne.s32.totalorder %s117, %s119
      %p123 = scmp.eq.s32.totalorder %s20, 0
      %p124 = por %p122, %p123
      %p125 = scmp.ne.s32.totalorder %s117, %s119
      %p126 = scmp.eq.s32.totalorder %s25, 1
      %p127 = por %p125, %p126
      %p128 = scmp.ne.s32.totalorder %s119, %s120
      %p129 = scmp.eq.s32.totalorder %s25, 0
      %p130 = por %p128, %p129
      %p131 = scmp.ne.s32.totalorder %s119, %s120
      %p132 = scmp.eq.s32.totalorder %s26, 1
      %p133 = por %p131, %p132
      %p135 = scmp.ne.s32.totalorder %s120, %s134
      %p136 = scmp.eq.s32.totalorder %s26, 0
      %p137 = por %p135, %p136
      %s139 = sadd.s32 %s138, 1
      %p142 = scmp.eq.s32.totalorder %s20, 1
      %p143 = scmp.ne.s32.totalorder %s138, %s140
      %p144 = scmp.eq.s32.totalorder %s20, 0
      %p145 = por %p143, %p144
      %p146 = scmp.ne.s32.totalorder %s138, %s140
      %p147 = scmp.eq.s32.totalorder %s25, 1
      %p148 = por %p146, %p147
      %p149 = scmp.ne.s32.totalorder %s140, %s141
      %p150 = scmp.eq.s32.totalorder %s25, 0
      %p151 = por %p149, %p150
      %p152 = scmp.ne.s32.totalorder %s140, %s141
      %p153 = scmp.eq.s32.totalorder %s26, 1
      %p154 = por %p152, %p153
      %p156 = scmp.ne.s32.totalorder %s141, %s155
      %p157 = scmp.eq.s32.totalorder %s26, 0
      %p158 = por %p156, %p157
      %s160 = sadd.s32 %s159, 1
      %p163 = scmp.eq.s32.totalorder %s20, 1
      %p164 = scmp.ne.s32.totalorder %s159, %s161
      %p165 = scmp.eq.s32.totalorder %s20, 0
      %p166 = por %p164, %p165
      %p167 = scmp.ne.s32.totalorder %s159, %s161
      %p168 = scmp.eq.s32.totalorder %s25, 1
      %p169 = por %p167, %p168
      %p170 = scmp.ne.s32.totalorder %s161, %s162
      %p171 = scmp.eq.s32.totalorder %s25, 0
      %p172 = por %p170, %p171
      %p173 = scmp.ne.s32.totalorder %s161, %s162
      %p174 = scmp.eq.s32.totalorder %s26, 1
      %p175 = por %p173, %p174
      %p177 = scmp.ne.s32.totalorder %s162, %s176
      %p178 = scmp.eq.s32.totalorder %s26, 0
      %p179 = por %p177, %p178
      %s181 = sadd.s32 %s180, 1
      %p184 = scmp.eq.s32.totalorder %s20, 1
      %p185 = scmp.ne.s32.totalorder %s180, %s182
      %p186 = scmp.eq.s32.totalorder %s20, 0
      %p187 = por %p185, %p186
      %p188 = scmp.ne.s32.totalorder %s180, %s182
      %p189 = scmp.eq.s32.totalorder %s25, 1
      %p190 = por %p188, %p189
      %p191 = scmp.ne.s32.totalorder %s182, %s183
      %p192 = scmp.eq.s32.totalorder %s25, 0
      %p193 = por %p191, %p192
      %p194 = scmp.ne.s32.totalorder %s182, %s183
      %p195 = scmp.eq.s32.totalorder %s26, 1
      %p196 = por %p194, %p195
      %p198 = scmp.ne.s32.totalorder %s183, %s197
      %p199 = scmp.eq.s32.totalorder %s26, 0
      %p200 = por %p198, %p199
      %s202 = sadd.s32 %s201, 1
      %p205 = scmp.eq.s32.totalorder %s20, 1
      %p206 = scmp.ne.s32.totalorder %s201, %s203
      %p207 = scmp.eq.s32.totalorder %s20, 0
      %p208 = por %p206, %p207
      %p209 = scmp.ne.s32.totalorder %s201, %s203
      %p210 = scmp.eq.s32.totalorder %s25, 1
      %p211 = por %p209, %p210
      %p212 = scmp.ne.s32.totalorder %s203, %s204
      %p213 = scmp.eq.s32.totalorder %s25, 0
      %p214 = por %p212, %p213
      %p215 = scmp.ne.s32.totalorder %s203, %s204
      %p216 = scmp.eq.s32.totalorder %s26, 1
      %p217 = por %p215, %p216
      %p219 = scmp.ne.s32.totalorder %s204, %s218
      %p220 = scmp.eq.s32.totalorder %s26, 0
      %p221 = por %p219, %p220
      %s223 = sadd.s32 %s222, 1
      %p226 = scmp.eq.s32.totalorder %s20, 1
      %p227 = scmp.ne.s32.totalorder %s222, %s224
      %p228 = scmp.eq.s32.totalorder %s20, 0
      %p229 = por %p227, %p228
      %p230 = scmp.ne.s32.totalorder %s222, %s224
      %p231 = scmp.eq.s32.totalorder %s25, 1
      %p232 = por %p230, %p231
      %p233 = scmp.ne.s32.totalorder %s224, %s225
      %p234 = scmp.eq.s32.totalorder %s25, 0
      %p235 = por %p233, %p234
      %p236 = scmp.ne.s32.totalorder %s224, %s225
      %p237 = scmp.eq.s32.totalorder %s26, 1
      %p238 = por %p236, %p237
      %p240 = scmp.ne.s32.totalorder %s225, %s239
      %p241 = scmp.eq.s32.totalorder %s26, 0
      %p242 = por %p240, %p241
      %s244 = sadd.s32 %s243, 1
      %p247 = scmp.eq.s32.totalorder %s20, 1
      %p248 = scmp.ne.s32.totalorder %s243, %s245
      %p249 = scmp.eq.s32.totalorder %s20, 0
      %p250 = por %p248, %p249
      %p251 = scmp.ne.s32.totalorder %s243, %s245
      %p252 = scmp.eq.s32.totalorder %s25, 1
      %p253 = por %p251, %p252
      %p254 = scmp.ne.s32.totalorder %s245, %s246
      %p255 = scmp.eq.s32.totalorder %s25, 0
      %p256 = por %p254, %p255
      %p257 = scmp.ne.s32.totalorder %s245, %s246
      %p258 = scmp.eq.s32.totalorder %s26, 1
      %p259 = por %p257, %p258
      %p261 = scmp.ne.s32.totalorder %s246, %s260
      %p262 = scmp.eq.s32.totalorder %s26, 0
      %p263 = por %p261, %p262
      %s264 = ssub.s32 %s20, %s27
      %p265 = scmp.eq.s32.totalorder %s264, 0
      %s267 = sadd.s32 %s266, 1
      %s268 = scalar_select %p265, %s266, %s267
      %p271 = pneg %p265
      %p272 = scmp.eq.s32.totalorder %s20, 1
      %p273 = por %p271, %p272
      %p274 = scmp.ne.s32.totalorder %s266, %s269
      %p275 = scmp.eq.s32.totalorder %s20, 0
      %p276 = por %p274, %p275
      %p277 = scmp.ne.s32.totalorder %s266, %s269
      %p278 = scmp.eq.s32.totalorder %s25, 1
      %p279 = por %p277, %p278
      %p280 = scmp.ne.s32.totalorder %s269, %s270
      %p281 = scmp.eq.s32.totalorder %s25, 0
      %p282 = por %p280, %p281
      %p283 = scmp.ne.s32.totalorder %s269, %s270
      %p284 = scmp.eq.s32.totalorder %s26, 1
      %p285 = por %p283, %p284
      %p287 = scmp.ne.s32.totalorder %s270, %s286
      %p288 = scmp.eq.s32.totalorder %s26, 0
      %p289 = por %p287, %p288
      %p290 = scmp.le.s32.totalorder 1, %s20
      %p291 = scmp.lt.s32.totalorder %s20, 3
      %p292 = pnand %p290, %p291
      %p293 = pneg %p292
      // Predicated region
      $region9: #{tpu_custom_call.1} parent=5 // pred_check
        _
      $region10: #{tpu_custom_call.1} parent=5 // pred_check_branch
        %295 = sbr.rel (%p292) target = $region12
      $region11: #{tpu_custom_call.1} parent=5 // pred_region
        %s296 = ssub.s32 %s20, 1
        // Predicated region
        $region13: #{tpu_custom_call.1} parent=11 // pred_check
          %p297 = pneg %p67
        $region14: #{tpu_custom_call.1} parent=11 // pred_check_branch
          %299 = sbr.rel (%p297) target = $region16
        $region15: #{tpu_custom_call.1} parent=11 // pred_region
          _
        $region16: #{tpu_custom_call.1} parent=11 // pred_fallthru
          _
        // Predicated region
        $region17: #{tpu_custom_call.1} parent=11 // pred_check
          %p300 = pneg %p88
        $region18: #{tpu_custom_call.1} parent=11 // pred_check_branch
          %302 = sbr.rel (%p300) target = $region20
        $region19: #{tpu_custom_call.1} parent=11 // pred_region
          _
        $region20: #{tpu_custom_call.1} parent=11 // pred_fallthru
          _
        // Predicated region
        $region21: #{tpu_custom_call.1} parent=11 // pred_check
          %p303 = pneg %p109
        $region22: #{tpu_custom_call.1} parent=11 // pred_check_branch
          %305 = sbr.rel (%p303) target = $region24
        $region23: #{tpu_custom_call.1} parent=11 // pred_region
          _
        $region24: #{tpu_custom_call.1} parent=11 // pred_fallthru
          _
        // Predicated region
        $region25: #{tpu_custom_call.1} parent=11 // pred_check
          %p306 = pneg %p130
        $region26: #{tpu_custom_call.1} parent=11 // pred_check_branch
          %308 = sbr.rel (%p306) target = $region28
        $region27: #{tpu_custom_call.1} parent=11 // pred_region
          _
        $region28: #{tpu_custom_call.1} parent=11 // pred_fallthru
          _
        // Predicated region
        $region29: #{tpu_custom_call.1} parent=11 // pred_check
          %p309 = pneg %p151
        $region30: #{tpu_custom_call.1} parent=11 // pred_check_branch
          %311 = sbr.rel (%p309) target = $region32
        $region31: #{tpu_custom_call.1} parent=11 // pred_region
          _
        $region32: #{tpu_custom_call.1} parent=11 // pred_fallthru
          _
        // Predicated region
        $region33: #{tpu_custom_call.1} parent=11 // pred_check
          %p312 = pneg %p172
        $region34: #{tpu_custom_call.1} parent=11 // pred_check_branch
          %314 = sbr.rel (%p312) target = $region36
        $region35: #{tpu_custom_call.1} parent=11 // pred_region
          _
        $region36: #{tpu_custom_call.1} parent=11 // pred_fallthru
          _
        // Predicated region
        $region37: #{tpu_custom_call.1} parent=11 // pred_check
          %p315 = pneg %p193
        $region38: #{tpu_custom_call.1} parent=11 // pred_check_branch
          %317 = sbr.rel (%p315) target = $region40
        $region39: #{tpu_custom_call.1} parent=11 // pred_region
          _
        $region40: #{tpu_custom_call.1} parent=11 // pred_fallthru
          _
        // Predicated region
        $region41: #{tpu_custom_call.1} parent=11 // pred_check
          %p318 = pneg %p214
        $region42: #{tpu_custom_call.1} parent=11 // pred_check_branch
          %320 = sbr.rel (%p318) target = $region44
        $region43: #{tpu_custom_call.1} parent=11 // pred_region
          _
        $region44: #{tpu_custom_call.1} parent=11 // pred_fallthru
          _
        // Predicated region
        $region45: #{tpu_custom_call.1} parent=11 // pred_check
          %p321 = pneg %p235
        $region46: #{tpu_custom_call.1} parent=11 // pred_check_branch
          %323 = sbr.rel (%p321) target = $region48
        $region47: #{tpu_custom_call.1} parent=11 // pred_region
          _
        $region48: #{tpu_custom_call.1} parent=11 // pred_fallthru
          _
        // Predicated region
        $region49: #{tpu_custom_call.1} parent=11 // pred_check
          %p324 = pneg %p256
        $region50: #{tpu_custom_call.1} parent=11 // pred_check_branch
          %326 = sbr.rel (%p324) target = $region52
        $region51: #{tpu_custom_call.1} parent=11 // pred_region
          _
        $region52: #{tpu_custom_call.1} parent=11 // pred_fallthru
          _
      $region12: #{tpu_custom_call.1} parent=5 // pred_fallthru
        _
      %p327 = scmp.lt.s32.totalorder %s20, 2
      // Predicated region
      $region53: #{tpu_custom_call.1} parent=5 // pred_check
        %p328 = pneg %p327
      $region54: #{tpu_custom_call.1} parent=5 // pred_check_branch
        %330 = sbr.rel (%p328) target = $region56
      $region55: #{tpu_custom_call.1} parent=5 // pred_region
        // Predicated region
        $region57: #{tpu_custom_call.1} parent=55 // pred_check
          %p331 = pneg %p40
        $region58: #{tpu_custom_call.1} parent=55 // pred_check_branch
          %333 = sbr.rel (%p331) target = $region60
        $region59: #{tpu_custom_call.1} parent=55 // pred_region
          %p334 = scmp.lt.s32.totalorder %s20, 1
          %s335 = scalar_select %p334, %s20, 1
          %s336 = smul.addr %s335, 2
          %s337 = smul.addr %s336, 4
          %s338 = scalar_lea.vmem %s0, %s337
        $region60: #{tpu_custom_call.1} parent=55 // pred_fallthru
          _
      $region56: #{tpu_custom_call.1} parent=5 // pred_fallthru
        _
      %p339 = scmp.le.s32.totalorder 1, %s20
      %p340 = scmp.lt.s32.totalorder %s20, 3
      %p341 = pnand %p339, %p340
      %p342 = pneg %p341
      // Predicated region
      $region61: #{tpu_custom_call.1} parent=5 // pred_check
        _
      $region62: #{tpu_custom_call.1} parent=5 // pred_check_branch
        %344 = sbr.rel (%p341) target = $region64
      $region63: #{tpu_custom_call.1} parent=5 // pred_region
        %s345 = ssub.s32 %s20, 1
        %p346 = scmp.lt.s32.totalorder %s25, 1
        %s347 = scalar_select %p346, %s25, 1
        %s348 = smul.addr %s347, 2
        %s349 = smul.addr %s348, 4
        %s350 = scalar_lea.vmem %s0, %s349
        %p351 = pneg %p46
        %p352 = pneg %p43
        %p353 = pneg %p67
        %p354 = pneg %p64
        %p355 = pneg %p88
        %p356 = pneg %p85
        %p357 = pneg %p109
        %p358 = pneg %p106
        %p359 = pneg %p130
        %p360 = pneg %p127
        %p361 = pneg %p151
        %p362 = pneg %p148
        %p363 = pneg %p172
        %p364 = pneg %p169
        %p365 = pneg %p193
        %p366 = pneg %p190
        %p367 = pneg %p214
        %p368 = pneg %p211
        %p369 = pneg %p235
        %p370 = pneg %p232
        %p371 = pneg %p256
        %p372 = pneg %p253
        %p373 = pneg %p282
        %p374 = pneg %p279
        %s375 = sand.u32 %s269, 1
        %s376 = scalar_lea.sflag [#allocation3], %s375
        %s377 = sand.u32 %s269, 1
        %s378 = smul.addr %s377, 16
        %s379 = scalar_lea.vmem [#allocation2], %s378
        %p380 = scmp.lt.s32.totalorder %s25, 1
        %s381 = scalar_select %p380, %s25, 1
        %s382 = smul.addr %s381, 2
        %s383 = smul.addr %s382, 4
        %s384 = scalar_lea.vmem %s0, %s383
        %v385 = vld [vmem:[%s384] sm:$0xff]
        %v386 = vlaneseq
        %v387 = vand.u32 %v386, 127
        %v388 = vadd.s32 %v387, 128
        %v389 = vcvt.s32.f32 %v387
        %v390 = vcvt.s32.f32 %v388
        %v391 = vadd.f32 %v389, 0.5
        %v392 = vadd.f32 %v390, 0.5
        %v393 = vmul.f32 %v391, 0.0625
        %v394 = vmul.f32 %v392, 0.0625
        %v395 = vfloor.f32 %v393
        %v396 = vfloor.f32 %v394
        %v397 = vmul.f32 %v395, 16.0
        %v398 = vmul.f32 %v396, 16.0
        %v399 = vsub.f32 %v389, %v397
        %v400 = vsub.f32 %v390, %v398
        %v401 = vadd.f32 %v395, -3.0
        %v402 = vadd.f32 %v396, -3.0
        %vm403 = vcmp.ge.f32.partialorder %v401, 0.0
        %vm404 = vcmp.ge.f32.partialorder %v402, 0.0
        %vm405 = vcmp.le.f32.partialorder %v401, 15.0
        %vm406 = vcmp.le.f32.partialorder %v402, 15.0
        %vm407 = vmand %vm403, %vm405
        %vm408 = vmand %vm404, %vm406
        %v409 = vsel %vm407, 1.0, 0.0
        %v410 = vsel %vm408, 1.0, 0.0
        %v411 = vadd.f32 %v395, -2.0
        %v412 = vadd.f32 %v396, -2.0
        %vm413 = vcmp.ge.f32.partialorder %v411, 0.0
        %vm414 = vcmp.ge.f32.partialorder %v412, 0.0
        %vm415 = vcmp.le.f32.partialorder %v411, 15.0
        %vm416 = vcmp.le.f32.partialorder %v412, 15.0
        %vm417 = vmand %vm413, %vm415
        %vm418 = vmand %vm414, %vm416
        %v419 = vsel %vm417, 1.0, 0.0
        %v420 = vsel %vm418, 1.0, 0.0
        %v421 = vadd.f32 %v395, -1.0
        %v422 = vadd.f32 %v396, -1.0
        %vm423 = vcmp.ge.f32.partialorder %v421, 0.0
        %vm424 = vcmp.ge.f32.partialorder %v422, 0.0
        %vm425 = vcmp.le.f32.partialorder %v421, 15.0
        %vm426 = vcmp.le.f32.partialorder %v422, 15.0
        %vm427 = vmand %vm423, %vm425
        %vm428 = vmand %vm424, %vm426
        %v429 = vsel %vm427, 1.0, 0.0
        %v430 = vsel %vm428, 1.0, 0.0
        %v431 = vadd.f32 %v395, 0.0
        %v432 = vadd.f32 %v396, 0.0
        %vm433 = vcmp.ge.f32.partialorder %v431, 0.0
        %vm434 = vcmp.ge.f32.partialorder %v432, 0.0
        %vm435 = vcmp.le.f32.partialorder %v431, 15.0
        %vm436 = vcmp.le.f32.partialorder %v432, 15.0
        %vm437 = vmand %vm433, %vm435
        %vm438 = vmand %vm434, %vm436
        %v439 = vsel %vm437, 1.0, 0.0
        %v440 = vsel %vm438, 1.0, 0.0
        %v441 = vadd.f32 %v395, 1.0
        %v442 = vadd.f32 %v396, 1.0
        %vm443 = vcmp.ge.f32.partialorder %v441, 0.0
        %vm444 = vcmp.ge.f32.partialorder %v442, 0.0
        %vm445 = vcmp.le.f32.partialorder %v441, 15.0
        %vm446 = vcmp.le.f32.partialorder %v442, 15.0
        %vm447 = vmand %vm443, %vm445
        %vm448 = vmand %vm444, %vm446
        %v449 = vsel %vm447, 1.0, 0.0
        %v450 = vsel %vm448, 1.0, 0.0
        %v451 = vadd.f32 %v395, 2.0
        %v452 = vadd.f32 %v396, 2.0
        %vm453 = vcmp.ge.f32.partialorder %v451, 0.0
        %vm454 = vcmp.ge.f32.partialorder %v452, 0.0
        %vm455 = vcmp.le.f32.partialorder %v451, 15.0
        %vm456 = vcmp.le.f32.partialorder %v452, 15.0
        %vm457 = vmand %vm453, %vm455
        %vm458 = vmand %vm454, %vm456
        %v459 = vsel %vm457, 1.0, 0.0
        %v460 = vsel %vm458, 1.0, 0.0
        %v461 = vadd.f32 %v395, 3.0
        %v462 = vadd.f32 %v396, 3.0
        %vm463 = vcmp.ge.f32.partialorder %v461, 0.0
        %vm464 = vcmp.ge.f32.partialorder %v462, 0.0
        %vm465 = vcmp.le.f32.partialorder %v461, 15.0
        %vm466 = vcmp.le.f32.partialorder %v462, 15.0
        %vm467 = vmand %vm463, %vm465
        %vm468 = vmand %vm464, %vm466
        %v469 = vsel %vm467, 1.0, 0.0
        %v470 = vsel %vm468, 1.0, 0.0
        %v471 = vadd.f32 %v399, -3.0
        %v472 = vadd.f32 %v400, -3.0
        %vm473 = vcmp.ge.f32.partialorder %v471, 0.0
        %vm474 = vcmp.ge.f32.partialorder %v472, 0.0
        %vm475 = vcmp.le.f32.partialorder %v471, 15.0
        %vm476 = vcmp.le.f32.partialorder %v472, 15.0
        %vm477 = vmand %vm473, %vm475
        %vm478 = vmand %vm474, %vm476
        %v479 = vsel %vm477, 1.0, 0.0
        %v480 = vsel %vm478, 1.0, 0.0
        %v481 = vadd.f32 %v399, -2.0
        %v482 = vadd.f32 %v400, -2.0
        %vm483 = vcmp.ge.f32.partialorder %v481, 0.0
        %vm484 = vcmp.ge.f32.partialorder %v482, 0.0
        %vm485 = vcmp.le.f32.partialorder %v481, 15.0
        %vm486 = vcmp.le.f32.partialorder %v482, 15.0
        %vm487 = vmand %vm483, %vm485
        %vm488 = vmand %vm484, %vm486
        %v489 = vsel %vm487, 1.0, 0.0
        %v490 = vsel %vm488, 1.0, 0.0
        %v491 = vadd.f32 %v399, -1.0
        %v492 = vadd.f32 %v400, -1.0
        %vm493 = vcmp.ge.f32.partialorder %v491, 0.0
        %vm494 = vcmp.ge.f32.partialorder %v492, 0.0
        %vm495 = vcmp.le.f32.partialorder %v491, 15.0
        %vm496 = vcmp.le.f32.partialorder %v492, 15.0
        %vm497 = vmand %vm493, %vm495
        %vm498 = vmand %vm494, %vm496
        %v499 = vsel %vm497, 1.0, 0.0
        %v500 = vsel %vm498, 1.0, 0.0
        %v501 = vadd.f32 %v399, 0.0
        %v502 = vadd.f32 %v400, 0.0
        %vm503 = vcmp.ge.f32.partialorder %v501, 0.0
        %vm504 = vcmp.ge.f32.partialorder %v502, 0.0
        %vm505 = vcmp.le.f32.partialorder %v501, 15.0
        %vm506 = vcmp.le.f32.partialorder %v502, 15.0
        %vm507 = vmand %vm503, %vm505
        %vm508 = vmand %vm504, %vm506
        %v509 = vsel %vm507, 1.0, 0.0
        %v510 = vsel %vm508, 1.0, 0.0
        %v511 = vadd.f32 %v399, 1.0
        %v512 = vadd.f32 %v400, 1.0
        %vm513 = vcmp.ge.f32.partialorder %v511, 0.0
        %vm514 = vcmp.ge.f32.partialorder %v512, 0.0
        %vm515 = vcmp.le.f32.partialorder %v511, 15.0
        %vm516 = vcmp.le.f32.partialorder %v512, 15.0
        %vm517 = vmand %vm513, %vm515
        %vm518 = vmand %vm514, %vm516
        %v519 = vsel %vm517, 1.0, 0.0
        %v520 = vsel %vm518, 1.0, 0.0
        %v521 = vadd.f32 %v399, 2.0
        %v522 = vadd.f32 %v400, 2.0
        %vm523 = vcmp.ge.f32.partialorder %v521, 0.0
        %vm524 = vcmp.ge.f32.partialorder %v522, 0.0
        %vm525 = vcmp.le.f32.partialorder %v521, 15.0
        %vm526 = vcmp.le.f32.partialorder %v522, 15.0
        %vm527 = vmand %vm523, %vm525
        %vm528 = vmand %vm524, %vm526
        %v529 = vsel %vm527, 1.0, 0.0
        %v530 = vsel %vm528, 1.0, 0.0
        %v531 = vadd.f32 %v399, 3.0
        %v532 = vadd.f32 %v400, 3.0
        %vm533 = vcmp.ge.f32.partialorder %v531, 0.0
        %vm534 = vcmp.ge.f32.partialorder %v532, 0.0
        %vm535 = vcmp.le.f32.partialorder %v531, 15.0
        %vm536 = vcmp.le.f32.partialorder %v532, 15.0
        %vm537 = vmand %vm533, %vm535
        %vm538 = vmand %vm534, %vm536
        %v539 = vsel %vm537, 1.0, 0.0
        %v540 = vsel %vm538, 1.0, 0.0
        %v541 = vld [vmem:[%s1] sm:$0xf]
        %v543 = vcombine.high %v385, %v385
        %545 = vrot.lane.b32.xlu0 %v385, 51
        %v546 = vpop.permute.xlu0 %545
        %547 = vrot.lane.b32.xlu0 %v543, 51
        %v548 = vpop.permute.xlu0 %547
        %vm549 = vcmp.lt.s32.totalorder %v387, 51
        %v550 = vsel %vm549, %v546, %v548
        %v551 = vsel %vm549, %v548, %v546
        %v552 = vmul.f32 %v409, %v479
        %v553 = vmul.f32 %v410, %v480
        %v554 = vmul.f32 %v551, %v552
        %v555 = vmul.f32 %v550, %v553
        %557 = vset.pattern.permute.xlu0 0
        %558 = vperm.xlu0 %557, %v541
        %v559 = vpop.permute.xlu0 %558
        %v561 = vmul.f32 %v554, %v559
        %v562 = vmul.f32 %v555, %v559
        %v563 = vadd.f32 %v561, 0.0
        %v564 = vadd.f32 %v562, 0.0
        %565 = vrot.lane.b32.xlu0 %v385, 50
        %v566 = vpop.permute.xlu0 %565
        %567 = vrot.lane.b32.xlu0 %v543, 50
        %v568 = vpop.permute.xlu0 %567
        %vm569 = vcmp.lt.s32.totalorder %v387, 50
        %v570 = vsel %vm569, %v566, %v568
        %v571 = vsel %vm569, %v568, %v566
        %v572 = vmul.f32 %v409, %v489
        %v573 = vmul.f32 %v410, %v490
        %v574 = vmul.f32 %v571, %v572
        %v575 = vmul.f32 %v570, %v573
        %576 = vset.pattern.permute.xlu0 1
        %577 = vperm.xlu0 %576, %v541
        %v578 = vpop.permute.xlu0 %577
        %v580 = vmul.f32 %v574, %v578
        %v581 = vmul.f32 %v575, %v578
        %v582 = vadd.f32 %v563, %v580
        %v583 = vadd.f32 %v564, %v581
        %584 = vrot.lane.b32.xlu0 %v385, 49
        %v585 = vpop.permute.xlu0 %584
        %586 = vrot.lane.b32.xlu0 %v543, 49
        %v587 = vpop.permute.xlu0 %586
        %vm588 = vcmp.lt.s32.totalorder %v387, 49
        %v589 = vsel %vm588, %v585, %v587
        %v590 = vsel %vm588, %v587, %v585
        %v591 = vmul.f32 %v409, %v499
        %v592 = vmul.f32 %v410, %v500
        %v593 = vmul.f32 %v590, %v591
        %v594 = vmul.f32 %v589, %v592
        %595 = vset.pattern.permute.xlu0 2
        %596 = vperm.xlu0 %595, %v541
        %v597 = vpop.permute.xlu0 %596
        %v599 = vmul.f32 %v593, %v597
        %v600 = vmul.f32 %v594, %v597
        %v601 = vadd.f32 %v582, %v599
        %v602 = vadd.f32 %v583, %v600
        %603 = vrot.lane.b32.xlu0 %v385, 48
        %v604 = vpop.permute.xlu0 %603
        %605 = vrot.lane.b32.xlu0 %v543, 48
        %v606 = vpop.permute.xlu0 %605
        %vm607 = vcmp.lt.s32.totalorder %v387, 48
        %v608 = vsel %vm607, %v604, %v606
        %v609 = vsel %vm607, %v606, %v604
        %v610 = vmul.f32 %v409, %v509
        %v611 = vmul.f32 %v410, %v510
        %v612 = vmul.f32 %v609, %v610
        %v613 = vmul.f32 %v608, %v611
        %614 = vset.pattern.permute.xlu0 3
        %615 = vperm.xlu0 %614, %v541
        %v616 = vpop.permute.xlu0 %615
        %v618 = vmul.f32 %v612, %v616
        %v619 = vmul.f32 %v613, %v616
        %v620 = vadd.f32 %v601, %v618
        %v621 = vadd.f32 %v602, %v619
        %622 = vrot.lane.b32.xlu0 %v385, 47
        %v623 = vpop.permute.xlu0 %622
        %624 = vrot.lane.b32.xlu0 %v543, 47
        %v625 = vpop.permute.xlu0 %624
        %vm626 = vcmp.lt.s32.totalorder %v387, 47
        %v627 = vsel %vm626, %v623, %v625
        %v628 = vsel %vm626, %v625, %v623
        %v629 = vmul.f32 %v409, %v519
        %v630 = vmul.f32 %v410, %v520
        %v631 = vmul.f32 %v628, %v629
        %v632 = vmul.f32 %v627, %v630
        %633 = vset.pattern.permute.xlu0 4
        %634 = vperm.xlu0 %633, %v541
        %v635 = vpop.permute.xlu0 %634
        %v637 = vmul.f32 %v631, %v635
        %v638 = vmul.f32 %v632, %v635
        %v639 = vadd.f32 %v620, %v637
        %v640 = vadd.f32 %v621, %v638
        %641 = vrot.lane.b32.xlu0 %v385, 46
        %v642 = vpop.permute.xlu0 %641
        %643 = vrot.lane.b32.xlu0 %v543, 46
        %v644 = vpop.permute.xlu0 %643
        %vm645 = vcmp.lt.s32.totalorder %v387, 46
        %v646 = vsel %vm645, %v642, %v644
        %v647 = vsel %vm645, %v644, %v642
        %v648 = vmul.f32 %v409, %v529
        %v649 = vmul.f32 %v410, %v530
        %v650 = vmul.f32 %v647, %v648
        %v651 = vmul.f32 %v646, %v649
        %652 = vset.pattern.permute.xlu0 5
        %653 = vperm.xlu0 %652, %v541
        %v654 = vpop.permute.xlu0 %653
        %v656 = vmul.f32 %v650, %v654
        %v657 = vmul.f32 %v651, %v654
        %v658 = vadd.f32 %v639, %v656
        %v659 = vadd.f32 %v640, %v657
        %660 = vrot.lane.b32.xlu0 %v385, 45
        %v661 = vpop.permute.xlu0 %660
        %662 = vrot.lane.b32.xlu0 %v543, 45
        %v663 = vpop.permute.xlu0 %662
        %vm664 = vcmp.lt.s32.totalorder %v387, 45
        %v665 = vsel %vm664, %v661, %v663
        %v666 = vsel %vm664, %v663, %v661
        %v667 = vmul.f32 %v409, %v539
        %v668 = vmul.f32 %v410, %v540
        %v669 = vmul.f32 %v666, %v667
        %v670 = vmul.f32 %v665, %v668
        %671 = vset.pattern.permute.xlu0 6
        %672 = vperm.xlu0 %671, %v541
        %v673 = vpop.permute.xlu0 %672
        %v675 = vmul.f32 %v669, %v673
        %v676 = vmul.f32 %v670, %v673
        %v677 = vadd.f32 %v658, %v675
        %v678 = vadd.f32 %v659, %v676
        %679 = vrot.lane.b32.xlu0 %v385, 35
        %v680 = vpop.permute.xlu0 %679
        %681 = vrot.lane.b32.xlu0 %v543, 35
        %v682 = vpop.permute.xlu0 %681
        %vm683 = vcmp.lt.s32.totalorder %v387, 35
        %v684 = vsel %vm683, %v680, %v682
        %v685 = vsel %vm683, %v682, %v680
        %v686 = vmul.f32 %v419, %v479
        %v687 = vmul.f32 %v420, %v480
        %v688 = vmul.f32 %v685, %v686
        %v689 = vmul.f32 %v684, %v687
        %690 = vset.pattern.permute.xlu0 7
        %691 = vperm.xlu0 %690, %v541
        %v692 = vpop.permute.xlu0 %691
        %v694 = vmul.f32 %v688, %v692
        %v695 = vmul.f32 %v689, %v692
        %v696 = vadd.f32 %v677, %v694
        %v697 = vadd.f32 %v678, %v695
        %698 = vrot.lane.b32.xlu0 %v385, 34
        %v699 = vpop.permute.xlu0 %698
        %700 = vrot.lane.b32.xlu0 %v543, 34
        %v701 = vpop.permute.xlu0 %700
        %vm702 = vcmp.lt.s32.totalorder %v387, 34
        %v703 = vsel %vm702, %v699, %v701
        %v704 = vsel %vm702, %v701, %v699
        %v705 = vmul.f32 %v419, %v489
        %v706 = vmul.f32 %v420, %v490
        %v707 = vmul.f32 %v704, %v705
        %v708 = vmul.f32 %v703, %v706
        %709 = vset.pattern.permute.xlu0 8
        %710 = vperm.xlu0 %709, %v541
        %v711 = vpop.permute.xlu0 %710
        %v713 = vmul.f32 %v707, %v711
        %v714 = vmul.f32 %v708, %v711
        %v715 = vadd.f32 %v696, %v713
        %v716 = vadd.f32 %v697, %v714
        %717 = vrot.lane.b32.xlu0 %v385, 33
        %v718 = vpop.permute.xlu0 %717
        %719 = vrot.lane.b32.xlu0 %v543, 33
        %v720 = vpop.permute.xlu0 %719
        %vm721 = vcmp.lt.s32.totalorder %v387, 33
        %v722 = vsel %vm721, %v718, %v720
        %v723 = vsel %vm721, %v720, %v718
        %v724 = vmul.f32 %v419, %v499
        %v725 = vmul.f32 %v420, %v500
        %v726 = vmul.f32 %v723, %v724
        %v727 = vmul.f32 %v722, %v725
        %728 = vset.pattern.permute.xlu0 9
        %729 = vperm.xlu0 %728, %v541
        %v730 = vpop.permute.xlu0 %729
        %v732 = vmul.f32 %v726, %v730
        %v733 = vmul.f32 %v727, %v730
        %v734 = vadd.f32 %v715, %v732
        %v735 = vadd.f32 %v716, %v733
        %736 = vrot.lane.b32.xlu0 %v385, 32
        %v737 = vpop.permute.xlu0 %736
        %738 = vrot.lane.b32.xlu0 %v543, 32
        %v739 = vpop.permute.xlu0 %738
        %vm740 = vcmp.lt.s32.totalorder %v387, 32
        %v741 = vsel %vm740, %v737, %v739
        %v742 = vsel %vm740, %v739, %v737
        %v743 = vmul.f32 %v419, %v509
        %v744 = vmul.f32 %v420, %v510
        %v745 = vmul.f32 %v742, %v743
        %v746 = vmul.f32 %v741, %v744
        %747 = vset.pattern.permute.xlu0 10
        %748 = vperm.xlu0 %747, %v541
        %v749 = vpop.permute.xlu0 %748
        %v751 = vmul.f32 %v745, %v749
        %v752 = vmul.f32 %v746, %v749
        %v753 = vadd.f32 %v734, %v751
        %v754 = vadd.f32 %v735, %v752
        %755 = vrot.lane.b32.xlu0 %v385, 31
        %v756 = vpop.permute.xlu0 %755
        %757 = vrot.lane.b32.xlu0 %v543, 31
        %v758 = vpop.permute.xlu0 %757
        %vm759 = vcmp.lt.s32.totalorder %v387, 31
        %v760 = vsel %vm759, %v756, %v758
        %v761 = vsel %vm759, %v758, %v756
        %v762 = vmul.f32 %v419, %v519
        %v763 = vmul.f32 %v420, %v520
        %v764 = vmul.f32 %v761, %v762
        %v765 = vmul.f32 %v760, %v763
        %766 = vset.pattern.permute.xlu0 11
        %767 = vperm.xlu0 %766, %v541
        %v768 = vpop.permute.xlu0 %767
        %v770 = vmul.f32 %v764, %v768
        %v771 = vmul.f32 %v765, %v768
        %v772 = vadd.f32 %v753, %v770
        %v773 = vadd.f32 %v754, %v771
        %774 = vrot.lane.b32.xlu0 %v385, 30
        %v775 = vpop.permute.xlu0 %774
        %776 = vrot.lane.b32.xlu0 %v543, 30
        %v777 = vpop.permute.xlu0 %776
        %vm778 = vcmp.lt.s32.totalorder %v387, 30
        %v779 = vsel %vm778, %v775, %v777
        %v780 = vsel %vm778, %v777, %v775
        %v781 = vmul.f32 %v419, %v529
        %v782 = vmul.f32 %v420, %v530
        %v783 = vmul.f32 %v780, %v781
        %v784 = vmul.f32 %v779, %v782
        %785 = vset.pattern.permute.xlu0 12
        %786 = vperm.xlu0 %785, %v541
        %v787 = vpop.permute.xlu0 %786
        %v789 = vmul.f32 %v783, %v787
        %v790 = vmul.f32 %v784, %v787
        %v791 = vadd.f32 %v772, %v789
        %v792 = vadd.f32 %v773, %v790
        %793 = vrot.lane.b32.xlu0 %v385, 29
        %v794 = vpop.permute.xlu0 %793
        %795 = vrot.lane.b32.xlu0 %v543, 29
        %v796 = vpop.permute.xlu0 %795
        %vm797 = vcmp.lt.s32.totalorder %v387, 29
        %v798 = vsel %vm797, %v794, %v796
        %v799 = vsel %vm797, %v796, %v794
        %v800 = vmul.f32 %v419, %v539
        %v801 = vmul.f32 %v420, %v540
        %v802 = vmul.f32 %v799, %v800
        %v803 = vmul.f32 %v798, %v801
        %804 = vset.pattern.permute.xlu0 13
        %805 = vperm.xlu0 %804, %v541
        %v806 = vpop.permute.xlu0 %805
        %v808 = vmul.f32 %v802, %v806
        %v809 = vmul.f32 %v803, %v806
        %v810 = vadd.f32 %v791, %v808
        %v811 = vadd.f32 %v792, %v809
        %812 = vrot.lane.b32.xlu0 %v385, 19
        %v813 = vpop.permute.xlu0 %812
        %814 = vrot.lane.b32.xlu0 %v543, 19
        %v815 = vpop.permute.xlu0 %814
        %vm816 = vcmp.lt.s32.totalorder %v387, 19
        %v817 = vsel %vm816, %v813, %v815
        %v818 = vsel %vm816, %v815, %v813
        %v819 = vmul.f32 %v429, %v479
        %v820 = vmul.f32 %v430, %v480
        %v821 = vmul.f32 %v818, %v819
        %v822 = vmul.f32 %v817, %v820
        %823 = vset.pattern.permute.xlu0 14
        %824 = vperm.xlu0 %823, %v541
        %v825 = vpop.permute.xlu0 %824
        %v827 = vmul.f32 %v821, %v825
        %v828 = vmul.f32 %v822, %v825
        %v829 = vadd.f32 %v810, %v827
        %v830 = vadd.f32 %v811, %v828
        %831 = vrot.lane.b32.xlu0 %v385, 18
        %v832 = vpop.permute.xlu0 %831
        %833 = vrot.lane.b32.xlu0 %v543, 18
        %v834 = vpop.permute.xlu0 %833
        %vm835 = vcmp.lt.s32.totalorder %v387, 18
        %v836 = vsel %vm835, %v832, %v834
        %v837 = vsel %vm835, %v834, %v832
        %v838 = vmul.f32 %v429, %v489
        %v839 = vmul.f32 %v430, %v490
        %v840 = vmul.f32 %v837, %v838
        %v841 = vmul.f32 %v836, %v839
        %842 = vset.pattern.permute.xlu0 15
        %843 = vperm.xlu0 %842, %v541
        %v844 = vpop.permute.xlu0 %843
        %v846 = vmul.f32 %v840, %v844
        %v847 = vmul.f32 %v841, %v844
        %v848 = vadd.f32 %v829, %v846
        %v849 = vadd.f32 %v830, %v847
        %850 = vrot.lane.b32.xlu0 %v385, 17
        %v851 = vpop.permute.xlu0 %850
        %852 = vrot.lane.b32.xlu0 %v543, 17
        %v853 = vpop.permute.xlu0 %852
        %vm854 = vcmp.lt.s32.totalorder %v387, 17
        %v855 = vsel %vm854, %v851, %v853
        %v856 = vsel %vm854, %v853, %v851
        %v857 = vmul.f32 %v429, %v499
        %v858 = vmul.f32 %v430, %v500
        %v859 = vmul.f32 %v856, %v857
        %v860 = vmul.f32 %v855, %v858
        %861 = vset.pattern.permute.xlu0 16
        %862 = vperm.xlu0 %861, %v541
        %v863 = vpop.permute.xlu0 %862
        %v865 = vmul.f32 %v859, %v863
        %v866 = vmul.f32 %v860, %v863
        %v867 = vadd.f32 %v848, %v865
        %v868 = vadd.f32 %v849, %v866
        %869 = vrot.lane.b32.xlu0 %v385, 16
        %v870 = vpop.permute.xlu0 %869
        %871 = vrot.lane.b32.xlu0 %v543, 16
        %v872 = vpop.permute.xlu0 %871
        %vm873 = vcmp.lt.s32.totalorder %v387, 16
        %v874 = vsel %vm873, %v870, %v872
        %v875 = vsel %vm873, %v872, %v870
        %v876 = vmul.f32 %v429, %v509
        %v877 = vmul.f32 %v430, %v510
        %v878 = vmul.f32 %v875, %v876
        %v879 = vmul.f32 %v874, %v877
        %880 = vset.pattern.permute.xlu0 17
        %881 = vperm.xlu0 %880, %v541
        %v882 = vpop.permute.xlu0 %881
        %v884 = vmul.f32 %v878, %v882
        %v885 = vmul.f32 %v879, %v882
        %v886 = vadd.f32 %v867, %v884
        %v887 = vadd.f32 %v868, %v885
        %888 = vrot.lane.b32.xlu0 %v385, 15
        %v889 = vpop.permute.xlu0 %888
        %890 = vrot.lane.b32.xlu0 %v543, 15
        %v891 = vpop.permute.xlu0 %890
        %vm892 = vcmp.lt.s32.totalorder %v387, 15
        %v893 = vsel %vm892, %v889, %v891
        %v894 = vsel %vm892, %v891, %v889
        %v895 = vmul.f32 %v429, %v519
        %v896 = vmul.f32 %v430, %v520
        %v897 = vmul.f32 %v894, %v895
        %v898 = vmul.f32 %v893, %v896
        %899 = vset.pattern.permute.xlu0 18
        %900 = vperm.xlu0 %899, %v541
        %v901 = vpop.permute.xlu0 %900
        %v903 = vmul.f32 %v897, %v901
        %v904 = vmul.f32 %v898, %v901
        %v905 = vadd.f32 %v886, %v903
        %v906 = vadd.f32 %v887, %v904
        %907 = vrot.lane.b32.xlu0 %v385, 14
        %v908 = vpop.permute.xlu0 %907
        %909 = vrot.lane.b32.xlu0 %v543, 14
        %v910 = vpop.permute.xlu0 %909
        %vm911 = vcmp.lt.s32.totalorder %v387, 14
        %v912 = vsel %vm911, %v908, %v910
        %v913 = vsel %vm911, %v910, %v908
        %v914 = vmul.f32 %v429, %v529
        %v915 = vmul.f32 %v430, %v530
        %v916 = vmul.f32 %v913, %v914
        %v917 = vmul.f32 %v912, %v915
        %918 = vset.pattern.permute.xlu0 19
        %919 = vperm.xlu0 %918, %v541
        %v920 = vpop.permute.xlu0 %919
        %v922 = vmul.f32 %v916, %v920
        %v923 = vmul.f32 %v917, %v920
        %v924 = vadd.f32 %v905, %v922
        %v925 = vadd.f32 %v906, %v923
        %926 = vrot.lane.b32.xlu0 %v385, 13
        %v927 = vpop.permute.xlu0 %926
        %928 = vrot.lane.b32.xlu0 %v543, 13
        %v929 = vpop.permute.xlu0 %928
        %vm930 = vcmp.lt.s32.totalorder %v387, 13
        %v931 = vsel %vm930, %v927, %v929
        %v932 = vsel %vm930, %v929, %v927
        %v933 = vmul.f32 %v429, %v539
        %v934 = vmul.f32 %v430, %v540
        %v935 = vmul.f32 %v932, %v933
        %v936 = vmul.f32 %v931, %v934
        %937 = vset.pattern.permute.xlu0 20
        %938 = vperm.xlu0 %937, %v541
        %v939 = vpop.permute.xlu0 %938
        %v941 = vmul.f32 %v935, %v939
        %v942 = vmul.f32 %v936, %v939
        %v943 = vadd.f32 %v924, %v941
        %v944 = vadd.f32 %v925, %v942
        %945 = vrot.lane.b32.xlu0 %v385, 3
        %v946 = vpop.permute.xlu0 %945
        %947 = vrot.lane.b32.xlu0 %v543, 3
        %v948 = vpop.permute.xlu0 %947
        %vm949 = vcmp.lt.s32.totalorder %v387, 3
        %v950 = vsel %vm949, %v946, %v948
        %v951 = vsel %vm949, %v948, %v946
        %v952 = vmul.f32 %v439, %v479
        %v953 = vmul.f32 %v440, %v480
        %v954 = vmul.f32 %v951, %v952
        %v955 = vmul.f32 %v950, %v953
        %956 = vset.pattern.permute.xlu0 21
        %957 = vperm.xlu0 %956, %v541
        %v958 = vpop.permute.xlu0 %957
        %v960 = vmul.f32 %v954, %v958
        %v961 = vmul.f32 %v955, %v958
        %v962 = vadd.f32 %v943, %v960
        %v963 = vadd.f32 %v944, %v961
        %964 = vrot.lane.b32.xlu0 %v385, 2
        %v965 = vpop.permute.xlu0 %964
        %966 = vrot.lane.b32.xlu0 %v543, 2
        %v967 = vpop.permute.xlu0 %966
        %vm968 = vcmp.lt.s32.totalorder %v387, 2
        %v969 = vsel %vm968, %v965, %v967
        %v970 = vsel %vm968, %v967, %v965
        %v971 = vmul.f32 %v439, %v489
        %v972 = vmul.f32 %v440, %v490
        %v973 = vmul.f32 %v970, %v971
        %v974 = vmul.f32 %v969, %v972
        %975 = vset.pattern.permute.xlu0 22
        %976 = vperm.xlu0 %975, %v541
        %v977 = vpop.permute.xlu0 %976
        %v979 = vmul.f32 %v973, %v977
        %v980 = vmul.f32 %v974, %v977
        %v981 = vadd.f32 %v962, %v979
        %v982 = vadd.f32 %v963, %v980
        %983 = vrot.lane.b32.xlu0 %v385, 1
        %v984 = vpop.permute.xlu0 %983
        %985 = vrot.lane.b32.xlu0 %v543, 1
        %v986 = vpop.permute.xlu0 %985
        %vm987 = vcmp.lt.s32.totalorder %v387, 1
        %v988 = vsel %vm987, %v984, %v986
        %v989 = vsel %vm987, %v986, %v984
        %v990 = vmul.f32 %v439, %v499
        %v991 = vmul.f32 %v440, %v500
        %v992 = vmul.f32 %v989, %v990
        %v993 = vmul.f32 %v988, %v991
        %994 = vset.pattern.permute.xlu0 23
        %995 = vperm.xlu0 %994, %v541
        %v996 = vpop.permute.xlu0 %995
        %v998 = vmul.f32 %v992, %v996
        %v999 = vmul.f32 %v993, %v996
        %v1000 = vadd.f32 %v981, %v998
        %v1001 = vadd.f32 %v982, %v999
        %v1002 = vmul.f32 %v439, %v509
        %v1003 = vmul.f32 %v440, %v510
        %v1006 = vcombine.low %v1002, %v1003
        %v1008 = vmul.f32 %v385, %v1006
        %1009 = vset.pattern.permute.xlu0 24
        %1010 = vperm.xlu0 %1009, %v541
        %v1011 = vpop.permute.xlu0 %1010
        %v1013 = vunpack.c.l.s4 839922192
        %v1014 = vunpack.c.0.s8 %v1013
        %v1015 = vlaneseq
        %v1016 = vshrl.u32 %v1015, 7
        %v1017 = vsub.s32 %v1014, %v1016
        %v1018 = vrot.slane %v1011, %v1017
        %v1020 = vmul.f32 %v1008, %v1018
        %v1022 = vcombine.high %v1020, %v1020
        %v1024 = vadd.f32 %v1000, %v1020
        %v1025 = vadd.f32 %v1001, %v1022
        %1026 = vrot.lane.b32.xlu0 %v385, 127
        %v1027 = vpop.permute.xlu0 %1026
        %1028 = vrot.lane.b32.xlu0 %v543, 127
        %v1029 = vpop.permute.xlu0 %1028
        %vm1030 = vcmp.lt.s32.totalorder %v387, 127
        %v1031 = vsel %vm1030, %v1027, %v1029
        %v1032 = vsel %vm1030, %v1029, %v1027
        %v1033 = vmul.f32 %v439, %v519
        %v1034 = vmul.f32 %v440, %v520
        %v1035 = vmul.f32 %v1031, %v1033
        %v1036 = vmul.f32 %v1032, %v1034
        %1037 = vset.pattern.permute.xlu0 25
        %1038 = vperm.xlu0 %1037, %v541
        %v1039 = vpop.permute.xlu0 %1038
        %v1041 = vmul.f32 %v1035, %v1039
        %v1042 = vmul.f32 %v1036, %v1039
        %v1043 = vadd.f32 %v1024, %v1041
        %v1044 = vadd.f32 %v1025, %v1042
        %1045 = vrot.lane.b32.xlu0 %v385, 126
        %v1046 = vpop.permute.xlu0 %1045
        %1047 = vrot.lane.b32.xlu0 %v543, 126
        %v1048 = vpop.permute.xlu0 %1047
        %vm1049 = vcmp.lt.s32.totalorder %v387, 126
        %v1050 = vsel %vm1049, %v1046, %v1048
        %v1051 = vsel %vm1049, %v1048, %v1046
        %v1052 = vmul.f32 %v439, %v529
        %v1053 = vmul.f32 %v440, %v530
        %v1054 = vmul.f32 %v1050, %v1052
        %v1055 = vmul.f32 %v1051, %v1053
        %1056 = vset.pattern.permute.xlu0 26
        %1057 = vperm.xlu0 %1056, %v541
        %v1058 = vpop.permute.xlu0 %1057
        %v1060 = vmul.f32 %v1054, %v1058
        %v1061 = vmul.f32 %v1055, %v1058
        %v1062 = vadd.f32 %v1043, %v1060
        %v1063 = vadd.f32 %v1044, %v1061
        %1064 = vrot.lane.b32.xlu0 %v385, 125
        %v1065 = vpop.permute.xlu0 %1064
        %1066 = vrot.lane.b32.xlu0 %v543, 125
        %v1067 = vpop.permute.xlu0 %1066
        %vm1068 = vcmp.lt.s32.totalorder %v387, 125
        %v1069 = vsel %vm1068, %v1065, %v1067
        %v1070 = vsel %vm1068, %v1067, %v1065
        %v1071 = vmul.f32 %v439, %v539
        %v1072 = vmul.f32 %v440, %v540
        %v1073 = vmul.f32 %v1069, %v1071
        %v1074 = vmul.f32 %v1070, %v1072
        %1075 = vset.pattern.permute.xlu0 27
        %1076 = vperm.xlu0 %1075, %v541
        %v1077 = vpop.permute.xlu0 %1076
        %v1079 = vmul.f32 %v1073, %v1077
        %v1080 = vmul.f32 %v1074, %v1077
        %v1081 = vadd.f32 %v1062, %v1079
        %v1082 = vadd.f32 %v1063, %v1080
        %1083 = vrot.lane.b32.xlu0 %v385, 115
        %v1084 = vpop.permute.xlu0 %1083
        %1085 = vrot.lane.b32.xlu0 %v543, 115
        %v1086 = vpop.permute.xlu0 %1085
        %vm1087 = vcmp.lt.s32.totalorder %v387, 115
        %v1088 = vsel %vm1087, %v1084, %v1086
        %v1089 = vsel %vm1087, %v1086, %v1084
        %v1090 = vmul.f32 %v449, %v479
        %v1091 = vmul.f32 %v450, %v480
        %v1092 = vmul.f32 %v1088, %v1090
        %v1093 = vmul.f32 %v1089, %v1091
        %1094 = vset.pattern.permute.xlu0 28
        %1095 = vperm.xlu0 %1094, %v541
        %v1096 = vpop.permute.xlu0 %1095
        %v1098 = vmul.f32 %v1092, %v1096
        %v1099 = vmul.f32 %v1093, %v1096
        %v1100 = vadd.f32 %v1081, %v1098
        %v1101 = vadd.f32 %v1082, %v1099
        %1102 = vrot.lane.b32.xlu0 %v385, 114
        %v1103 = vpop.permute.xlu0 %1102
        %1104 = vrot.lane.b32.xlu0 %v543, 114
        %v1105 = vpop.permute.xlu0 %1104
        %vm1106 = vcmp.lt.s32.totalorder %v387, 114
        %v1107 = vsel %vm1106, %v1103, %v1105
        %v1108 = vsel %vm1106, %v1105, %v1103
        %v1109 = vmul.f32 %v449, %v489
        %v1110 = vmul.f32 %v450, %v490
        %v1111 = vmul.f32 %v1107, %v1109
        %v1112 = vmul.f32 %v1108, %v1110
        %1113 = vset.pattern.permute.xlu0 29
        %1114 = vperm.xlu0 %1113, %v541
        %v1115 = vpop.permute.xlu0 %1114
        %v1117 = vmul.f32 %v1111, %v1115
        %v1118 = vmul.f32 %v1112, %v1115
        %v1119 = vadd.f32 %v1100, %v1117
        %v1120 = vadd.f32 %v1101, %v1118
        %1121 = vrot.lane.b32.xlu0 %v385, 113
        %v1122 = vpop.permute.xlu0 %1121
        %1123 = vrot.lane.b32.xlu0 %v543, 113
        %v1124 = vpop.permute.xlu0 %1123
        %vm1125 = vcmp.lt.s32.totalorder %v387, 113
        %v1126 = vsel %vm1125, %v1122, %v1124
        %v1127 = vsel %vm1125, %v1124, %v1122
        %v1128 = vmul.f32 %v449, %v499
        %v1129 = vmul.f32 %v450, %v500
        %v1130 = vmul.f32 %v1126, %v1128
        %v1131 = vmul.f32 %v1127, %v1129
        %1132 = vset.pattern.permute.xlu0 30
        %1133 = vperm.xlu0 %1132, %v541
        %v1134 = vpop.permute.xlu0 %1133
        %v1136 = vmul.f32 %v1130, %v1134
        %v1137 = vmul.f32 %v1131, %v1134
        %v1138 = vadd.f32 %v1119, %v1136
        %v1139 = vadd.f32 %v1120, %v1137
        %1140 = vrot.lane.b32.xlu0 %v385, 112
        %v1141 = vpop.permute.xlu0 %1140
        %1142 = vrot.lane.b32.xlu0 %v543, 112
        %v1143 = vpop.permute.xlu0 %1142
        %vm1144 = vcmp.lt.s32.totalorder %v387, 112
        %v1145 = vsel %vm1144, %v1141, %v1143
        %v1146 = vsel %vm1144, %v1143, %v1141
        %v1147 = vmul.f32 %v449, %v509
        %v1148 = vmul.f32 %v450, %v510
        %v1149 = vmul.f32 %v1145, %v1147
        %v1150 = vmul.f32 %v1146, %v1148
        %1151 = vset.pattern.permute.xlu0 31
        %1152 = vperm.xlu0 %1151, %v541
        %v1153 = vpop.permute.xlu0 %1152
        %v1155 = vmul.f32 %v1149, %v1153
        %v1156 = vmul.f32 %v1150, %v1153
        %v1157 = vadd.f32 %v1138, %v1155
        %v1158 = vadd.f32 %v1139, %v1156
        %1159 = vrot.lane.b32.xlu0 %v385, 111
        %v1160 = vpop.permute.xlu0 %1159
        %1161 = vrot.lane.b32.xlu0 %v543, 111
        %v1162 = vpop.permute.xlu0 %1161
        %vm1163 = vcmp.lt.s32.totalorder %v387, 111
        %v1164 = vsel %vm1163, %v1160, %v1162
        %v1165 = vsel %vm1163, %v1162, %v1160
        %v1166 = vmul.f32 %v449, %v519
        %v1167 = vmul.f32 %v450, %v520
        %v1168 = vmul.f32 %v1164, %v1166
        %v1169 = vmul.f32 %v1165, %v1167
        %1170 = vset.pattern.permute.xlu0 32
        %1171 = vperm.xlu0 %1170, %v541
        %v1172 = vpop.permute.xlu0 %1171
        %v1174 = vmul.f32 %v1168, %v1172
        %v1175 = vmul.f32 %v1169, %v1172
        %v1176 = vadd.f32 %v1157, %v1174
        %v1177 = vadd.f32 %v1158, %v1175
        %1178 = vrot.lane.b32.xlu0 %v385, 110
        %v1179 = vpop.permute.xlu0 %1178
        %1180 = vrot.lane.b32.xlu0 %v543, 110
        %v1181 = vpop.permute.xlu0 %1180
        %vm1182 = vcmp.lt.s32.totalorder %v387, 110
        %v1183 = vsel %vm1182, %v1179, %v1181
        %v1184 = vsel %vm1182, %v1181, %v1179
        %v1185 = vmul.f32 %v449, %v529
        %v1186 = vmul.f32 %v450, %v530
        %v1187 = vmul.f32 %v1183, %v1185
        %v1188 = vmul.f32 %v1184, %v1186
        %1189 = vset.pattern.permute.xlu0 33
        %1190 = vperm.xlu0 %1189, %v541
        %v1191 = vpop.permute.xlu0 %1190
        %v1193 = vmul.f32 %v1187, %v1191
        %v1194 = vmul.f32 %v1188, %v1191
        %v1195 = vadd.f32 %v1176, %v1193
        %v1196 = vadd.f32 %v1177, %v1194
        %1197 = vrot.lane.b32.xlu0 %v385, 109
        %v1198 = vpop.permute.xlu0 %1197
        %1199 = vrot.lane.b32.xlu0 %v543, 109
        %v1200 = vpop.permute.xlu0 %1199
        %vm1201 = vcmp.lt.s32.totalorder %v387, 109
        %v1202 = vsel %vm1201, %v1198, %v1200
        %v1203 = vsel %vm1201, %v1200, %v1198
        %v1204 = vmul.f32 %v449, %v539
        %v1205 = vmul.f32 %v450, %v540
        %v1206 = vmul.f32 %v1202, %v1204
        %v1207 = vmul.f32 %v1203, %v1205
        %1208 = vset.pattern.permute.xlu0 34
        %1209 = vperm.xlu0 %1208, %v541
        %v1210 = vpop.permute.xlu0 %1209
        %v1212 = vmul.f32 %v1206, %v1210
        %v1213 = vmul.f32 %v1207, %v1210
        %v1214 = vadd.f32 %v1195, %v1212
        %v1215 = vadd.f32 %v1196, %v1213
        %1216 = vrot.lane.b32.xlu0 %v385, 99
        %v1217 = vpop.permute.xlu0 %1216
        %1218 = vrot.lane.b32.xlu0 %v543, 99
        %v1219 = vpop.permute.xlu0 %1218
        %vm1220 = vcmp.lt.s32.totalorder %v387, 99
        %v1221 = vsel %vm1220, %v1217, %v1219
        %v1222 = vsel %vm1220, %v1219, %v1217
        %v1223 = vmul.f32 %v459, %v479
        %v1224 = vmul.f32 %v460, %v480
        %v1225 = vmul.f32 %v1221, %v1223
        %v1226 = vmul.f32 %v1222, %v1224
        %1227 = vset.pattern.permute.xlu0 35
        %1228 = vperm.xlu0 %1227, %v541
        %v1229 = vpop.permute.xlu0 %1228
        %v1231 = vmul.f32 %v1225, %v1229
        %v1232 = vmul.f32 %v1226, %v1229
        %v1233 = vadd.f32 %v1214, %v1231
        %v1234 = vadd.f32 %v1215, %v1232
        %1235 = vrot.lane.b32.xlu0 %v385, 98
        %v1236 = vpop.permute.xlu0 %1235
        %1237 = vrot.lane.b32.xlu0 %v543, 98
        %v1238 = vpop.permute.xlu0 %1237
        %vm1239 = vcmp.lt.s32.totalorder %v387, 98
        %v1240 = vsel %vm1239, %v1236, %v1238
        %v1241 = vsel %vm1239, %v1238, %v1236
        %v1242 = vmul.f32 %v459, %v489
        %v1243 = vmul.f32 %v460, %v490
        %v1244 = vmul.f32 %v1240, %v1242
        %v1245 = vmul.f32 %v1241, %v1243
        %1246 = vset.pattern.permute.xlu0 36
        %1247 = vperm.xlu0 %1246, %v541
        %v1248 = vpop.permute.xlu0 %1247
        %v1250 = vmul.f32 %v1244, %v1248
        %v1251 = vmul.f32 %v1245, %v1248
        %v1252 = vadd.f32 %v1233, %v1250
        %v1253 = vadd.f32 %v1234, %v1251
        %1254 = vrot.lane.b32.xlu0 %v385, 97
        %v1255 = vpop.permute.xlu0 %1254
        %1256 = vrot.lane.b32.xlu0 %v543, 97
        %v1257 = vpop.permute.xlu0 %1256
        %vm1258 = vcmp.lt.s32.totalorder %v387, 97
        %v1259 = vsel %vm1258, %v1255, %v1257
        %v1260 = vsel %vm1258, %v1257, %v1255
        %v1261 = vmul.f32 %v459, %v499
        %v1262 = vmul.f32 %v460, %v500
        %v1263 = vmul.f32 %v1259, %v1261
        %v1264 = vmul.f32 %v1260, %v1262
        %1265 = vset.pattern.permute.xlu0 37
        %1266 = vperm.xlu0 %1265, %v541
        %v1267 = vpop.permute.xlu0 %1266
        %v1269 = vmul.f32 %v1263, %v1267
        %v1270 = vmul.f32 %v1264, %v1267
        %v1271 = vadd.f32 %v1252, %v1269
        %v1272 = vadd.f32 %v1253, %v1270
        %1273 = vrot.lane.b32.xlu0 %v385, 96
        %v1274 = vpop.permute.xlu0 %1273
        %1275 = vrot.lane.b32.xlu0 %v543, 96
        %v1276 = vpop.permute.xlu0 %1275
        %vm1277 = vcmp.lt.s32.totalorder %v387, 96
        %v1278 = vsel %vm1277, %v1274, %v1276
        %v1279 = vsel %vm1277, %v1276, %v1274
        %v1280 = vmul.f32 %v459, %v509
        %v1281 = vmul.f32 %v460, %v510
        %v1282 = vmul.f32 %v1278, %v1280
        %v1283 = vmul.f32 %v1279, %v1281
        %1284 = vset.pattern.permute.xlu0 38
        %1285 = vperm.xlu0 %1284, %v541
        %v1286 = vpop.permute.xlu0 %1285
        %v1288 = vmul.f32 %v1282, %v1286
        %v1289 = vmul.f32 %v1283, %v1286
        %v1290 = vadd.f32 %v1271, %v1288
        %v1291 = vadd.f32 %v1272, %v1289
        %1292 = vrot.lane.b32.xlu0 %v385, 95
        %v1293 = vpop.permute.xlu0 %1292
        %1294 = vrot.lane.b32.xlu0 %v543, 95
        %v1295 = vpop.permute.xlu0 %1294
        %vm1296 = vcmp.lt.s32.totalorder %v387, 95
        %v1297 = vsel %vm1296, %v1293, %v1295
        %v1298 = vsel %vm1296, %v1295, %v1293
        %v1299 = vmul.f32 %v459, %v519
        %v1300 = vmul.f32 %v460, %v520
        %v1301 = vmul.f32 %v1297, %v1299
        %v1302 = vmul.f32 %v1298, %v1300
        %1303 = vset.pattern.permute.xlu0 39
        %1304 = vperm.xlu0 %1303, %v541
        %v1305 = vpop.permute.xlu0 %1304
        %v1307 = vmul.f32 %v1301, %v1305
        %v1308 = vmul.f32 %v1302, %v1305
        %v1309 = vadd.f32 %v1290, %v1307
        %v1310 = vadd.f32 %v1291, %v1308
        %1311 = vrot.lane.b32.xlu0 %v385, 94
        %v1312 = vpop.permute.xlu0 %1311
        %1313 = vrot.lane.b32.xlu0 %v543, 94
        %v1314 = vpop.permute.xlu0 %1313
        %vm1315 = vcmp.lt.s32.totalorder %v387, 94
        %v1316 = vsel %vm1315, %v1312, %v1314
        %v1317 = vsel %vm1315, %v1314, %v1312
        %v1318 = vmul.f32 %v459, %v529
        %v1319 = vmul.f32 %v460, %v530
        %v1320 = vmul.f32 %v1316, %v1318
        %v1321 = vmul.f32 %v1317, %v1319
        %1322 = vset.pattern.permute.xlu0 40
        %1323 = vperm.xlu0 %1322, %v541
        %v1324 = vpop.permute.xlu0 %1323
        %v1326 = vmul.f32 %v1320, %v1324
        %v1327 = vmul.f32 %v1321, %v1324
        %v1328 = vadd.f32 %v1309, %v1326
        %v1329 = vadd.f32 %v1310, %v1327
        %1330 = vrot.lane.b32.xlu0 %v385, 93
        %v1331 = vpop.permute.xlu0 %1330
        %1332 = vrot.lane.b32.xlu0 %v543, 93
        %v1333 = vpop.permute.xlu0 %1332
        %vm1334 = vcmp.lt.s32.totalorder %v387, 93
        %v1335 = vsel %vm1334, %v1331, %v1333
        %v1336 = vsel %vm1334, %v1333, %v1331
        %v1337 = vmul.f32 %v459, %v539
        %v1338 = vmul.f32 %v460, %v540
        %v1339 = vmul.f32 %v1335, %v1337
        %v1340 = vmul.f32 %v1336, %v1338
        %1341 = vset.pattern.permute.xlu0 41
        %1342 = vperm.xlu0 %1341, %v541
        %v1343 = vpop.permute.xlu0 %1342
        %v1345 = vmul.f32 %v1339, %v1343
        %v1346 = vmul.f32 %v1340, %v1343
        %v1347 = vadd.f32 %v1328, %v1345
        %v1348 = vadd.f32 %v1329, %v1346
        %1349 = vrot.lane.b32.xlu0 %v385, 83
        %v1350 = vpop.permute.xlu0 %1349
        %1351 = vrot.lane.b32.xlu0 %v543, 83
        %v1352 = vpop.permute.xlu0 %1351
        %vm1353 = vcmp.lt.s32.totalorder %v387, 83
        %v1354 = vsel %vm1353, %v1350, %v1352
        %v1355 = vsel %vm1353, %v1352, %v1350
        %v1356 = vmul.f32 %v469, %v479
        %v1357 = vmul.f32 %v470, %v480
        %v1358 = vmul.f32 %v1354, %v1356
        %v1359 = vmul.f32 %v1355, %v1357
        %1360 = vset.pattern.permute.xlu0 42
        %1361 = vperm.xlu0 %1360, %v541
        %v1362 = vpop.permute.xlu0 %1361
        %v1364 = vmul.f32 %v1358, %v1362
        %v1365 = vmul.f32 %v1359, %v1362
        %v1366 = vadd.f32 %v1347, %v1364
        %v1367 = vadd.f32 %v1348, %v1365
        %1368 = vrot.lane.b32.xlu0 %v385, 82
        %v1369 = vpop.permute.xlu0 %1368
        %1370 = vrot.lane.b32.xlu0 %v543, 82
        %v1371 = vpop.permute.xlu0 %1370
        %vm1372 = vcmp.lt.s32.totalorder %v387, 82
        %v1373 = vsel %vm1372, %v1369, %v1371
        %v1374 = vsel %vm1372, %v1371, %v1369
        %v1375 = vmul.f32 %v469, %v489
        %v1376 = vmul.f32 %v470, %v490
        %v1377 = vmul.f32 %v1373, %v1375
        %v1378 = vmul.f32 %v1374, %v1376
        %1379 = vset.pattern.permute.xlu0 43
        %1380 = vperm.xlu0 %1379, %v541
        %v1381 = vpop.permute.xlu0 %1380
        %v1383 = vmul.f32 %v1377, %v1381
        %v1384 = vmul.f32 %v1378, %v1381
        %v1385 = vadd.f32 %v1366, %v1383
        %v1386 = vadd.f32 %v1367, %v1384
        %1387 = vrot.lane.b32.xlu0 %v385, 81
        %v1388 = vpop.permute.xlu0 %1387
        %1389 = vrot.lane.b32.xlu0 %v543, 81
        %v1390 = vpop.permute.xlu0 %1389
        %vm1391 = vcmp.lt.s32.totalorder %v387, 81
        %v1392 = vsel %vm1391, %v1388, %v1390
        %v1393 = vsel %vm1391, %v1390, %v1388
        %v1394 = vmul.f32 %v469, %v499
        %v1395 = vmul.f32 %v470, %v500
        %v1396 = vmul.f32 %v1392, %v1394
        %v1397 = vmul.f32 %v1393, %v1395
        %1398 = vset.pattern.permute.xlu0 44
        %1399 = vperm.xlu0 %1398, %v541
        %v1400 = vpop.permute.xlu0 %1399
        %v1402 = vmul.f32 %v1396, %v1400
        %v1403 = vmul.f32 %v1397, %v1400
        %v1404 = vadd.f32 %v1385, %v1402
        %v1405 = vadd.f32 %v1386, %v1403
        %1406 = vrot.lane.b32.xlu0 %v385, 80
        %v1407 = vpop.permute.xlu0 %1406
        %1408 = vrot.lane.b32.xlu0 %v543, 80
        %v1409 = vpop.permute.xlu0 %1408
        %vm1410 = vcmp.lt.s32.totalorder %v387, 80
        %v1411 = vsel %vm1410, %v1407, %v1409
        %v1412 = vsel %vm1410, %v1409, %v1407
        %v1413 = vmul.f32 %v469, %v509
        %v1414 = vmul.f32 %v470, %v510
        %v1415 = vmul.f32 %v1411, %v1413
        %v1416 = vmul.f32 %v1412, %v1414
        %1417 = vset.pattern.permute.xlu0 45
        %1418 = vperm.xlu0 %1417, %v541
        %v1419 = vpop.permute.xlu0 %1418
        %v1421 = vmul.f32 %v1415, %v1419
        %v1422 = vmul.f32 %v1416, %v1419
        %v1423 = vadd.f32 %v1404, %v1421
        %v1424 = vadd.f32 %v1405, %v1422
        %1425 = vrot.lane.b32.xlu0 %v385, 79
        %v1426 = vpop.permute.xlu0 %1425
        %1427 = vrot.lane.b32.xlu0 %v543, 79
        %v1428 = vpop.permute.xlu0 %1427
        %vm1429 = vcmp.lt.s32.totalorder %v387, 79
        %v1430 = vsel %vm1429, %v1426, %v1428
        %v1431 = vsel %vm1429, %v1428, %v1426
        %v1432 = vmul.f32 %v469, %v519
        %v1433 = vmul.f32 %v470, %v520
        %v1434 = vmul.f32 %v1430, %v1432
        %v1435 = vmul.f32 %v1431, %v1433
        %1436 = vset.pattern.permute.xlu0 46
        %1437 = vperm.xlu0 %1436, %v541
        %v1438 = vpop.permute.xlu0 %1437
        %v1440 = vmul.f32 %v1434, %v1438
        %v1441 = vmul.f32 %v1435, %v1438
        %v1442 = vadd.f32 %v1423, %v1440
        %v1443 = vadd.f32 %v1424, %v1441
        %1444 = vrot.lane.b32.xlu0 %v385, 78
        %v1445 = vpop.permute.xlu0 %1444
        %1446 = vrot.lane.b32.xlu0 %v543, 78
        %v1447 = vpop.permute.xlu0 %1446
        %vm1448 = vcmp.lt.s32.totalorder %v387, 78
        %v1449 = vsel %vm1448, %v1445, %v1447
        %v1450 = vsel %vm1448, %v1447, %v1445
        %v1451 = vmul.f32 %v469, %v529
        %v1452 = vmul.f32 %v470, %v530
        %v1453 = vmul.f32 %v1449, %v1451
        %v1454 = vmul.f32 %v1450, %v1452
        %1455 = vset.pattern.permute.xlu0 47
        %1456 = vperm.xlu0 %1455, %v541
        %v1457 = vpop.permute.xlu0 %1456
        %v1459 = vmul.f32 %v1453, %v1457
        %v1460 = vmul.f32 %v1454, %v1457
        %v1461 = vadd.f32 %v1442, %v1459
        %v1462 = vadd.f32 %v1443, %v1460
        %1463 = vrot.lane.b32.xlu0 %v385, 77
        %v1464 = vpop.permute.xlu0 %1463
        %1465 = vrot.lane.b32.xlu0 %v543, 77
        %v1466 = vpop.permute.xlu0 %1465
        %vm1467 = vcmp.lt.s32.totalorder %v387, 77
        %v1468 = vsel %vm1467, %v1464, %v1466
        %v1469 = vsel %vm1467, %v1466, %v1464
        %v1470 = vmul.f32 %v469, %v539
        %v1471 = vmul.f32 %v470, %v540
        %v1472 = vmul.f32 %v1468, %v1470
        %v1473 = vmul.f32 %v1469, %v1471
        %1474 = vset.pattern.permute.xlu0 48
        %1475 = vperm.xlu0 %1474, %v541
        %v1476 = vpop.permute.xlu0 %1475
        %v1478 = vmul.f32 %v1472, %v1476
        %v1479 = vmul.f32 %v1473, %v1476
        %v1480 = vadd.f32 %v1461, %v1478
        %v1481 = vadd.f32 %v1462, %v1479
        %v1482 = vld [vmem:[%s2] sm:$0xf]
        %1484 = vset.pattern.permute.xlu0 0
        %1485 = vperm.xlu0 %1484, %v1482
        %v1486 = vpop.permute.xlu0 %1485
        %v1488 = vadd.f32 %v1480, %v1486
        %v1489 = vadd.f32 %v1481, %v1486
        %vm1490 = vcmask 1043456
        %v1491 = vsel %vm1490, %v1488, 0.0
        %v1492 = vrot.slane %v1491, 4
        %v1493 = vadd.f32 %v1491, %v1492
        %v1494 = vrot.slane %v1493, 2
        %v1495 = vadd.f32 %v1493, %v1494
        %v1496 = vrot.slane %v1495, 1
        %v1497 = vadd.f32 %v1495, %v1496
        %v1498 = vsel %vm1490, %v1489, 0.0
        %v1499 = vrot.slane %v1498, 4
        %v1500 = vadd.f32 %v1498, %v1499
        %v1501 = vrot.slane %v1500, 2
        %v1502 = vadd.f32 %v1500, %v1501
        %v1503 = vrot.slane %v1502, 1
        %v1504 = vadd.f32 %v1502, %v1503
        %v1505 = vmul.f32 %v1497, 0.25
        %v1506 = vmul.f32 %v1504, 0.25
        %v1507 = vsub.f32 %v1488, %v1505
        %v1508 = vsub.f32 %v1489, %v1506
        %v1509 = vmul.f32 %v1507, %v1507
        %v1510 = vmul.f32 %v1508, %v1508
        %v1511 = vsel %vm1490, %v1509, 0.0
        %v1512 = vrot.slane %v1511, 4
        %v1513 = vadd.f32 %v1511, %v1512
        %v1514 = vrot.slane %v1513, 2
        %v1515 = vadd.f32 %v1513, %v1514
        %v1516 = vrot.slane %v1515, 1
        %v1517 = vadd.f32 %v1515, %v1516
        %v1518 = vsel %vm1490, %v1510, 0.0
        %v1519 = vrot.slane %v1518, 4
        %v1520 = vadd.f32 %v1518, %v1519
        %v1521 = vrot.slane %v1520, 2
        %v1522 = vadd.f32 %v1520, %v1521
        %v1523 = vrot.slane %v1522, 1
        %v1524 = vadd.f32 %v1522, %v1523
        %v1525 = vmul.f32 %v1517, 0.25
        %v1526 = vmul.f32 %v1524, 0.25
        %v1527 = vadd.f32 %v1525, 1e-05
        %v1528 = vadd.f32 %v1526, 1e-05
        %v1529 = vrsqrt.pop %v1527
        %v1530 = vrsqrt.pop %v1528
        %v1531 = vmul.f32 %v1507, %v1529
        %v1532 = vmul.f32 %v1508, %v1530
        %v1533 = vld [vmem:[%s3] sm:$0xf]
        %1535 = vset.pattern.permute.xlu0 0
        %1536 = vperm.xlu0 %1535, %v1533
        %v1537 = vpop.permute.xlu0 %1536
        %v1539 = vmul.f32 %v1531, %v1537
        %v1540 = vmul.f32 %v1532, %v1537
        %v1541 = vld [vmem:[%s4] sm:$0xf]
        %1543 = vset.pattern.permute.xlu0 0
        %1544 = vperm.xlu0 %1543, %v1541
        %v1545 = vpop.permute.xlu0 %1544
        %v1547 = vadd.f32 %v1539, %v1545
        %v1548 = vadd.f32 %v1540, %v1545
        %v1549 = vld [vmem:[%s5] sm:$0xff]
        %v1550 = vld [vmem:[%s5 + $0x8] sm:$0xff]
        %1551 = vrot.lane.b32.xlu0 %v1547, 17
        %v1552 = vpop.permute.xlu0 %1551
        %1553 = vrot.lane.b32.xlu0 %v1548, 17
        %v1554 = vpop.permute.xlu0 %1553
        %v1555 = vsel %vm854, %v1552, %v1554
        %v1556 = vsel %vm854, %v1554, %v1552
        %v1557 = vmul.f32 %v1556, %v857
        %v1558 = vmul.f32 %v1555, %v858
        %s1559 = scalar_lea.vmem %s5, 16
        %v1560 = vld [vmem:[%s1559] sm:$0xff]
        %v1561 = vld [vmem:[%s1559 + $0x8] sm:$0xff]
        %1562 = vrot.lane.b32.xlu0 %v1547, 16
        %v1563 = vpop.permute.xlu0 %1562
        %1564 = vrot.lane.b32.xlu0 %v1548, 16
        %v1565 = vpop.permute.xlu0 %1564
        %v1566 = vsel %vm873, %v1563, %v1565
        %v1567 = vsel %vm873, %v1565, %v1563
        %v1568 = vmul.f32 %v1567, %v876
        %v1569 = vmul.f32 %v1566, %v877
        %vm1570 = vcmask 31744
        %v1572 = vsel %vm1570, %v1560, 0
        %v1575 = vsel %vm1570, %v1561, 0
        %v1578 = vsel %vm1490, %v1568, 0
        %v1581 = vsel %vm1490, %v1569, 0
        %1583 = vmatprep.subr.mxu0 %v1581
        %1584 = vmatpush1.msra.mxu0 %v1578
        %1585 = vmatprep.subr.mxu0 0.0
        %1586 = vmatpush1.msra.mxu0 0.0
        %1587 = vmatprep.subr.mxu0 0.0
        %1588 = vmatpush1.msra.mxu0 0.0
        %1589 = vmatprep.subr.mxu0 0.0
        %1590 = vmatpush1.msra.mxu0 0.0
        %1591 = vmatprep.subr.mxu0 0.0
        %1592 = vmatpush1.msra.mxu0 0.0
        %1593 = vmatprep.subr.mxu0 0.0
        %1594 = vmatpush1.msra.mxu0 0.0
        %1595 = vmatprep.subr.mxu0 0.0
        %1596 = vmatpush1.msra.mxu0 0.0
        %1597 = vmatprep.subr.mxu0 0.0
        %1598 = vmatpush1.msra.mxu0 0.0
        %1599 = vmatprep.subr.mxu0 0.0
        %1600 = vmatpush1.msra.mxu0 0.0
        %1601 = vmatprep.subr.mxu0 0.0
        %1602 = vmatpush1.msra.mxu0 0.0
        %1603 = vmatprep.subr.mxu0 0.0
        %1604 = vmatpush1.msra.mxu0 0.0
        %1605 = vmatprep.subr.mxu0 0.0
        %1606 = vmatpush1.msra.mxu0 0.0
        %1607 = vmatprep.subr.mxu0 0.0
        %1608 = vmatpush1.msra.mxu0 0.0
        %1609 = vmatprep.subr.mxu0 0.0
        %1610 = vmatpush1.msra.mxu0 0.0
        %1611 = vmatprep.subr.mxu0 0.0
        %1612 = vmatpush1.msra.mxu0 0.0
        %1613 = vmatprep.subr.mxu0 0.0
        %1614 = vmatpush1.msra.mxu0 0.0
        %1615 = vmatprep.subr.mxu0 0.0
        %1616 = vmatpush1.msra.mxu0 0.0
        %1617 = vmatprep.subr.mxu0 0.0
        %1618 = vmatpush1.msra.mxu0 0.0
        %1619 = vmatprep.subr.mxu0 0.0
        %1620 = vmatpush1.msra.mxu0 0.0
        %1621 = vmatprep.subr.mxu0 0.0
        %1622 = vmatpush1.msra.mxu0 0.0
        %1623 = vmatprep.subr.mxu0 0.0
        %1624 = vmatpush1.msra.mxu0 0.0
        %1625 = vmatprep.subr.mxu0 0.0
        %1626 = vmatpush1.msra.mxu0 0.0
        %1627 = vmatprep.subr.mxu0 0.0
        %1628 = vmatpush1.msra.mxu0 0.0
        %1629 = vmatprep.subr.mxu0 0.0
        %1630 = vmatpush1.msra.mxu0 0.0
        %1631 = vmatprep.subr.mxu0 0.0
        %1632 = vmatpush1.msra.mxu0 0.0
        %1633 = vmatprep.subr.mxu0 0.0
        %1634 = vmatpush1.msra.mxu0 0.0
        %1635 = vmatprep.subr.mxu0 0.0
        %1636 = vmatpush1.msra.mxu0 0.0
        %1637 = vmatprep.subr.mxu0 0.0
        %1638 = vmatpush1.msra.mxu0 0.0
        %1639 = vmatprep.subr.mxu0 0.0
        %1640 = vmatpush1.msra.mxu0 0.0
        %1641 = vmatprep.subr.mxu0 0.0
        %1642 = vmatpush1.msra.mxu0 0.0
        %1643 = vmatprep.subr.mxu0 0.0
        %1644 = vmatpush1.msra.mxu0 0.0
        %1645 = vmatprep.subr.mxu0 0.0
        %1646 = vmatpush1.msra.mxu0 0.0
        %1647 = vmatprep.mubr.f32.mxu0 0.0
        %1648 = vmatmul.mubr.f32.gmra.mrb[0].mxu0 %v1572
        %v1649 = vpop.f32.mrb[0].mxu0
        %v1650 = vadd.f32 0.0, %v1649
        %v1651 = vpop.f32.mrb[0].mxu0
        %v1652 = vadd.f32 0.0, %v1651
        %1653 = vmatprep.mubr.f32.mxu0 0.0
        %1654 = vmatmul.mubr.f32.gmra.mrb[0].mxu0 %v1575
        %v1655 = vpop.f32.mrb[0].mxu0
        %v1656 = vadd.f32 0.0, %v1655
        %v1657 = vpop.f32.mrb[0].mxu0
        %v1658 = vadd.f32 0.0, %v1657
        %1659 = vdwg.mxu0
        %v1661 = vsel %vm1570, %v1549, 0
        %v1664 = vsel %vm1570, %v1550, 0
        %v1667 = vsel %vm1490, %v1557, 0
        %v1670 = vsel %vm1490, %v1558, 0
        %1672 = vmatprep.subr.mxu0 %v1670
        %1673 = vmatpush1.msra.mxu0 %v1667
        %1674 = vmatprep.subr.mxu0 0.0
        %1675 = vmatpush1.msra.mxu0 0.0
        %1676 = vmatprep.subr.mxu0 0.0
        %1677 = vmatpush1.msra.mxu0 0.0
        %1678 = vmatprep.subr.mxu0 0.0
        %1679 = vmatpush1.msra.mxu0 0.0
        %1680 = vmatprep.subr.mxu0 0.0
        %1681 = vmatpush1.msra.mxu0 0.0
        %1682 = vmatprep.subr.mxu0 0.0
        %1683 = vmatpush1.msra.mxu0 0.0
        %1684 = vmatprep.subr.mxu0 0.0
        %1685 = vmatpush1.msra.mxu0 0.0
        %1686 = vmatprep.subr.mxu0 0.0
        %1687 = vmatpush1.msra.mxu0 0.0
        %1688 = vmatprep.subr.mxu0 0.0
        %1689 = vmatpush1.msra.mxu0 0.0
        %1690 = vmatprep.subr.mxu0 0.0
        %1691 = vmatpush1.msra.mxu0 0.0
        %1692 = vmatprep.subr.mxu0 0.0
        %1693 = vmatpush1.msra.mxu0 0.0
        %1694 = vmatprep.subr.mxu0 0.0
        %1695 = vmatpush1.msra.mxu0 0.0
        %1696 = vmatprep.subr.mxu0 0.0
        %1697 = vmatpush1.msra.mxu0 0.0
        %1698 = vmatprep.subr.mxu0 0.0
        %1699 = vmatpush1.msra.mxu0 0.0
        %1700 = vmatprep.subr.mxu0 0.0
        %1701 = vmatpush1.msra.mxu0 0.0
        %1702 = vmatprep.subr.mxu0 0.0
        %1703 = vmatpush1.msra.mxu0 0.0
        %1704 = vmatprep.subr.mxu0 0.0
        %1705 = vmatpush1.msra.mxu0 0.0
        %1706 = vmatprep.subr.mxu0 0.0
        %1707 = vmatpush1.msra.mxu0 0.0
        %1708 = vmatprep.subr.mxu0 0.0
        %1709 = vmatpush1.msra.mxu0 0.0
        %1710 = vmatprep.subr.mxu0 0.0
        %1711 = vmatpush1.msra.mxu0 0.0
        %1712 = vmatprep.subr.mxu0 0.0
        %1713 = vmatpush1.msra.mxu0 0.0
        %1714 = vmatprep.subr.mxu0 0.0
        %1715 = vmatpush1.msra.mxu0 0.0
        %1716 = vmatprep.subr.mxu0 0.0
        %1717 = vmatpush1.msra.mxu0 0.0
        %1718 = vmatprep.subr.mxu0 0.0
        %1719 = vmatpush1.msra.mxu0 0.0
        %1720 = vmatprep.subr.mxu0 0.0
        %1721 = vmatpush1.msra.mxu0 0.0
        %1722 = vmatprep.subr.mxu0 0.0
        %1723 = vmatpush1.msra.mxu0 0.0
        %1724 = vmatprep.subr.mxu0 0.0
        %1725 = vmatpush1.msra.mxu0 0.0
        %1726 = vmatprep.subr.mxu0 0.0
        %1727 = vmatpush1.msra.mxu0 0.0
        %1728 = vmatprep.subr.mxu0 0.0
        %1729 = vmatpush1.msra.mxu0 0.0
        %1730 = vmatprep.subr.mxu0 0.0
        %1731 = vmatpush1.msra.mxu0 0.0
        %1732 = vmatprep.subr.mxu0 0.0
        %1733 = vmatpush1.msra.mxu0 0.0
        %1734 = vmatprep.subr.mxu0 0.0
        %1735 = vmatpush1.msra.mxu0 0.0
        %1736 = vmatprep.mubr.f32.mxu0 0.0
        %1737 = vmatmul.mubr.f32.gmra.mrb[0].mxu0 %v1661
        %v1738 = vpop.f32.mrb[0].mxu0
        %v1739 = vadd.f32 %v1650, %v1738
        %v1740 = vpop.f32.mrb[0].mxu0
        %v1741 = vadd.f32 %v1652, %v1740
        %1742 = vmatprep.mubr.f32.mxu0 0.0
        %1743 = vmatmul.mubr.f32.gmra.mrb[0].mxu0 %v1664
        %v1744 = vpop.f32.mrb[0].mxu0
        %v1745 = vadd.f32 %v1656, %v1744
        %v1746 = vpop.f32.mrb[0].mxu0
        %v1747 = vadd.f32 %v1658, %v1746
        %1748 = vdwg.mxu0
        %s1749 = scalar_lea.vmem %s5, 32
        %v1750 = vld [vmem:[%s1749] sm:$0xff]
        %v1751 = vld [vmem:[%s1749 + $0x8] sm:$0xff]
        %1752 = vrot.lane.b32.xlu0 %v1547, 15
        %v1753 = vpop.permute.xlu0 %1752
        %1754 = vrot.lane.b32.xlu0 %v1548, 15
        %v1755 = vpop.permute.xlu0 %1754
        %v1756 = vsel %vm892, %v1753, %v1755
        %v1757 = vsel %vm892, %v1755, %v1753
        %v1758 = vmul.f32 %v1757, %v895
        %v1759 = vmul.f32 %v1756, %v896
        %v1761 = vsel %vm1570, %v1750, 0
        %v1764 = vsel %vm1570, %v1751, 0
        %v1767 = vsel %vm1490, %v1758, 0
        %v1770 = vsel %vm1490, %v1759, 0
        %1772 = vmatprep.subr.mxu0 %v1770
        %1773 = vmatpush1.msra.mxu0 %v1767
        %1774 = vmatprep.subr.mxu0 0.0
        %1775 = vmatpush1.msra.mxu0 0.0
        %1776 = vmatprep.subr.mxu0 0.0
        %1777 = vmatpush1.msra.mxu0 0.0
        %1778 = vmatprep.subr.mxu0 0.0
        %1779 = vmatpush1.msra.mxu0 0.0
        %1780 = vmatprep.subr.mxu0 0.0
        %1781 = vmatpush1.msra.mxu0 0.0
        %1782 = vmatprep.subr.mxu0 0.0
        %1783 = vmatpush1.msra.mxu0 0.0
        %1784 = vmatprep.subr.mxu0 0.0
        %1785 = vmatpush1.msra.mxu0 0.0
        %1786 = vmatprep.subr.mxu0 0.0
        %1787 = vmatpush1.msra.mxu0 0.0
        %1788 = vmatprep.subr.mxu0 0.0
        %1789 = vmatpush1.msra.mxu0 0.0
        %1790 = vmatprep.subr.mxu0 0.0
        %1791 = vmatpush1.msra.mxu0 0.0
        %1792 = vmatprep.subr.mxu0 0.0
        %1793 = vmatpush1.msra.mxu0 0.0
        %1794 = vmatprep.subr.mxu0 0.0
        %1795 = vmatpush1.msra.mxu0 0.0
        %1796 = vmatprep.subr.mxu0 0.0
        %1797 = vmatpush1.msra.mxu0 0.0
        %1798 = vmatprep.subr.mxu0 0.0
        %1799 = vmatpush1.msra.mxu0 0.0
        %1800 = vmatprep.subr.mxu0 0.0
        %1801 = vmatpush1.msra.mxu0 0.0
        %1802 = vmatprep.subr.mxu0 0.0
        %1803 = vmatpush1.msra.mxu0 0.0
        %1804 = vmatprep.subr.mxu0 0.0
        %1805 = vmatpush1.msra.mxu0 0.0
        %1806 = vmatprep.subr.mxu0 0.0
        %1807 = vmatpush1.msra.mxu0 0.0
        %1808 = vmatprep.subr.mxu0 0.0
        %1809 = vmatpush1.msra.mxu0 0.0
        %1810 = vmatprep.subr.mxu0 0.0
        %1811 = vmatpush1.msra.mxu0 0.0
        %1812 = vmatprep.subr.mxu0 0.0
        %1813 = vmatpush1.msra.mxu0 0.0
        %1814 = vmatprep.subr.mxu0 0.0
        %1815 = vmatpush1.msra.mxu0 0.0
        %1816 = vmatprep.subr.mxu0 0.0
        %1817 = vmatpush1.msra.mxu0 0.0
        %1818 = vmatprep.subr.mxu0 0.0
        %1819 = vmatpush1.msra.mxu0 0.0
        %1820 = vmatprep.subr.mxu0 0.0
        %1821 = vmatpush1.msra.mxu0 0.0
        %1822 = vmatprep.subr.mxu0 0.0
        %1823 = vmatpush1.msra.mxu0 0.0
        %1824 = vmatprep.subr.mxu0 0.0
        %1825 = vmatpush1.msra.mxu0 0.0
        %1826 = vmatprep.subr.mxu0 0.0
        %1827 = vmatpush1.msra.mxu0 0.0
        %1828 = vmatprep.subr.mxu0 0.0
        %1829 = vmatpush1.msra.mxu0 0.0
        %1830 = vmatprep.subr.mxu0 0.0
        %1831 = vmatpush1.msra.mxu0 0.0
        %1832 = vmatprep.subr.mxu0 0.0
        %1833 = vmatpush1.msra.mxu0 0.0
        %1834 = vmatprep.subr.mxu0 0.0
        %1835 = vmatpush1.msra.mxu0 0.0
        %1836 = vmatprep.mubr.f32.mxu0 0.0
        %1837 = vmatmul.mubr.f32.gmra.mrb[0].mxu0 %v1761
        %v1838 = vpop.f32.mrb[0].mxu0
        %v1839 = vadd.f32 0.0, %v1838
        %v1840 = vpop.f32.mrb[0].mxu0
        %v1841 = vadd.f32 0.0, %v1840
        %1842 = vmatprep.mubr.f32.mxu0 0.0
        %1843 = vmatmul.mubr.f32.gmra.mrb[0].mxu0 %v1764
        %v1844 = vpop.f32.mrb[0].mxu0
        %v1845 = vadd.f32 0.0, %v1844
        %v1846 = vpop.f32.mrb[0].mxu0
        %v1847 = vadd.f32 0.0, %v1846
        %1848 = vdwg.mxu0
        %v1849 = vadd.f32 %v1739, %v1839
        %v1850 = vadd.f32 %v1741, %v1841
        %v1851 = vadd.f32 %v1745, %v1845
        %v1852 = vadd.f32 %v1747, %v1847
        %s1853 = scalar_lea.vmem %s5, 48
        %v1854 = vld [vmem:[%s1853] sm:$0xff]
        %v1855 = vld [vmem:[%s1853 + $0x8] sm:$0xff]
        %1856 = vrot.lane.b32.xlu0 %v1547, 1
        %v1857 = vpop.permute.xlu0 %1856
        %1858 = vrot.lane.b32.xlu0 %v1548, 1
        %v1859 = vpop.permute.xlu0 %1858
        %v1860 = vsel %vm987, %v1857, %v1859
        %v1861 = vsel %vm987, %v1859, %v1857
        %v1862 = vmul.f32 %v1861, %v990
        %v1863 = vmul.f32 %v1860, %v991
        %v1865 = vsel %vm1570, %v1854, 0
        %v1868 = vsel %vm1570, %v1855, 0
        %v1871 = vsel %vm1490, %v1862, 0
        %v1874 = vsel %vm1490, %v1863, 0
        %1876 = vmatprep.subr.mxu0 %v1874
        %1877 = vmatpush1.msra.mxu0 %v1871
        %1878 = vmatprep.subr.mxu0 0.0
        %1879 = vmatpush1.msra.mxu0 0.0
        %1880 = vmatprep.subr.mxu0 0.0
        %1881 = vmatpush1.msra.mxu0 0.0
        %1882 = vmatprep.subr.mxu0 0.0
        %1883 = vmatpush1.msra.mxu0 0.0
        %1884 = vmatprep.subr.mxu0 0.0
        %1885 = vmatpush1.msra.mxu0 0.0
        %1886 = vmatprep.subr.mxu0 0.0
        %1887 = vmatpush1.msra.mxu0 0.0
        %1888 = vmatprep.subr.mxu0 0.0
        %1889 = vmatpush1.msra.mxu0 0.0
        %1890 = vmatprep.subr.mxu0 0.0
        %1891 = vmatpush1.msra.mxu0 0.0
        %1892 = vmatprep.subr.mxu0 0.0
        %1893 = vmatpush1.msra.mxu0 0.0
        %1894 = vmatprep.subr.mxu0 0.0
        %1895 = vmatpush1.msra.mxu0 0.0
        %1896 = vmatprep.subr.mxu0 0.0
        %1897 = vmatpush1.msra.mxu0 0.0
        %1898 = vmatprep.subr.mxu0 0.0
        %1899 = vmatpush1.msra.mxu0 0.0
        %1900 = vmatprep.subr.mxu0 0.0
        %1901 = vmatpush1.msra.mxu0 0.0
        %1902 = vmatprep.subr.mxu0 0.0
        %1903 = vmatpush1.msra.mxu0 0.0
        %1904 = vmatprep.subr.mxu0 0.0
        %1905 = vmatpush1.msra.mxu0 0.0
        %1906 = vmatprep.subr.mxu0 0.0
        %1907 = vmatpush1.msra.mxu0 0.0
        %1908 = vmatprep.subr.mxu0 0.0
        %1909 = vmatpush1.msra.mxu0 0.0
        %1910 = vmatprep.subr.mxu0 0.0
        %1911 = vmatpush1.msra.mxu0 0.0
        %1912 = vmatprep.subr.mxu0 0.0
        %1913 = vmatpush1.msra.mxu0 0.0
        %1914 = vmatprep.subr.mxu0 0.0
        %1915 = vmatpush1.msra.mxu0 0.0
        %1916 = vmatprep.subr.mxu0 0.0
        %1917 = vmatpush1.msra.mxu0 0.0
        %1918 = vmatprep.subr.mxu0 0.0
        %1919 = vmatpush1.msra.mxu0 0.0
        %1920 = vmatprep.subr.mxu0 0.0
        %1921 = vmatpush1.msra.mxu0 0.0
        %1922 = vmatprep.subr.mxu0 0.0
        %1923 = vmatpush1.msra.mxu0 0.0
        %1924 = vmatprep.subr.mxu0 0.0
        %1925 = vmatpush1.msra.mxu0 0.0
        %1926 = vmatprep.subr.mxu0 0.0
        %1927 = vmatpush1.msra.mxu0 0.0
        %1928 = vmatprep.subr.mxu0 0.0
        %1929 = vmatpush1.msra.mxu0 0.0
        %1930 = vmatprep.subr.mxu0 0.0
        %1931 = vmatpush1.msra.mxu0 0.0
        %1932 = vmatprep.subr.mxu0 0.0
        %1933 = vmatpush1.msra.mxu0 0.0
        %1934 = vmatprep.subr.mxu0 0.0
        %1935 = vmatpush1.msra.mxu0 0.0
        %1936 = vmatprep.subr.mxu0 0.0
        %1937 = vmatpush1.msra.mxu0 0.0
        %1938 = vmatprep.subr.mxu0 0.0
        %1939 = vmatpush1.msra.mxu0 0.0
        %1940 = vmatprep.mubr.f32.mxu0 0.0
        %1941 = vmatmul.mubr.f32.gmra.mrb[0].mxu0 %v1865
        %v1942 = vpop.f32.mrb[0].mxu0
        %v1943 = vadd.f32 0.0, %v1942
        %v1944 = vpop.f32.mrb[0].mxu0
        %v1945 = vadd.f32 0.0, %v1944
        %1946 = vmatprep.mubr.f32.mxu0 0.0
        %1947 = vmatmul.mubr.f32.gmra.mrb[0].mxu0 %v1868
        %v1948 = vpop.f32.mrb[0].mxu0
        %v1949 = vadd.f32 0.0, %v1948
        %v1950 = vpop.f32.mrb[0].mxu0
        %v1951 = vadd.f32 0.0, %v1950
        %1952 = vdwg.mxu0
        %v1953 = vadd.f32 %v1849, %v1943
        %v1954 = vadd.f32 %v1850, %v1945
        %v1955 = vadd.f32 %v1851, %v1949
        %v1956 = vadd.f32 %v1852, %v1951
        %s1957 = scalar_lea.vmem %s5, 64
        %v1958 = vld [vmem:[%s1957] sm:$0xff]
        %v1959 = vld [vmem:[%s1957 + $0x8] sm:$0xff]
        %v1960 = vmul.f32 %v1547, %v1002
        %v1961 = vmul.f32 %v1548, %v1003
        %v1963 = vsel %vm1570, %v1958, 0
        %v1966 = vsel %vm1570, %v1959, 0
        %v1969 = vsel %vm1490, %v1960, 0
        %v1972 = vsel %vm1490, %v1961, 0
        %1974 = vmatprep.subr.mxu0 %v1972
        %1975 = vmatpush1.msra.mxu0 %v1969
        %1976 = vmatprep.subr.mxu0 0.0
        %1977 = vmatpush1.msra.mxu0 0.0
        %1978 = vmatprep.subr.mxu0 0.0
        %1979 = vmatpush1.msra.mxu0 0.0
        %1980 = vmatprep.subr.mxu0 0.0
        %1981 = vmatpush1.msra.mxu0 0.0
        %1982 = vmatprep.subr.mxu0 0.0
        %1983 = vmatpush1.msra.mxu0 0.0
        %1984 = vmatprep.subr.mxu0 0.0
        %1985 = vmatpush1.msra.mxu0 0.0
        %1986 = vmatprep.subr.mxu0 0.0
        %1987 = vmatpush1.msra.mxu0 0.0
        %1988 = vmatprep.subr.mxu0 0.0
        %1989 = vmatpush1.msra.mxu0 0.0
        %1990 = vmatprep.subr.mxu0 0.0
        %1991 = vmatpush1.msra.mxu0 0.0
        %1992 = vmatprep.subr.mxu0 0.0
        %1993 = vmatpush1.msra.mxu0 0.0
        %1994 = vmatprep.subr.mxu0 0.0
        %1995 = vmatpush1.msra.mxu0 0.0
        %1996 = vmatprep.subr.mxu0 0.0
        %1997 = vmatpush1.msra.mxu0 0.0
        %1998 = vmatprep.subr.mxu0 0.0
        %1999 = vmatpush1.msra.mxu0 0.0
        %2000 = vmatprep.subr.mxu0 0.0
        %2001 = vmatpush1.msra.mxu0 0.0
        %2002 = vmatprep.subr.mxu0 0.0
        %2003 = vmatpush1.msra.mxu0 0.0
        %2004 = vmatprep.subr.mxu0 0.0
        %2005 = vmatpush1.msra.mxu0 0.0
        %2006 = vmatprep.subr.mxu0 0.0
        %2007 = vmatpush1.msra.mxu0 0.0
        %2008 = vmatprep.subr.mxu0 0.0
        %2009 = vmatpush1.msra.mxu0 0.0
        %2010 = vmatprep.subr.mxu0 0.0
        %2011 = vmatpush1.msra.mxu0 0.0
        %2012 = vmatprep.subr.mxu0 0.0
        %2013 = vmatpush1.msra.mxu0 0.0
        %2014 = vmatprep.subr.mxu0 0.0
        %2015 = vmatpush1.msra.mxu0 0.0
        %2016 = vmatprep.subr.mxu0 0.0
        %2017 = vmatpush1.msra.mxu0 0.0
        %2018 = vmatprep.subr.mxu0 0.0
        %2019 = vmatpush1.msra.mxu0 0.0
        %2020 = vmatprep.subr.mxu0 0.0
        %2021 = vmatpush1.msra.mxu0 0.0
        %2022 = vmatprep.subr.mxu0 0.0
        %2023 = vmatpush1.msra.mxu0 0.0
        %2024 = vmatprep.subr.mxu0 0.0
        %2025 = vmatpush1.msra.mxu0 0.0
        %2026 = vmatprep.subr.mxu0 0.0
        %2027 = vmatpush1.msra.mxu0 0.0
        %2028 = vmatprep.subr.mxu0 0.0
        %2029 = vmatpush1.msra.mxu0 0.0
        %2030 = vmatprep.subr.mxu0 0.0
        %2031 = vmatpush1.msra.mxu0 0.0
        %2032 = vmatprep.subr.mxu0 0.0
        %2033 = vmatpush1.msra.mxu0 0.0
        %2034 = vmatprep.subr.mxu0 0.0
        %2035 = vmatpush1.msra.mxu0 0.0
        %2036 = vmatprep.subr.mxu0 0.0
        %2037 = vmatpush1.msra.mxu0 0.0
        %2038 = vmatprep.mubr.f32.mxu0 0.0
        %2039 = vmatmul.mubr.f32.gmra.mrb[0].mxu0 %v1963
        %v2040 = vpop.f32.mrb[0].mxu0
        %v2041 = vadd.f32 0.0, %v2040
        %v2042 = vpop.f32.mrb[0].mxu0
        %v2043 = vadd.f32 0.0, %v2042
        %2044 = vmatprep.mubr.f32.mxu0 0.0
        %2045 = vmatmul.mubr.f32.gmra.mrb[0].mxu0 %v1966
        %v2046 = vpop.f32.mrb[0].mxu0
        %v2047 = vadd.f32 0.0, %v2046
        %v2048 = vpop.f32.mrb[0].mxu0
        %v2049 = vadd.f32 0.0, %v2048
        %2050 = vdwg.mxu0
        %v2051 = vadd.f32 %v1953, %v2041
        %v2052 = vadd.f32 %v1954, %v2043
        %v2053 = vadd.f32 %v1955, %v2047
        %v2054 = vadd.f32 %v1956, %v2049
        %s2055 = scalar_lea.vmem %s5, 80
        %v2056 = vld [vmem:[%s2055] sm:$0xff]
        %v2057 = vld [vmem:[%s2055 + $0x8] sm:$0xff]
        %2058 = vrot.lane.b32.xlu0 %v1547, 127
        %v2059 = vpop.permute.xlu0 %2058
        %2060 = vrot.lane.b32.xlu0 %v1548, 127
        %v2061 = vpop.permute.xlu0 %2060
        %v2062 = vsel %vm1030, %v2059, %v2061
        %v2063 = vsel %vm1030, %v2061, %v2059
        %v2064 = vmul.f32 %v2062, %v1033
        %v2065 = vmul.f32 %v2063, %v1034
        %v2067 = vsel %vm1570, %v2056, 0
        %v2070 = vsel %vm1570, %v2057, 0
        %v2073 = vsel %vm1490, %v2064, 0
        %v2076 = vsel %vm1490, %v2065, 0
        %2078 = vmatprep.subr.mxu0 %v2076
        %2079 = vmatpush1.msra.mxu0 %v2073
        %2080 = vmatprep.subr.mxu0 0.0
        %2081 = vmatpush1.msra.mxu0 0.0
        %2082 = vmatprep.subr.mxu0 0.0
        %2083 = vmatpush1.msra.mxu0 0.0
        %2084 = vmatprep.subr.mxu0 0.0
        %2085 = vmatpush1.msra.mxu0 0.0
        %2086 = vmatprep.subr.mxu0 0.0
        %2087 = vmatpush1.msra.mxu0 0.0
        %2088 = vmatprep.subr.mxu0 0.0
        %2089 = vmatpush1.msra.mxu0 0.0
        %2090 = vmatprep.subr.mxu0 0.0
        %2091 = vmatpush1.msra.mxu0 0.0
        %2092 = vmatprep.subr.mxu0 0.0
        %2093 = vmatpush1.msra.mxu0 0.0
        %2094 = vmatprep.subr.mxu0 0.0
        %2095 = vmatpush1.msra.mxu0 0.0
        %2096 = vmatprep.subr.mxu0 0.0
        %2097 = vmatpush1.msra.mxu0 0.0
        %2098 = vmatprep.subr.mxu0 0.0
        %2099 = vmatpush1.msra.mxu0 0.0
        %2100 = vmatprep.subr.mxu0 0.0
        %2101 = vmatpush1.msra.mxu0 0.0
        %2102 = vmatprep.subr.mxu0 0.0
        %2103 = vmatpush1.msra.mxu0 0.0
        %2104 = vmatprep.subr.mxu0 0.0
        %2105 = vmatpush1.msra.mxu0 0.0
        %2106 = vmatprep.subr.mxu0 0.0
        %2107 = vmatpush1.msra.mxu0 0.0
        %2108 = vmatprep.subr.mxu0 0.0
        %2109 = vmatpush1.msra.mxu0 0.0
        %2110 = vmatprep.subr.mxu0 0.0
        %2111 = vmatpush1.msra.mxu0 0.0
        %2112 = vmatprep.subr.mxu0 0.0
        %2113 = vmatpush1.msra.mxu0 0.0
        %2114 = vmatprep.subr.mxu0 0.0
        %2115 = vmatpush1.msra.mxu0 0.0
        %2116 = vmatprep.subr.mxu0 0.0
        %2117 = vmatpush1.msra.mxu0 0.0
        %2118 = vmatprep.subr.mxu0 0.0
        %2119 = vmatpush1.msra.mxu0 0.0
        %2120 = vmatprep.subr.mxu0 0.0
        %2121 = vmatpush1.msra.mxu0 0.0
        %2122 = vmatprep.subr.mxu0 0.0
        %2123 = vmatpush1.msra.mxu0 0.0
        %2124 = vmatprep.subr.mxu0 0.0
        %2125 = vmatpush1.msra.mxu0 0.0
        %2126 = vmatprep.subr.mxu0 0.0
        %2127 = vmatpush1.msra.mxu0 0.0
        %2128 = vmatprep.subr.mxu0 0.0
        %2129 = vmatpush1.msra.mxu0 0.0
        %2130 = vmatprep.subr.mxu0 0.0
        %2131 = vmatpush1.msra.mxu0 0.0
        %2132 = vmatprep.subr.mxu0 0.0
        %2133 = vmatpush1.msra.mxu0 0.0
        %2134 = vmatprep.subr.mxu0 0.0
        %2135 = vmatpush1.msra.mxu0 0.0
        %2136 = vmatprep.subr.mxu0 0.0
        %2137 = vmatpush1.msra.mxu0 0.0
        %2138 = vmatprep.subr.mxu0 0.0
        %2139 = vmatpush1.msra.mxu0 0.0
        %2140 = vmatprep.subr.mxu0 0.0
        %2141 = vmatpush1.msra.mxu0 0.0
        %2142 = vmatprep.mubr.f32.mxu0 0.0
        %2143 = vmatmul.mubr.f32.gmra.mrb[0].mxu0 %v2067
        %v2144 = vpop.f32.mrb[0].mxu0
        %v2145 = vadd.f32 0.0, %v2144
        %v2146 = vpop.f32.mrb[0].mxu0
        %v2147 = vadd.f32 0.0, %v2146
        %2148 = vmatprep.mubr.f32.mxu0 0.0
        %2149 = vmatmul.mubr.f32.gmra.mrb[0].mxu0 %v2070
        %v2150 = vpop.f32.mrb[0].mxu0
        %v2151 = vadd.f32 0.0, %v2150
        %v2152 = vpop.f32.mrb[0].mxu0
        %v2153 = vadd.f32 0.0, %v2152
        %2154 = vdwg.mxu0
        %v2155 = vadd.f32 %v2051, %v2145
        %v2156 = vadd.f32 %v2052, %v2147
        %v2157 = vadd.f32 %v2053, %v2151
        %v2158 = vadd.f32 %v2054, %v2153
        %s2159 = scalar_lea.vmem %s5, 96
        %v2160 = vld [vmem:[%s2159] sm:$0xff]
        %v2161 = vld [vmem:[%s2159 + $0x8] sm:$0xff]
        %2162 = vrot.lane.b32.xlu0 %v1547, 113
        %v2163 = vpop.permute.xlu0 %2162
        %2164 = vrot.lane.b32.xlu0 %v1548, 113
        %v2165 = vpop.permute.xlu0 %2164
        %v2166 = vsel %vm1125, %v2163, %v2165
        %v2167 = vsel %vm1125, %v2165, %v2163
        %v2168 = vmul.f32 %v2166, %v1128
        %v2169 = vmul.f32 %v2167, %v1129
        %v2171 = vsel %vm1570, %v2160, 0
        %v2174 = vsel %vm1570, %v2161, 0
        %v2177 = vsel %vm1490, %v2168, 0
        %v2180 = vsel %vm1490, %v2169, 0
        %2182 = vmatprep.subr.mxu0 %v2180
        %2183 = vmatpush1.msra.mxu0 %v2177
        %2184 = vmatprep.subr.mxu0 0.0
        %2185 = vmatpush1.msra.mxu0 0.0
        %2186 = vmatprep.subr.mxu0 0.0
        %2187 = vmatpush1.msra.mxu0 0.0
        %2188 = vmatprep.subr.mxu0 0.0
        %2189 = vmatpush1.msra.mxu0 0.0
        %2190 = vmatprep.subr.mxu0 0.0
        %2191 = vmatpush1.msra.mxu0 0.0
        %2192 = vmatprep.subr.mxu0 0.0
        %2193 = vmatpush1.msra.mxu0 0.0
        %2194 = vmatprep.subr.mxu0 0.0
        %2195 = vmatpush1.msra.mxu0 0.0
        %2196 = vmatprep.subr.mxu0 0.0
        %2197 = vmatpush1.msra.mxu0 0.0
        %2198 = vmatprep.subr.mxu0 0.0
        %2199 = vmatpush1.msra.mxu0 0.0
        %2200 = vmatprep.subr.mxu0 0.0
        %2201 = vmatpush1.msra.mxu0 0.0
        %2202 = vmatprep.subr.mxu0 0.0
        %2203 = vmatpush1.msra.mxu0 0.0
        %2204 = vmatprep.subr.mxu0 0.0
        %2205 = vmatpush1.msra.mxu0 0.0
        %2206 = vmatprep.subr.mxu0 0.0
        %2207 = vmatpush1.msra.mxu0 0.0
        %2208 = vmatprep.subr.mxu0 0.0
        %2209 = vmatpush1.msra.mxu0 0.0
        %2210 = vmatprep.subr.mxu0 0.0
        %2211 = vmatpush1.msra.mxu0 0.0
        %2212 = vmatprep.subr.mxu0 0.0
        %2213 = vmatpush1.msra.mxu0 0.0
        %2214 = vmatprep.subr.mxu0 0.0
        %2215 = vmatpush1.msra.mxu0 0.0
        %2216 = vmatprep.subr.mxu0 0.0
        %2217 = vmatpush1.msra.mxu0 0.0
        %2218 = vmatprep.subr.mxu0 0.0
        %2219 = vmatpush1.msra.mxu0 0.0
        %2220 = vmatprep.subr.mxu0 0.0
        %2221 = vmatpush1.msra.mxu0 0.0
        %2222 = vmatprep.subr.mxu0 0.0
        %2223 = vmatpush1.msra.mxu0 0.0
        %2224 = vmatprep.subr.mxu0 0.0
        %2225 = vmatpush1.msra.mxu0 0.0
        %2226 = vmatprep.subr.mxu0 0.0
        %2227 = vmatpush1.msra.mxu0 0.0
        %2228 = vmatprep.subr.mxu0 0.0
        %2229 = vmatpush1.msra.mxu0 0.0
        %2230 = vmatprep.subr.mxu0 0.0
        %2231 = vmatpush1.msra.mxu0 0.0
        %2232 = vmatprep.subr.mxu0 0.0
        %2233 = vmatpush1.msra.mxu0 0.0
        %2234 = vmatprep.subr.mxu0 0.0
        %2235 = vmatpush1.msra.mxu0 0.0
        %2236 = vmatprep.subr.mxu0 0.0
        %2237 = vmatpush1.msra.mxu0 0.0
        %2238 = vmatprep.subr.mxu0 0.0
        %2239 = vmatpush1.msra.mxu0 0.0
        %2240 = vmatprep.subr.mxu0 0.0
        %2241 = vmatpush1.msra.mxu0 0.0
        %2242 = vmatprep.subr.mxu0 0.0
        %2243 = vmatpush1.msra.mxu0 0.0
        %2244 = vmatprep.subr.mxu0 0.0
        %2245 = vmatpush1.msra.mxu0 0.0
        %2246 = vmatprep.mubr.f32.mxu0 0.0
        %2247 = vmatmul.mubr.f32.gmra.mrb[0].mxu0 %v2171
        %v2248 = vpop.f32.mrb[0].mxu0
        %v2249 = vadd.f32 0.0, %v2248
        %v2250 = vpop.f32.mrb[0].mxu0
        %v2251 = vadd.f32 0.0, %v2250
        %2252 = vmatprep.mubr.f32.mxu0 0.0
        %2253 = vmatmul.mubr.f32.gmra.mrb[0].mxu0 %v2174
        %v2254 = vpop.f32.mrb[0].mxu0
        %v2255 = vadd.f32 0.0, %v2254
        %v2256 = vpop.f32.mrb[0].mxu0
        %v2257 = vadd.f32 0.0, %v2256
        %2258 = vdwg.mxu0
        %v2259 = vadd.f32 %v2155, %v2249
        %v2260 = vadd.f32 %v2156, %v2251
        %v2261 = vadd.f32 %v2157, %v2255
        %v2262 = vadd.f32 %v2158, %v2257
        %s2263 = scalar_lea.vmem %s5, 112
        %v2264 = vld [vmem:[%s2263] sm:$0xff]
        %v2265 = vld [vmem:[%s2263 + $0x8] sm:$0xff]
        %2266 = vrot.lane.b32.xlu0 %v1547, 112
        %v2267 = vpop.permute.xlu0 %2266
        %2268 = vrot.lane.b32.xlu0 %v1548, 112
        %v2269 = vpop.permute.xlu0 %2268
        %v2270 = vsel %vm1144, %v2267, %v2269
        %v2271 = vsel %vm1144, %v2269, %v2267
        %v2272 = vmul.f32 %v2270, %v1147
        %v2273 = vmul.f32 %v2271, %v1148
        %v2275 = vsel %vm1570, %v2264, 0
        %v2278 = vsel %vm1570, %v2265, 0
        %v2281 = vsel %vm1490, %v2272, 0
        %v2284 = vsel %vm1490, %v2273, 0
        %2286 = vmatprep.subr.mxu0 %v2284
        %2287 = vmatpush1.msra.mxu0 %v2281
        %2288 = vmatprep.subr.mxu0 0.0
        %2289 = vmatpush1.msra.mxu0 0.0
        %2290 = vmatprep.subr.mxu0 0.0
        %2291 = vmatpush1.msra.mxu0 0.0
        %2292 = vmatprep.subr.mxu0 0.0
        %2293 = vmatpush1.msra.mxu0 0.0
        %2294 = vmatprep.subr.mxu0 0.0
        %2295 = vmatpush1.msra.mxu0 0.0
        %2296 = vmatprep.subr.mxu0 0.0
        %2297 = vmatpush1.msra.mxu0 0.0
        %2298 = vmatprep.subr.mxu0 0.0
        %2299 = vmatpush1.msra.mxu0 0.0
        %2300 = vmatprep.subr.mxu0 0.0
        %2301 = vmatpush1.msra.mxu0 0.0
        %2302 = vmatprep.subr.mxu0 0.0
        %2303 = vmatpush1.msra.mxu0 0.0
        %2304 = vmatprep.subr.mxu0 0.0
        %2305 = vmatpush1.msra.mxu0 0.0
        %2306 = vmatprep.subr.mxu0 0.0
        %2307 = vmatpush1.msra.mxu0 0.0
        %2308 = vmatprep.subr.mxu0 0.0
        %2309 = vmatpush1.msra.mxu0 0.0
        %2310 = vmatprep.subr.mxu0 0.0
        %2311 = vmatpush1.msra.mxu0 0.0
        %2312 = vmatprep.subr.mxu0 0.0
        %2313 = vmatpush1.msra.mxu0 0.0
        %2314 = vmatprep.subr.mxu0 0.0
        %2315 = vmatpush1.msra.mxu0 0.0
        %2316 = vmatprep.subr.mxu0 0.0
        %2317 = vmatpush1.msra.mxu0 0.0
        %2318 = vmatprep.subr.mxu0 0.0
        %2319 = vmatpush1.msra.mxu0 0.0
        %2320 = vmatprep.subr.mxu0 0.0
        %2321 = vmatpush1.msra.mxu0 0.0
        %2322 = vmatprep.subr.mxu0 0.0
        %2323 = vmatpush1.msra.mxu0 0.0
        %2324 = vmatprep.subr.mxu0 0.0
        %2325 = vmatpush1.msra.mxu0 0.0
        %2326 = vmatprep.subr.mxu0 0.0
        %2327 = vmatpush1.msra.mxu0 0.0
        %2328 = vmatprep.subr.mxu0 0.0
        %2329 = vmatpush1.msra.mxu0 0.0
        %2330 = vmatprep.subr.mxu0 0.0
        %2331 = vmatpush1.msra.mxu0 0.0
        %2332 = vmatprep.subr.mxu0 0.0
        %2333 = vmatpush1.msra.mxu0 0.0
        %2334 = vmatprep.subr.mxu0 0.0
        %2335 = vmatpush1.msra.mxu0 0.0
        %2336 = vmatprep.subr.mxu0 0.0
        %2337 = vmatpush1.msra.mxu0 0.0
        %2338 = vmatprep.subr.mxu0 0.0
        %2339 = vmatpush1.msra.mxu0 0.0
        %2340 = vmatprep.subr.mxu0 0.0
        %2341 = vmatpush1.msra.mxu0 0.0
        %2342 = vmatprep.subr.mxu0 0.0
        %2343 = vmatpush1.msra.mxu0 0.0
        %2344 = vmatprep.subr.mxu0 0.0
        %2345 = vmatpush1.msra.mxu0 0.0
        %2346 = vmatprep.subr.mxu0 0.0
        %2347 = vmatpush1.msra.mxu0 0.0
        %2348 = vmatprep.subr.mxu0 0.0
        %2349 = vmatpush1.msra.mxu0 0.0
        %2350 = vmatprep.mubr.f32.mxu0 0.0
        %2351 = vmatmul.mubr.f32.gmra.mrb[0].mxu0 %v2275
        %v2352 = vpop.f32.mrb[0].mxu0
        %v2353 = vadd.f32 0.0, %v2352
        %v2354 = vpop.f32.mrb[0].mxu0
        %v2355 = vadd.f32 0.0, %v2354
        %2356 = vmatprep.mubr.f32.mxu0 0.0
        %2357 = vmatmul.mubr.f32.gmra.mrb[0].mxu0 %v2278
        %v2358 = vpop.f32.mrb[0].mxu0
        %v2359 = vadd.f32 0.0, %v2358
        %v2360 = vpop.f32.mrb[0].mxu0
        %v2361 = vadd.f32 0.0, %v2360
        %2362 = vdwg.mxu0
        %v2363 = vadd.f32 %v2259, %v2353
        %v2364 = vadd.f32 %v2260, %v2355
        %v2365 = vadd.f32 %v2261, %v2359
        %v2366 = vadd.f32 %v2262, %v2361
        %s2367 = scalar_lea.vmem %s5, 128
        %v2368 = vld [vmem:[%s2367] sm:$0xff]
        %v2369 = vld [vmem:[%s2367 + $0x8] sm:$0xff]
        %2370 = vrot.lane.b32.xlu0 %v1547, 111
        %v2371 = vpop.permute.xlu0 %2370
        %2372 = vrot.lane.b32.xlu0 %v1548, 111
        %v2373 = vpop.permute.xlu0 %2372
        %v2374 = vsel %vm1163, %v2371, %v2373
        %v2375 = vsel %vm1163, %v2373, %v2371
        %v2376 = vmul.f32 %v2374, %v1166
        %v2377 = vmul.f32 %v2375, %v1167
        %v2379 = vsel %vm1570, %v2368, 0
        %v2382 = vsel %vm1570, %v2369, 0
        %v2385 = vsel %vm1490, %v2376, 0
        %v2388 = vsel %vm1490, %v2377, 0
        %2390 = vmatprep.subr.mxu0 %v2388
        %2391 = vmatpush1.msra.mxu0 %v2385
        %2392 = vmatprep.subr.mxu0 0.0
        %2393 = vmatpush1.msra.mxu0 0.0
        %2394 = vmatprep.subr.mxu0 0.0
        %2395 = vmatpush1.msra.mxu0 0.0
        %2396 = vmatprep.subr.mxu0 0.0
        %2397 = vmatpush1.msra.mxu0 0.0
        %2398 = vmatprep.subr.mxu0 0.0
        %2399 = vmatpush1.msra.mxu0 0.0
        %2400 = vmatprep.subr.mxu0 0.0
        %2401 = vmatpush1.msra.mxu0 0.0
        %2402 = vmatprep.subr.mxu0 0.0
        %2403 = vmatpush1.msra.mxu0 0.0
        %2404 = vmatprep.subr.mxu0 0.0
        %2405 = vmatpush1.msra.mxu0 0.0
        %2406 = vmatprep.subr.mxu0 0.0
        %2407 = vmatpush1.msra.mxu0 0.0
        %2408 = vmatprep.subr.mxu0 0.0
        %2409 = vmatpush1.msra.mxu0 0.0
        %2410 = vmatprep.subr.mxu0 0.0
        %2411 = vmatpush1.msra.mxu0 0.0
        %2412 = vmatprep.subr.mxu0 0.0
        %2413 = vmatpush1.msra.mxu0 0.0
        %2414 = vmatprep.subr.mxu0 0.0
        %2415 = vmatpush1.msra.mxu0 0.0
        %2416 = vmatprep.subr.mxu0 0.0
        %2417 = vmatpush1.msra.mxu0 0.0
        %2418 = vmatprep.subr.mxu0 0.0
        %2419 = vmatpush1.msra.mxu0 0.0
        %2420 = vmatprep.subr.mxu0 0.0
        %2421 = vmatpush1.msra.mxu0 0.0
        %2422 = vmatprep.subr.mxu0 0.0
        %2423 = vmatpush1.msra.mxu0 0.0
        %2424 = vmatprep.subr.mxu0 0.0
        %2425 = vmatpush1.msra.mxu0 0.0
        %2426 = vmatprep.subr.mxu0 0.0
        %2427 = vmatpush1.msra.mxu0 0.0
        %2428 = vmatprep.subr.mxu0 0.0
        %2429 = vmatpush1.msra.mxu0 0.0
        %2430 = vmatprep.subr.mxu0 0.0
        %2431 = vmatpush1.msra.mxu0 0.0
        %2432 = vmatprep.subr.mxu0 0.0
        %2433 = vmatpush1.msra.mxu0 0.0
        %2434 = vmatprep.subr.mxu0 0.0
        %2435 = vmatpush1.msra.mxu0 0.0
        %2436 = vmatprep.subr.mxu0 0.0
        %2437 = vmatpush1.msra.mxu0 0.0
        %2438 = vmatprep.subr.mxu0 0.0
        %2439 = vmatpush1.msra.mxu0 0.0
        %2440 = vmatprep.subr.mxu0 0.0
        %2441 = vmatpush1.msra.mxu0 0.0
        %2442 = vmatprep.subr.mxu0 0.0
        %2443 = vmatpush1.msra.mxu0 0.0
        %2444 = vmatprep.subr.mxu0 0.0
        %2445 = vmatpush1.msra.mxu0 0.0
        %2446 = vmatprep.subr.mxu0 0.0
        %2447 = vmatpush1.msra.mxu0 0.0
        %2448 = vmatprep.subr.mxu0 0.0
        %2449 = vmatpush1.msra.mxu0 0.0
        %2450 = vmatprep.subr.mxu0 0.0
        %2451 = vmatpush1.msra.mxu0 0.0
        %2452 = vmatprep.subr.mxu0 0.0
        %2453 = vmatpush1.msra.mxu0 0.0
        %2454 = vmatprep.mubr.f32.mxu0 0.0
        %2455 = vmatmul.mubr.f32.gmra.mrb[0].mxu0 %v2379
        %v2456 = vpop.f32.mrb[0].mxu0
        %v2457 = vadd.f32 0.0, %v2456
        %v2458 = vpop.f32.mrb[0].mxu0
        %v2459 = vadd.f32 0.0, %v2458
        %2460 = vmatprep.mubr.f32.mxu0 0.0
        %2461 = vmatmul.mubr.f32.gmra.mrb[0].mxu0 %v2382
        %v2462 = vpop.f32.mrb[0].mxu0
        %v2463 = vadd.f32 0.0, %v2462
        %v2464 = vpop.f32.mrb[0].mxu0
        %v2465 = vadd.f32 0.0, %v2464
        %2466 = vdwg.mxu0
        %v2467 = vadd.f32 %v2363, %v2457
        %v2468 = vadd.f32 %v2364, %v2459
        %v2469 = vadd.f32 %v2365, %v2463
        %v2470 = vadd.f32 %v2366, %v2465
        %v2471 = vld [vmem:[%s6] sm:$0xff]
        %v2472 = vld [vmem:[%s6 + $0x8] sm:$0xff]
        %2474 = vset.pattern.permute.xlu0 0
        %2475 = vperm.xlu0 %2474, %v2471
        %v2476 = vpop.permute.xlu0 %2475
        %2479 = vset.pattern.permute.xlu0 0
        %2480 = vperm.xlu0 %2479, %v2472
        %v2481 = vpop.permute.xlu0 %2480
        %v2483 = vadd.f32 %v2467, %v2476
        %v2484 = vadd.f32 %v2468, %v2476
        %v2485 = vadd.f32 %v2469, %v2481
        %v2486 = vadd.f32 %v2470, %v2481
        %v2487 = vmul.f32 %v2483, 0.70710677
        %v2488 = vmul.f32 %v2484, 0.70710677
        %v2489 = vmul.f32 %v2485, 0.70710677
        %v2490 = vmul.f32 %v2486, 0.70710677
        %v2491 = vand.u32 2147483647, %v2487
        %v2492 = vand.u32 2147483647, %v2488
        %v2493 = vand.u32 2147483647, %v2489
        %v2494 = vand.u32 2147483647, %v2490
        %v2495 = vmul.f32 %v2491, 0.3275911
        %v2496 = vmul.f32 %v2492, 0.3275911
        %v2497 = vmul.f32 %v2493, 0.3275911
        %v2498 = vmul.f32 %v2494, 0.3275911
        %v2499 = vadd.f32 %v2495, 1.0
        %v2500 = vadd.f32 %v2496, 1.0
        %v2501 = vadd.f32 %v2497, 1.0
        %v2502 = vadd.f32 %v2498, 1.0
        %v2503 = vrcp.pop %v2499
        %v2504 = vmul.f32 1.0, %v2503
        %v2505 = vrcp.pop %v2500
        %v2506 = vmul.f32 1.0, %v2505
        %v2507 = vrcp.pop %v2501
        %v2508 = vmul.f32 1.0, %v2507
        %v2509 = vrcp.pop %v2502
        %v2510 = vmul.f32 1.0, %v2509
        %v2511 = vmul.f32 %v2504, 1.0614054
        %v2512 = vmul.f32 %v2506, 1.0614054
        %v2513 = vmul.f32 %v2508, 1.0614054
        %v2514 = vmul.f32 %v2510, 1.0614054
        %v2515 = vsub.f32 %v2511, 1.4531521
        %v2516 = vsub.f32 %v2512, 1.4531521
        %v2517 = vsub.f32 %v2513, 1.4531521
        %v2518 = vsub.f32 %v2514, 1.4531521
        %v2519 = vmul.f32 %v2515, %v2504
        %v2520 = vmul.f32 %v2516, %v2506
        %v2521 = vmul.f32 %v2517, %v2508
        %v2522 = vmul.f32 %v2518, %v2510
        %v2523 = vadd.f32 %v2519, 1.4214138
        %v2524 = vadd.f32 %v2520, 1.4214138
        %v2525 = vadd.f32 %v2521, 1.4214138
        %v2526 = vadd.f32 %v2522, 1.4214138
        %v2527 = vmul.f32 %v2523, %v2504
        %v2528 = vmul.f32 %v2524, %v2506
        %v2529 = vmul.f32 %v2525, %v2508
        %v2530 = vmul.f32 %v2526, %v2510
        %v2531 = vsub.f32 %v2527, 0.28449672
        %v2532 = vsub.f32 %v2528, 0.28449672
        %v2533 = vsub.f32 %v2529, 0.28449672
        %v2534 = vsub.f32 %v2530, 0.28449672
        %v2535 = vmul.f32 %v2531, %v2504
        %v2536 = vmul.f32 %v2532, %v2506
        %v2537 = vmul.f32 %v2533, %v2508
        %v2538 = vmul.f32 %v2534, %v2510
        %v2539 = vadd.f32 %v2535, 0.2548296
        %v2540 = vadd.f32 %v2536, 0.2548296
        %v2541 = vadd.f32 %v2537, 0.2548296
        %v2542 = vadd.f32 %v2538, 0.2548296
        %v2543 = vmul.f32 %v2539, %v2504
        %v2544 = vmul.f32 %v2540, %v2506
        %v2545 = vmul.f32 %v2541, %v2508
        %v2546 = vmul.f32 %v2542, %v2510
        %v2547 = vsub.f32 0.0, %v2491
        %v2548 = vsub.f32 0.0, %v2492
        %v2549 = vsub.f32 0.0, %v2493
        %v2550 = vsub.f32 0.0, %v2494
        %v2551 = vmul.f32 %v2547, %v2491
        %v2552 = vmul.f32 %v2548, %v2492
        %v2553 = vmul.f32 %v2549, %v2493
        %v2554 = vmul.f32 %v2550, %v2494
        %v2555 = vmul.f32 %v2551, 1.442695
        %v2556 = vpow.pop %v2555
        %v2557 = vmul.f32 %v2552, 1.442695
        %v2558 = vpow.pop %v2557
        %v2559 = vmul.f32 %v2553, 1.442695
        %v2560 = vpow.pop %v2559
        %v2561 = vmul.f32 %v2554, 1.442695
        %v2562 = vpow.pop %v2561
        %v2563 = vmul.f32 %v2543, %v2556
        %v2564 = vmul.f32 %v2544, %v2558
        %v2565 = vmul.f32 %v2545, %v2560
        %v2566 = vmul.f32 %v2546, %v2562
        %v2567 = vsub.f32 1.0, %v2563
        %v2568 = vsub.f32 1.0, %v2564
        %v2569 = vsub.f32 1.0, %v2565
        %v2570 = vsub.f32 1.0, %v2566
        %vm2571 = vcmp.ge.f32.partialorder %v2487, 0.0
        %vm2572 = vcmp.ge.f32.partialorder %v2488, 0.0
        %vm2573 = vcmp.ge.f32.partialorder %v2489, 0.0
        %vm2574 = vcmp.ge.f32.partialorder %v2490, 0.0
        %v2575 = vsub.f32 0.0, %v2567
        %v2576 = vsub.f32 0.0, %v2568
        %v2577 = vsub.f32 0.0, %v2569
        %v2578 = vsub.f32 0.0, %v2570
        %v2579 = vsel %vm2571, %v2567, %v2575
        %v2580 = vsel %vm2572, %v2568, %v2576
        %v2581 = vsel %vm2573, %v2569, %v2577
        %v2582 = vsel %vm2574, %v2570, %v2578
        %v2583 = vmul.f32 %v2483, 0.5
        %v2584 = vmul.f32 %v2484, 0.5
        %v2585 = vmul.f32 %v2485, 0.5
        %v2586 = vmul.f32 %v2486, 0.5
        %v2587 = vadd.f32 %v2579, 1.0
        %v2588 = vadd.f32 %v2580, 1.0
        %v2589 = vadd.f32 %v2581, 1.0
        %v2590 = vadd.f32 %v2582, 1.0
        %v2591 = vmul.f32 %v2583, %v2587
        %v2592 = vmul.f32 %v2584, %v2588
        %v2593 = vmul.f32 %v2585, %v2589
        %v2594 = vmul.f32 %v2586, %v2590
        %v2595 = vld [vmem:[%s9] sm:$0xff]
        %v2596 = vld [vmem:[%s7] sm:$0xff]
        %2597 = vrot.lane.b32.xlu0 %v2591, 17
        %v2598 = vpop.permute.xlu0 %2597
        %2599 = vrot.lane.b32.xlu0 %v2593, 17
        %v2600 = vpop.permute.xlu0 %2599
        %2601 = vrot.lane.b32.xlu0 %v2592, 17
        %v2602 = vpop.permute.xlu0 %2601
        %2603 = vrot.lane.b32.xlu0 %v2594, 17
        %v2604 = vpop.permute.xlu0 %2603
        %v2605 = vsel %vm854, %v2598, %v2602
        %v2606 = vsel %vm854, %v2600, %v2604
        %v2607 = vsel %vm854, %v2602, %v2598
        %v2608 = vsel %vm854, %v2604, %v2600
        %v2609 = vmul.f32 %v2607, %v857
        %v2610 = vmul.f32 %v2605, %v858
        %v2611 = vmul.f32 %v2608, %v857
        %v2612 = vmul.f32 %v2606, %v858
        %vm2613 = vcmask 130048
        %v2615 = vsel %vm2613, %v2596, 0
        %2617 = vmatprep.subr.mxu0 %v2610
        %2618 = vmatpush1.msra.mxu0 %v2609
        %2619 = vmatprep.subr.mxu0 %v2612
        %2620 = vmatpush1.msra.mxu0 %v2611
        %2621 = vmatprep.subr.mxu0 0.0
        %2622 = vmatpush1.msra.mxu0 0.0
        %2623 = vmatprep.subr.mxu0 0.0
        %2624 = vmatpush1.msra.mxu0 0.0
        %2625 = vmatprep.subr.mxu0 0.0
        %2626 = vmatpush1.msra.mxu0 0.0
        %2627 = vmatprep.subr.mxu0 0.0
        %2628 = vmatpush1.msra.mxu0 0.0
        %2629 = vmatprep.subr.mxu0 0.0
        %2630 = vmatpush1.msra.mxu0 0.0
        %2631 = vmatprep.subr.mxu0 0.0
        %2632 = vmatpush1.msra.mxu0 0.0
        %2633 = vmatprep.subr.mxu0 0.0
        %2634 = vmatpush1.msra.mxu0 0.0
        %2635 = vmatprep.subr.mxu0 0.0
        %2636 = vmatpush1.msra.mxu0 0.0
        %2637 = vmatprep.subr.mxu0 0.0
        %2638 = vmatpush1.msra.mxu0 0.0
        %2639 = vmatprep.subr.mxu0 0.0
        %2640 = vmatpush1.msra.mxu0 0.0
        %2641 = vmatprep.subr.mxu0 0.0
        %2642 = vmatpush1.msra.mxu0 0.0
        %2643 = vmatprep.subr.mxu0 0.0
        %2644 = vmatpush1.msra.mxu0 0.0
        %2645 = vmatprep.subr.mxu0 0.0
        %2646 = vmatpush1.msra.mxu0 0.0
        %2647 = vmatprep.subr.mxu0 0.0
        %2648 = vmatpush1.msra.mxu0 0.0
        %2649 = vmatprep.subr.mxu0 0.0
        %2650 = vmatpush1.msra.mxu0 0.0
        %2651 = vmatprep.subr.mxu0 0.0
        %2652 = vmatpush1.msra.mxu0 0.0
        %2653 = vmatprep.subr.mxu0 0.0
        %2654 = vmatpush1.msra.mxu0 0.0
        %2655 = vmatprep.subr.mxu0 0.0
        %2656 = vmatpush1.msra.mxu0 0.0
        %2657 = vmatprep.subr.mxu0 0.0
        %2658 = vmatpush1.msra.mxu0 0.0
        %2659 = vmatprep.subr.mxu0 0.0
        %2660 = vmatpush1.msra.mxu0 0.0
        %2661 = vmatprep.subr.mxu0 0.0
        %2662 = vmatpush1.msra.mxu0 0.0
        %2663 = vmatprep.subr.mxu0 0.0
        %2664 = vmatpush1.msra.mxu0 0.0
        %2665 = vmatprep.subr.mxu0 0.0
        %2666 = vmatpush1.msra.mxu0 0.0
        %2667 = vmatprep.subr.mxu0 0.0
        %2668 = vmatpush1.msra.mxu0 0.0
        %2669 = vmatprep.subr.mxu0 0.0
        %2670 = vmatpush1.msra.mxu0 0.0
        %2671 = vmatprep.subr.mxu0 0.0
        %2672 = vmatpush1.msra.mxu0 0.0
        %2673 = vmatprep.subr.mxu0 0.0
        %2674 = vmatpush1.msra.mxu0 0.0
        %2675 = vmatprep.subr.mxu0 0.0
        %2676 = vmatpush1.msra.mxu0 0.0
        %2677 = vmatprep.subr.mxu0 0.0
        %2678 = vmatpush1.msra.mxu0 0.0
        %2679 = vmatprep.subr.mxu0 0.0
        %2680 = vmatpush1.msra.mxu0 0.0
        %2681 = vmatprep.mubr.f32.mxu0 0.0
        %2682 = vmatmul.mubr.f32.gmra.mrb[0].mxu0 %v2615
        %v2683 = vpop.f32.mrb[0].mxu0
        %v2684 = vadd.f32 0.0, %v2683
        %v2685 = vpop.f32.mrb[0].mxu0
        %v2686 = vadd.f32 0.0, %v2685
        %2687 = vdwg.mxu0
        %v2689 = vsel %vm1570, %v2595, 0
        %v2691 = vsel %vm1490, %v385, 0
        %v2693 = vsel %vm1490, %v543, 0
        %2695 = vmatprep.subr.mxu0 %v2693
        %2696 = vmatpush1.msra.mxu0 %v2691
        %2697 = vmatprep.subr.mxu0 0.0
        %2698 = vmatpush1.msra.mxu0 0.0
        %2699 = vmatprep.subr.mxu0 0.0
        %2700 = vmatpush1.msra.mxu0 0.0
        %2701 = vmatprep.subr.mxu0 0.0
        %2702 = vmatpush1.msra.mxu0 0.0
        %2703 = vmatprep.subr.mxu0 0.0
        %2704 = vmatpush1.msra.mxu0 0.0
        %2705 = vmatprep.subr.mxu0 0.0
        %2706 = vmatpush1.msra.mxu0 0.0
        %2707 = vmatprep.subr.mxu0 0.0
        %2708 = vmatpush1.msra.mxu0 0.0
        %2709 = vmatprep.subr.mxu0 0.0
        %2710 = vmatpush1.msra.mxu0 0.0
        %2711 = vmatprep.subr.mxu0 0.0
        %2712 = vmatpush1.msra.mxu0 0.0
        %2713 = vmatprep.subr.mxu0 0.0
        %2714 = vmatpush1.msra.mxu0 0.0
        %2715 = vmatprep.subr.mxu0 0.0
        %2716 = vmatpush1.msra.mxu0 0.0
        %2717 = vmatprep.subr.mxu0 0.0
        %2718 = vmatpush1.msra.mxu0 0.0
        %2719 = vmatprep.subr.mxu0 0.0
        %2720 = vmatpush1.msra.mxu0 0.0
        %2721 = vmatprep.subr.mxu0 0.0
        %2722 = vmatpush1.msra.mxu0 0.0
        %2723 = vmatprep.subr.mxu0 0.0
        %2724 = vmatpush1.msra.mxu0 0.0
        %2725 = vmatprep.subr.mxu0 0.0
        %2726 = vmatpush1.msra.mxu0 0.0
        %2727 = vmatprep.subr.mxu0 0.0
        %2728 = vmatpush1.msra.mxu0 0.0
        %2729 = vmatprep.subr.mxu0 0.0
        %2730 = vmatpush1.msra.mxu0 0.0
        %2731 = vmatprep.subr.mxu0 0.0
        %2732 = vmatpush1.msra.mxu0 0.0
        %2733 = vmatprep.subr.mxu0 0.0
        %2734 = vmatpush1.msra.mxu0 0.0
        %2735 = vmatprep.subr.mxu0 0.0
        %2736 = vmatpush1.msra.mxu0 0.0
        %2737 = vmatprep.subr.mxu0 0.0
        %2738 = vmatpush1.msra.mxu0 0.0
        %2739 = vmatprep.subr.mxu0 0.0
        %2740 = vmatpush1.msra.mxu0 0.0
        %2741 = vmatprep.subr.mxu0 0.0
        %2742 = vmatpush1.msra.mxu0 0.0
        %2743 = vmatprep.subr.mxu0 0.0
        %2744 = vmatpush1.msra.mxu0 0.0
        %2745 = vmatprep.subr.mxu0 0.0
        %2746 = vmatpush1.msra.mxu0 0.0
        %2747 = vmatprep.subr.mxu0 0.0
        %2748 = vmatpush1.msra.mxu0 0.0
        %2749 = vmatprep.subr.mxu0 0.0
        %2750 = vmatpush1.msra.mxu0 0.0
        %2751 = vmatprep.subr.mxu0 0.0
        %2752 = vmatpush1.msra.mxu0 0.0
        %2753 = vmatprep.subr.mxu0 0.0
        %2754 = vmatpush1.msra.mxu0 0.0
        %2755 = vmatprep.subr.mxu0 0.0
        %2756 = vmatpush1.msra.mxu0 0.0
        %2757 = vmatprep.subr.mxu0 0.0
        %2758 = vmatpush1.msra.mxu0 0.0
        %2759 = vmatprep.mubr.f32.mxu0 0.0
        %2760 = vmatmul.mubr.f32.gmra.mrb[0].mxu0 %v2689
        %v2761 = vpop.f32.mrb[0].mxu0
        %v2762 = vadd.f32 %v2684, %v2761
        %v2763 = vpop.f32.mrb[0].mxu0
        %v2764 = vadd.f32 %v2686, %v2763
        %2765 = vdwg.mxu0
        %s2766 = scalar_lea.vmem %s7, 8
        %v2767 = vld [vmem:[%s2766] sm:$0xff]
        %2768 = vrot.lane.b32.xlu0 %v2591, 16
        %v2769 = vpop.permute.xlu0 %2768
        %2770 = vrot.lane.b32.xlu0 %v2593, 16
        %v2771 = vpop.permute.xlu0 %2770
        %2772 = vrot.lane.b32.xlu0 %v2592, 16
        %v2773 = vpop.permute.xlu0 %2772
        %2774 = vrot.lane.b32.xlu0 %v2594, 16
        %v2775 = vpop.permute.xlu0 %2774
        %v2776 = vsel %vm873, %v2769, %v2773
        %v2777 = vsel %vm873, %v2771, %v2775
        %v2778 = vsel %vm873, %v2773, %v2769
        %v2779 = vsel %vm873, %v2775, %v2771
        %v2780 = vmul.f32 %v2778, %v876
        %v2781 = vmul.f32 %v2776, %v877
        %v2782 = vmul.f32 %v2779, %v876
        %v2783 = vmul.f32 %v2777, %v877
        %v2785 = vsel %vm2613, %v2767, 0
        %2787 = vmatprep.subr.mxu0 %v2781
        %2788 = vmatpush1.msra.mxu0 %v2780
        %2789 = vmatprep.subr.mxu0 %v2783
        %2790 = vmatpush1.msra.mxu0 %v2782
        %2791 = vmatprep.subr.mxu0 0.0
        %2792 = vmatpush1.msra.mxu0 0.0
        %2793 = vmatprep.subr.mxu0 0.0
        %2794 = vmatpush1.msra.mxu0 0.0
        %2795 = vmatprep.subr.mxu0 0.0
        %2796 = vmatpush1.msra.mxu0 0.0
        %2797 = vmatprep.subr.mxu0 0.0
        %2798 = vmatpush1.msra.mxu0 0.0
        %2799 = vmatprep.subr.mxu0 0.0
        %2800 = vmatpush1.msra.mxu0 0.0
        %2801 = vmatprep.subr.mxu0 0.0
        %2802 = vmatpush1.msra.mxu0 0.0
        %2803 = vmatprep.subr.mxu0 0.0
        %2804 = vmatpush1.msra.mxu0 0.0
        %2805 = vmatprep.subr.mxu0 0.0
        %2806 = vmatpush1.msra.mxu0 0.0
        %2807 = vmatprep.subr.mxu0 0.0
        %2808 = vmatpush1.msra.mxu0 0.0
        %2809 = vmatprep.subr.mxu0 0.0
        %2810 = vmatpush1.msra.mxu0 0.0
        %2811 = vmatprep.subr.mxu0 0.0
        %2812 = vmatpush1.msra.mxu0 0.0
        %2813 = vmatprep.subr.mxu0 0.0
        %2814 = vmatpush1.msra.mxu0 0.0
        %2815 = vmatprep.subr.mxu0 0.0
        %2816 = vmatpush1.msra.mxu0 0.0
        %2817 = vmatprep.subr.mxu0 0.0
        %2818 = vmatpush1.msra.mxu0 0.0
        %2819 = vmatprep.subr.mxu0 0.0
        %2820 = vmatpush1.msra.mxu0 0.0
        %2821 = vmatprep.subr.mxu0 0.0
        %2822 = vmatpush1.msra.mxu0 0.0
        %2823 = vmatprep.subr.mxu0 0.0
        %2824 = vmatpush1.msra.mxu0 0.0
        %2825 = vmatprep.subr.mxu0 0.0
        %2826 = vmatpush1.msra.mxu0 0.0
        %2827 = vmatprep.subr.mxu0 0.0
        %2828 = vmatpush1.msra.mxu0 0.0
        %2829 = vmatprep.subr.mxu0 0.0
        %2830 = vmatpush1.msra.mxu0 0.0
        %2831 = vmatprep.subr.mxu0 0.0
        %2832 = vmatpush1.msra.mxu0 0.0
        %2833 = vmatprep.subr.mxu0 0.0
        %2834 = vmatpush1.msra.mxu0 0.0
        %2835 = vmatprep.subr.mxu0 0.0
        %2836 = vmatpush1.msra.mxu0 0.0
        %2837 = vmatprep.subr.mxu0 0.0
        %2838 = vmatpush1.msra.mxu0 0.0
        %2839 = vmatprep.subr.mxu0 0.0
        %2840 = vmatpush1.msra.mxu0 0.0
        %2841 = vmatprep.subr.mxu0 0.0
        %2842 = vmatpush1.msra.mxu0 0.0
        %2843 = vmatprep.subr.mxu0 0.0
        %2844 = vmatpush1.msra.mxu0 0.0
        %2845 = vmatprep.subr.mxu0 0.0
        %2846 = vmatpush1.msra.mxu0 0.0
        %2847 = vmatprep.subr.mxu0 0.0
        %2848 = vmatpush1.msra.mxu0 0.0
        %2849 = vmatprep.subr.mxu0 0.0
        %2850 = vmatpush1.msra.mxu0 0.0
        %2851 = vmatprep.mubr.f32.mxu0 0.0
        %2852 = vmatmul.mubr.f32.gmra.mrb[0].mxu0 %v2785
        %v2853 = vpop.f32.mrb[0].mxu0
        %v2854 = vadd.f32 0.0, %v2853
        %v2855 = vpop.f32.mrb[0].mxu0
        %v2856 = vadd.f32 0.0, %v2855
        %2857 = vdwg.mxu0
        %v2858 = vadd.f32 %v2762, %v2854
        %v2859 = vadd.f32 %v2764, %v2856
        %s2860 = scalar_lea.vmem %s7, 16
        %v2861 = vld [vmem:[%s2860] sm:$0xff]
        %2862 = vrot.lane.b32.xlu0 %v2591, 15
        %v2863 = vpop.permute.xlu0 %2862
        %2864 = vrot.lane.b32.xlu0 %v2593, 15
        %v2865 = vpop.permute.xlu0 %2864
        %2866 = vrot.lane.b32.xlu0 %v2592, 15
        %v2867 = vpop.permute.xlu0 %2866
        %2868 = vrot.lane.b32.xlu0 %v2594, 15
        %v2869 = vpop.permute.xlu0 %2868
        %v2870 = vsel %vm892, %v2863, %v2867
        %v2871 = vsel %vm892, %v2865, %v2869
        %v2872 = vsel %vm892, %v2867, %v2863
        %v2873 = vsel %vm892, %v2869, %v2865
        %v2874 = vmul.f32 %v2872, %v895
        %v2875 = vmul.f32 %v2870, %v896
        %v2876 = vmul.f32 %v2873, %v895
        %v2877 = vmul.f32 %v2871, %v896
        %v2879 = vsel %vm2613, %v2861, 0
        %2881 = vmatprep.subr.mxu0 %v2875
        %2882 = vmatpush1.msra.mxu0 %v2874
        %2883 = vmatprep.subr.mxu0 %v2877
        %2884 = vmatpush1.msra.mxu0 %v2876
        %2885 = vmatprep.subr.mxu0 0.0
        %2886 = vmatpush1.msra.mxu0 0.0
        %2887 = vmatprep.subr.mxu0 0.0
        %2888 = vmatpush1.msra.mxu0 0.0
        %2889 = vmatprep.subr.mxu0 0.0
        %2890 = vmatpush1.msra.mxu0 0.0
        %2891 = vmatprep.subr.mxu0 0.0
        %2892 = vmatpush1.msra.mxu0 0.0
        %2893 = vmatprep.subr.mxu0 0.0
        %2894 = vmatpush1.msra.mxu0 0.0
        %2895 = vmatprep.subr.mxu0 0.0
        %2896 = vmatpush1.msra.mxu0 0.0
        %2897 = vmatprep.subr.mxu0 0.0
        %2898 = vmatpush1.msra.mxu0 0.0
        %2899 = vmatprep.subr.mxu0 0.0
        %2900 = vmatpush1.msra.mxu0 0.0
        %2901 = vmatprep.subr.mxu0 0.0
        %2902 = vmatpush1.msra.mxu0 0.0
        %2903 = vmatprep.subr.mxu0 0.0
        %2904 = vmatpush1.msra.mxu0 0.0
        %2905 = vmatprep.subr.mxu0 0.0
        %2906 = vmatpush1.msra.mxu0 0.0
        %2907 = vmatprep.subr.mxu0 0.0
        %2908 = vmatpush1.msra.mxu0 0.0
        %2909 = vmatprep.subr.mxu0 0.0
        %2910 = vmatpush1.msra.mxu0 0.0
        %2911 = vmatprep.subr.mxu0 0.0
        %2912 = vmatpush1.msra.mxu0 0.0
        %2913 = vmatprep.subr.mxu0 0.0
        %2914 = vmatpush1.msra.mxu0 0.0
        %2915 = vmatprep.subr.mxu0 0.0
        %2916 = vmatpush1.msra.mxu0 0.0
        %2917 = vmatprep.subr.mxu0 0.0
        %2918 = vmatpush1.msra.mxu0 0.0
        %2919 = vmatprep.subr.mxu0 0.0
        %2920 = vmatpush1.msra.mxu0 0.0
        %2921 = vmatprep.subr.mxu0 0.0
        %2922 = vmatpush1.msra.mxu0 0.0
        %2923 = vmatprep.subr.mxu0 0.0
        %2924 = vmatpush1.msra.mxu0 0.0
        %2925 = vmatprep.subr.mxu0 0.0
        %2926 = vmatpush1.msra.mxu0 0.0
        %2927 = vmatprep.subr.mxu0 0.0
        %2928 = vmatpush1.msra.mxu0 0.0
        %2929 = vmatprep.subr.mxu0 0.0
        %2930 = vmatpush1.msra.mxu0 0.0
        %2931 = vmatprep.subr.mxu0 0.0
        %2932 = vmatpush1.msra.mxu0 0.0
        %2933 = vmatprep.subr.mxu0 0.0
        %2934 = vmatpush1.msra.mxu0 0.0
        %2935 = vmatprep.subr.mxu0 0.0
        %2936 = vmatpush1.msra.mxu0 0.0
        %2937 = vmatprep.subr.mxu0 0.0
        %2938 = vmatpush1.msra.mxu0 0.0
        %2939 = vmatprep.subr.mxu0 0.0
        %2940 = vmatpush1.msra.mxu0 0.0
        %2941 = vmatprep.subr.mxu0 0.0
        %2942 = vmatpush1.msra.mxu0 0.0
        %2943 = vmatprep.subr.mxu0 0.0
        %2944 = vmatpush1.msra.mxu0 0.0
        %2945 = vmatprep.mubr.f32.mxu0 0.0
        %2946 = vmatmul.mubr.f32.gmra.mrb[0].mxu0 %v2879
        %v2947 = vpop.f32.mrb[0].mxu0
        %v2948 = vadd.f32 0.0, %v2947
        %v2949 = vpop.f32.mrb[0].mxu0
        %v2950 = vadd.f32 0.0, %v2949
        %2951 = vdwg.mxu0
        %v2952 = vadd.f32 %v2858, %v2948
        %v2953 = vadd.f32 %v2859, %v2950
        %s2954 = scalar_lea.vmem %s7, 24
        %v2955 = vld [vmem:[%s2954] sm:$0xff]
        %2956 = vrot.lane.b32.xlu0 %v2591, 1
        %v2957 = vpop.permute.xlu0 %2956
        %2958 = vrot.lane.b32.xlu0 %v2593, 1
        %v2959 = vpop.permute.xlu0 %2958
        %2960 = vrot.lane.b32.xlu0 %v2592, 1
        %v2961 = vpop.permute.xlu0 %2960
        %2962 = vrot.lane.b32.xlu0 %v2594, 1
        %v2963 = vpop.permute.xlu0 %2962
        %v2964 = vsel %vm987, %v2957, %v2961
        %v2965 = vsel %vm987, %v2959, %v2963
        %v2966 = vsel %vm987, %v2961, %v2957
        %v2967 = vsel %vm987, %v2963, %v2959
        %v2968 = vmul.f32 %v2966, %v990
        %v2969 = vmul.f32 %v2964, %v991
        %v2970 = vmul.f32 %v2967, %v990
        %v2971 = vmul.f32 %v2965, %v991
        %v2973 = vsel %vm2613, %v2955, 0
        %2975 = vmatprep.subr.mxu0 %v2969
        %2976 = vmatpush1.msra.mxu0 %v2968
        %2977 = vmatprep.subr.mxu0 %v2971
        %2978 = vmatpush1.msra.mxu0 %v2970
        %2979 = vmatprep.subr.mxu0 0.0
        %2980 = vmatpush1.msra.mxu0 0.0
        %2981 = vmatprep.subr.mxu0 0.0
        %2982 = vmatpush1.msra.mxu0 0.0
        %2983 = vmatprep.subr.mxu0 0.0
        %2984 = vmatpush1.msra.mxu0 0.0
        %2985 = vmatprep.subr.mxu0 0.0
        %2986 = vmatpush1.msra.mxu0 0.0
        %2987 = vmatprep.subr.mxu0 0.0
        %2988 = vmatpush1.msra.mxu0 0.0
        %2989 = vmatprep.subr.mxu0 0.0
        %2990 = vmatpush1.msra.mxu0 0.0
        %2991 = vmatprep.subr.mxu0 0.0
        %2992 = vmatpush1.msra.mxu0 0.0
        %2993 = vmatprep.subr.mxu0 0.0
        %2994 = vmatpush1.msra.mxu0 0.0
        %2995 = vmatprep.subr.mxu0 0.0
        %2996 = vmatpush1.msra.mxu0 0.0
        %2997 = vmatprep.subr.mxu0 0.0
        %2998 = vmatpush1.msra.mxu0 0.0
        %2999 = vmatprep.subr.mxu0 0.0
        %3000 = vmatpush1.msra.mxu0 0.0
        %3001 = vmatprep.subr.mxu0 0.0
        %3002 = vmatpush1.msra.mxu0 0.0
        %3003 = vmatprep.subr.mxu0 0.0
        %3004 = vmatpush1.msra.mxu0 0.0
        %3005 = vmatprep.subr.mxu0 0.0
        %3006 = vmatpush1.msra.mxu0 0.0
        %3007 = vmatprep.subr.mxu0 0.0
        %3008 = vmatpush1.msra.mxu0 0.0
        %3009 = vmatprep.subr.mxu0 0.0
        %3010 = vmatpush1.msra.mxu0 0.0
        %3011 = vmatprep.subr.mxu0 0.0
        %3012 = vmatpush1.msra.mxu0 0.0
        %3013 = vmatprep.subr.mxu0 0.0
        %3014 = vmatpush1.msra.mxu0 0.0
        %3015 = vmatprep.subr.mxu0 0.0
        %3016 = vmatpush1.msra.mxu0 0.0
        %3017 = vmatprep.subr.mxu0 0.0
        %3018 = vmatpush1.msra.mxu0 0.0
        %3019 = vmatprep.subr.mxu0 0.0
        %3020 = vmatpush1.msra.mxu0 0.0
        %3021 = vmatprep.subr.mxu0 0.0
        %3022 = vmatpush1.msra.mxu0 0.0
        %3023 = vmatprep.subr.mxu0 0.0
        %3024 = vmatpush1.msra.mxu0 0.0
        %3025 = vmatprep.subr.mxu0 0.0
        %3026 = vmatpush1.msra.mxu0 0.0
        %3027 = vmatprep.subr.mxu0 0.0
        %3028 = vmatpush1.msra.mxu0 0.0
        %3029 = vmatprep.subr.mxu0 0.0
        %3030 = vmatpush1.msra.mxu0 0.0
        %3031 = vmatprep.subr.mxu0 0.0
        %3032 = vmatpush1.msra.mxu0 0.0
        %3033 = vmatprep.subr.mxu0 0.0
        %3034 = vmatpush1.msra.mxu0 0.0
        %3035 = vmatprep.subr.mxu0 0.0
        %3036 = vmatpush1.msra.mxu0 0.0
        %3037 = vmatprep.subr.mxu0 0.0
        %3038 = vmatpush1.msra.mxu0 0.0
        %3039 = vmatprep.mubr.f32.mxu0 0.0
        %3040 = vmatmul.mubr.f32.gmra.mrb[0].mxu0 %v2973
        %v3041 = vpop.f32.mrb[0].mxu0
        %v3042 = vadd.f32 0.0, %v3041
        %v3043 = vpop.f32.mrb[0].mxu0
        %v3044 = vadd.f32 0.0, %v3043
        %3045 = vdwg.mxu0
        %v3046 = vadd.f32 %v2952, %v3042
        %v3047 = vadd.f32 %v2953, %v3044
        %s3048 = scalar_lea.vmem %s7, 32
        %v3049 = vld [vmem:[%s3048] sm:$0xff]
        %v3050 = vmul.f32 %v2591, %v1002
        %v3051 = vmul.f32 %v2592, %v1003
        %v3052 = vmul.f32 %v2593, %v1002
        %v3053 = vmul.f32 %v2594, %v1003
        %v3055 = vsel %vm2613, %v3049, 0
        %3057 = vmatprep.subr.mxu0 %v3051
        %3058 = vmatpush1.msra.mxu0 %v3050
        %3059 = vmatprep.subr.mxu0 %v3053
        %3060 = vmatpush1.msra.mxu0 %v3052
        %3061 = vmatprep.subr.mxu0 0.0
        %3062 = vmatpush1.msra.mxu0 0.0
        %3063 = vmatprep.subr.mxu0 0.0
        %3064 = vmatpush1.msra.mxu0 0.0
        %3065 = vmatprep.subr.mxu0 0.0
        %3066 = vmatpush1.msra.mxu0 0.0
        %3067 = vmatprep.subr.mxu0 0.0
        %3068 = vmatpush1.msra.mxu0 0.0
        %3069 = vmatprep.subr.mxu0 0.0
        %3070 = vmatpush1.msra.mxu0 0.0
        %3071 = vmatprep.subr.mxu0 0.0
        %3072 = vmatpush1.msra.mxu0 0.0
        %3073 = vmatprep.subr.mxu0 0.0
        %3074 = vmatpush1.msra.mxu0 0.0
        %3075 = vmatprep.subr.mxu0 0.0
        %3076 = vmatpush1.msra.mxu0 0.0
        %3077 = vmatprep.subr.mxu0 0.0
        %3078 = vmatpush1.msra.mxu0 0.0
        %3079 = vmatprep.subr.mxu0 0.0
        %3080 = vmatpush1.msra.mxu0 0.0
        %3081 = vmatprep.subr.mxu0 0.0
        %3082 = vmatpush1.msra.mxu0 0.0
        %3083 = vmatprep.subr.mxu0 0.0
        %3084 = vmatpush1.msra.mxu0 0.0
        %3085 = vmatprep.subr.mxu0 0.0
        %3086 = vmatpush1.msra.mxu0 0.0
        %3087 = vmatprep.subr.mxu0 0.0
        %3088 = vmatpush1.msra.mxu0 0.0
        %3089 = vmatprep.subr.mxu0 0.0
        %3090 = vmatpush1.msra.mxu0 0.0
        %3091 = vmatprep.subr.mxu0 0.0
        %3092 = vmatpush1.msra.mxu0 0.0
        %3093 = vmatprep.subr.mxu0 0.0
        %3094 = vmatpush1.msra.mxu0 0.0
        %3095 = vmatprep.subr.mxu0 0.0
        %3096 = vmatpush1.msra.mxu0 0.0
        %3097 = vmatprep.subr.mxu0 0.0
        %3098 = vmatpush1.msra.mxu0 0.0
        %3099 = vmatprep.subr.mxu0 0.0
        %3100 = vmatpush1.msra.mxu0 0.0
        %3101 = vmatprep.subr.mxu0 0.0
        %3102 = vmatpush1.msra.mxu0 0.0
        %3103 = vmatprep.subr.mxu0 0.0
        %3104 = vmatpush1.msra.mxu0 0.0
        %3105 = vmatprep.subr.mxu0 0.0
        %3106 = vmatpush1.msra.mxu0 0.0
        %3107 = vmatprep.subr.mxu0 0.0
        %3108 = vmatpush1.msra.mxu0 0.0
        %3109 = vmatprep.subr.mxu0 0.0
        %3110 = vmatpush1.msra.mxu0 0.0
        %3111 = vmatprep.subr.mxu0 0.0
        %3112 = vmatpush1.msra.mxu0 0.0
        %3113 = vmatprep.subr.mxu0 0.0
        %3114 = vmatpush1.msra.mxu0 0.0
        %3115 = vmatprep.subr.mxu0 0.0
        %3116 = vmatpush1.msra.mxu0 0.0
        %3117 = vmatprep.subr.mxu0 0.0
        %3118 = vmatpush1.msra.mxu0 0.0
        %3119 = vmatprep.subr.mxu0 0.0
        %3120 = vmatpush1.msra.mxu0 0.0
        %3121 = vmatprep.mubr.f32.mxu0 0.0
        %3122 = vmatmul.mubr.f32.gmra.mrb[0].mxu0 %v3055
        %v3123 = vpop.f32.mrb[0].mxu0
        %v3124 = vadd.f32 0.0, %v3123
        %v3125 = vpop.f32.mrb[0].mxu0
        %v3126 = vadd.f32 0.0, %v3125
        %3127 = vdwg.mxu0
        %v3128 = vadd.f32 %v3046, %v3124
        %v3129 = vadd.f32 %v3047, %v3126
        %s3130 = scalar_lea.vmem %s7, 40
        %v3131 = vld [vmem:[%s3130] sm:$0xff]
        %3132 = vrot.lane.b32.xlu0 %v2591, 127
        %v3133 = vpop.permute.xlu0 %3132
        %3134 = vrot.lane.b32.xlu0 %v2593, 127
        %v3135 = vpop.permute.xlu0 %3134
        %3136 = vrot.lane.b32.xlu0 %v2592, 127
        %v3137 = vpop.permute.xlu0 %3136
        %3138 = vrot.lane.b32.xlu0 %v2594, 127
        %v3139 = vpop.permute.xlu0 %3138
        %v3140 = vsel %vm1030, %v3133, %v3137
        %v3141 = vsel %vm1030, %v3135, %v3139
        %v3142 = vsel %vm1030, %v3137, %v3133
        %v3143 = vsel %vm1030, %v3139, %v3135
        %v3144 = vmul.f32 %v3140, %v1033
        %v3145 = vmul.f32 %v3142, %v1034
        %v3146 = vmul.f32 %v3141, %v1033
        %v3147 = vmul.f32 %v3143, %v1034
        %v3149 = vsel %vm2613, %v3131, 0
        %3151 = vmatprep.subr.mxu0 %v3145
        %3152 = vmatpush1.msra.mxu0 %v3144
        %3153 = vmatprep.subr.mxu0 %v3147
        %3154 = vmatpush1.msra.mxu0 %v3146
        %3155 = vmatprep.subr.mxu0 0.0
        %3156 = vmatpush1.msra.mxu0 0.0
        %3157 = vmatprep.subr.mxu0 0.0
        %3158 = vmatpush1.msra.mxu0 0.0
        %3159 = vmatprep.subr.mxu0 0.0
        %3160 = vmatpush1.msra.mxu0 0.0
        %3161 = vmatprep.subr.mxu0 0.0
        %3162 = vmatpush1.msra.mxu0 0.0
        %3163 = vmatprep.subr.mxu0 0.0
        %3164 = vmatpush1.msra.mxu0 0.0
        %3165 = vmatprep.subr.mxu0 0.0
        %3166 = vmatpush1.msra.mxu0 0.0
        %3167 = vmatprep.subr.mxu0 0.0
        %3168 = vmatpush1.msra.mxu0 0.0
        %3169 = vmatprep.subr.mxu0 0.0
        %3170 = vmatpush1.msra.mxu0 0.0
        %3171 = vmatprep.subr.mxu0 0.0
        %3172 = vmatpush1.msra.mxu0 0.0
        %3173 = vmatprep.subr.mxu0 0.0
        %3174 = vmatpush1.msra.mxu0 0.0
        %3175 = vmatprep.subr.mxu0 0.0
        %3176 = vmatpush1.msra.mxu0 0.0
        %3177 = vmatprep.subr.mxu0 0.0
        %3178 = vmatpush1.msra.mxu0 0.0
        %3179 = vmatprep.subr.mxu0 0.0
        %3180 = vmatpush1.msra.mxu0 0.0
        %3181 = vmatprep.subr.mxu0 0.0
        %3182 = vmatpush1.msra.mxu0 0.0
        %3183 = vmatprep.subr.mxu0 0.0
        %3184 = vmatpush1.msra.mxu0 0.0
        %3185 = vmatprep.subr.mxu0 0.0
        %3186 = vmatpush1.msra.mxu0 0.0
        %3187 = vmatprep.subr.mxu0 0.0
        %3188 = vmatpush1.msra.mxu0 0.0
        %3189 = vmatprep.subr.mxu0 0.0
        %3190 = vmatpush1.msra.mxu0 0.0
        %3191 = vmatprep.subr.mxu0 0.0
        %3192 = vmatpush1.msra.mxu0 0.0
        %3193 = vmatprep.subr.mxu0 0.0
        %3194 = vmatpush1.msra.mxu0 0.0
        %3195 = vmatprep.subr.mxu0 0.0
        %3196 = vmatpush1.msra.mxu0 0.0
        %3197 = vmatprep.subr.mxu0 0.0
        %3198 = vmatpush1.msra.mxu0 0.0
        %3199 = vmatprep.subr.mxu0 0.0
        %3200 = vmatpush1.msra.mxu0 0.0
        %3201 = vmatprep.subr.mxu0 0.0
        %3202 = vmatpush1.msra.mxu0 0.0
        %3203 = vmatprep.subr.mxu0 0.0
        %3204 = vmatpush1.msra.mxu0 0.0
        %3205 = vmatprep.subr.mxu0 0.0
        %3206 = vmatpush1.msra.mxu0 0.0
        %3207 = vmatprep.subr.mxu0 0.0
        %3208 = vmatpush1.msra.mxu0 0.0
        %3209 = vmatprep.subr.mxu0 0.0
        %3210 = vmatpush1.msra.mxu0 0.0
        %3211 = vmatprep.subr.mxu0 0.0
        %3212 = vmatpush1.msra.mxu0 0.0
        %3213 = vmatprep.subr.mxu0 0.0
        %3214 = vmatpush1.msra.mxu0 0.0
        %3215 = vmatprep.mubr.f32.mxu0 0.0
        %3216 = vmatmul.mubr.f32.gmra.mrb[0].mxu0 %v3149
        %v3217 = vpop.f32.mrb[0].mxu0
        %v3218 = vadd.f32 0.0, %v3217
        %v3219 = vpop.f32.mrb[0].mxu0
        %v3220 = vadd.f32 0.0, %v3219
        %3221 = vdwg.mxu0
        %v3222 = vadd.f32 %v3128, %v3218
        %v3223 = vadd.f32 %v3129, %v3220
        %s3224 = scalar_lea.vmem %s7, 48
        %v3225 = vld [vmem:[%s3224] sm:$0xff]
        %3226 = vrot.lane.b32.xlu0 %v2591, 113
        %v3227 = vpop.permute.xlu0 %3226
        %3228 = vrot.lane.b32.xlu0 %v2593, 113
        %v3229 = vpop.permute.xlu0 %3228
        %3230 = vrot.lane.b32.xlu0 %v2592, 113
        %v3231 = vpop.permute.xlu0 %3230
        %3232 = vrot.lane.b32.xlu0 %v2594, 113
        %v3233 = vpop.permute.xlu0 %3232
        %v3234 = vsel %vm1125, %v3227, %v3231
        %v3235 = vsel %vm1125, %v3229, %v3233
        %v3236 = vsel %vm1125, %v3231, %v3227
        %v3237 = vsel %vm1125, %v3233, %v3229
        %v3238 = vmul.f32 %v3234, %v1128
        %v3239 = vmul.f32 %v3236, %v1129
        %v3240 = vmul.f32 %v3235, %v1128
        %v3241 = vmul.f32 %v3237, %v1129
        %v3243 = vsel %vm2613, %v3225, 0
        %3245 = vmatprep.subr.mxu0 %v3239
        %3246 = vmatpush1.msra.mxu0 %v3238
        %3247 = vmatprep.subr.mxu0 %v3241
        %3248 = vmatpush1.msra.mxu0 %v3240
        %3249 = vmatprep.subr.mxu0 0.0
        %3250 = vmatpush1.msra.mxu0 0.0
        %3251 = vmatprep.subr.mxu0 0.0
        %3252 = vmatpush1.msra.mxu0 0.0
        %3253 = vmatprep.subr.mxu0 0.0
        %3254 = vmatpush1.msra.mxu0 0.0
        %3255 = vmatprep.subr.mxu0 0.0
        %3256 = vmatpush1.msra.mxu0 0.0
        %3257 = vmatprep.subr.mxu0 0.0
        %3258 = vmatpush1.msra.mxu0 0.0
        %3259 = vmatprep.subr.mxu0 0.0
        %3260 = vmatpush1.msra.mxu0 0.0
        %3261 = vmatprep.subr.mxu0 0.0
        %3262 = vmatpush1.msra.mxu0 0.0
        %3263 = vmatprep.subr.mxu0 0.0
        %3264 = vmatpush1.msra.mxu0 0.0
        %3265 = vmatprep.subr.mxu0 0.0
        %3266 = vmatpush1.msra.mxu0 0.0
        %3267 = vmatprep.subr.mxu0 0.0
        %3268 = vmatpush1.msra.mxu0 0.0
        %3269 = vmatprep.subr.mxu0 0.0
        %3270 = vmatpush1.msra.mxu0 0.0
        %3271 = vmatprep.subr.mxu0 0.0
        %3272 = vmatpush1.msra.mxu0 0.0
        %3273 = vmatprep.subr.mxu0 0.0
        %3274 = vmatpush1.msra.mxu0 0.0
        %3275 = vmatprep.subr.mxu0 0.0
        %3276 = vmatpush1.msra.mxu0 0.0
        %3277 = vmatprep.subr.mxu0 0.0
        %3278 = vmatpush1.msra.mxu0 0.0
        %3279 = vmatprep.subr.mxu0 0.0
        %3280 = vmatpush1.msra.mxu0 0.0
        %3281 = vmatprep.subr.mxu0 0.0
        %3282 = vmatpush1.msra.mxu0 0.0
        %3283 = vmatprep.subr.mxu0 0.0
        %3284 = vmatpush1.msra.mxu0 0.0
        %3285 = vmatprep.subr.mxu0 0.0
        %3286 = vmatpush1.msra.mxu0 0.0
        %3287 = vmatprep.subr.mxu0 0.0
        %3288 = vmatpush1.msra.mxu0 0.0
        %3289 = vmatprep.subr.mxu0 0.0
        %3290 = vmatpush1.msra.mxu0 0.0
        %3291 = vmatprep.subr.mxu0 0.0
        %3292 = vmatpush1.msra.mxu0 0.0
        %3293 = vmatprep.subr.mxu0 0.0
        %3294 = vmatpush1.msra.mxu0 0.0
        %3295 = vmatprep.subr.mxu0 0.0
        %3296 = vmatpush1.msra.mxu0 0.0
        %3297 = vmatprep.subr.mxu0 0.0
        %3298 = vmatpush1.msra.mxu0 0.0
        %3299 = vmatprep.subr.mxu0 0.0
        %3300 = vmatpush1.msra.mxu0 0.0
        %3301 = vmatprep.subr.mxu0 0.0
        %3302 = vmatpush1.msra.mxu0 0.0
        %3303 = vmatprep.subr.mxu0 0.0
        %3304 = vmatpush1.msra.mxu0 0.0
        %3305 = vmatprep.subr.mxu0 0.0
        %3306 = vmatpush1.msra.mxu0 0.0
        %3307 = vmatprep.subr.mxu0 0.0
        %3308 = vmatpush1.msra.mxu0 0.0
        %3309 = vmatprep.mubr.f32.mxu0 0.0
        %3310 = vmatmul.mubr.f32.gmra.mrb[0].mxu0 %v3243
        %v3311 = vpop.f32.mrb[0].mxu0
        %v3312 = vadd.f32 0.0, %v3311
        %v3313 = vpop.f32.mrb[0].mxu0
        %v3314 = vadd.f32 0.0, %v3313
        %3315 = vdwg.mxu0
        %v3316 = vadd.f32 %v3222, %v3312
        %v3317 = vadd.f32 %v3223, %v3314
        %s3318 = scalar_lea.vmem %s7, 56
        %v3319 = vld [vmem:[%s3318] sm:$0xff]
        %3320 = vrot.lane.b32.xlu0 %v2591, 112
        %v3321 = vpop.permute.xlu0 %3320
        %3322 = vrot.lane.b32.xlu0 %v2593, 112
        %v3323 = vpop.permute.xlu0 %3322
        %3324 = vrot.lane.b32.xlu0 %v2592, 112
        %v3325 = vpop.permute.xlu0 %3324
        %3326 = vrot.lane.b32.xlu0 %v2594, 112
        %v3327 = vpop.permute.xlu0 %3326
        %v3328 = vsel %vm1144, %v3321, %v3325
        %v3329 = vsel %vm1144, %v3323, %v3327
        %v3330 = vsel %vm1144, %v3325, %v3321
        %v3331 = vsel %vm1144, %v3327, %v3323
        %v3332 = vmul.f32 %v3328, %v1147
        %v3333 = vmul.f32 %v3330, %v1148
        %v3334 = vmul.f32 %v3329, %v1147
        %v3335 = vmul.f32 %v3331, %v1148
        %v3337 = vsel %vm2613, %v3319, 0
        %3339 = vmatprep.subr.mxu0 %v3333
        %3340 = vmatpush1.msra.mxu0 %v3332
        %3341 = vmatprep.subr.mxu0 %v3335
        %3342 = vmatpush1.msra.mxu0 %v3334
        %3343 = vmatprep.subr.mxu0 0.0
        %3344 = vmatpush1.msra.mxu0 0.0
        %3345 = vmatprep.subr.mxu0 0.0
        %3346 = vmatpush1.msra.mxu0 0.0
        %3347 = vmatprep.subr.mxu0 0.0
        %3348 = vmatpush1.msra.mxu0 0.0
        %3349 = vmatprep.subr.mxu0 0.0
        %3350 = vmatpush1.msra.mxu0 0.0
        %3351 = vmatprep.subr.mxu0 0.0
        %3352 = vmatpush1.msra.mxu0 0.0
        %3353 = vmatprep.subr.mxu0 0.0
        %3354 = vmatpush1.msra.mxu0 0.0
        %3355 = vmatprep.subr.mxu0 0.0
        %3356 = vmatpush1.msra.mxu0 0.0
        %3357 = vmatprep.subr.mxu0 0.0
        %3358 = vmatpush1.msra.mxu0 0.0
        %3359 = vmatprep.subr.mxu0 0.0
        %3360 = vmatpush1.msra.mxu0 0.0
        %3361 = vmatprep.subr.mxu0 0.0
        %3362 = vmatpush1.msra.mxu0 0.0
        %3363 = vmatprep.subr.mxu0 0.0
        %3364 = vmatpush1.msra.mxu0 0.0
        %3365 = vmatprep.subr.mxu0 0.0
        %3366 = vmatpush1.msra.mxu0 0.0
        %3367 = vmatprep.subr.mxu0 0.0
        %3368 = vmatpush1.msra.mxu0 0.0
        %3369 = vmatprep.subr.mxu0 0.0
        %3370 = vmatpush1.msra.mxu0 0.0
        %3371 = vmatprep.subr.mxu0 0.0
        %3372 = vmatpush1.msra.mxu0 0.0
        %3373 = vmatprep.subr.mxu0 0.0
        %3374 = vmatpush1.msra.mxu0 0.0
        %3375 = vmatprep.subr.mxu0 0.0
        %3376 = vmatpush1.msra.mxu0 0.0
        %3377 = vmatprep.subr.mxu0 0.0
        %3378 = vmatpush1.msra.mxu0 0.0
        %3379 = vmatprep.subr.mxu0 0.0
        %3380 = vmatpush1.msra.mxu0 0.0
        %3381 = vmatprep.subr.mxu0 0.0
        %3382 = vmatpush1.msra.mxu0 0.0
        %3383 = vmatprep.subr.mxu0 0.0
        %3384 = vmatpush1.msra.mxu0 0.0
        %3385 = vmatprep.subr.mxu0 0.0
        %3386 = vmatpush1.msra.mxu0 0.0
        %3387 = vmatprep.subr.mxu0 0.0
        %3388 = vmatpush1.msra.mxu0 0.0
        %3389 = vmatprep.subr.mxu0 0.0
        %3390 = vmatpush1.msra.mxu0 0.0
        %3391 = vmatprep.subr.mxu0 0.0
        %3392 = vmatpush1.msra.mxu0 0.0
        %3393 = vmatprep.subr.mxu0 0.0
        %3394 = vmatpush1.msra.mxu0 0.0
        %3395 = vmatprep.subr.mxu0 0.0
        %3396 = vmatpush1.msra.mxu0 0.0
        %3397 = vmatprep.subr.mxu0 0.0
        %3398 = vmatpush1.msra.mxu0 0.0
        %3399 = vmatprep.subr.mxu0 0.0
        %3400 = vmatpush1.msra.mxu0 0.0
        %3401 = vmatprep.subr.mxu0 0.0
        %3402 = vmatpush1.msra.mxu0 0.0
        %3403 = vmatprep.mubr.f32.mxu0 0.0
        %3404 = vmatmul.mubr.f32.gmra.mrb[0].mxu0 %v3337
        %v3405 = vpop.f32.mrb[0].mxu0
        %v3406 = vadd.f32 0.0, %v3405
        %v3407 = vpop.f32.mrb[0].mxu0
        %v3408 = vadd.f32 0.0, %v3407
        %3409 = vdwg.mxu0
        %v3410 = vadd.f32 %v3316, %v3406
        %v3411 = vadd.f32 %v3317, %v3408
        %s3412 = scalar_lea.vmem %s7, 64
        %v3413 = vld [vmem:[%s3412] sm:$0xff]
        %3414 = vrot.lane.b32.xlu0 %v2591, 111
        %v3415 = vpop.permute.xlu0 %3414
        %3416 = vrot.lane.b32.xlu0 %v2593, 111
        %v3417 = vpop.permute.xlu0 %3416
        %3418 = vrot.lane.b32.xlu0 %v2592, 111
        %v3419 = vpop.permute.xlu0 %3418
        %3420 = vrot.lane.b32.xlu0 %v2594, 111
        %v3421 = vpop.permute.xlu0 %3420
        %v3422 = vsel %vm1163, %v3415, %v3419
        %v3423 = vsel %vm1163, %v3417, %v3421
        %v3424 = vsel %vm1163, %v3419, %v3415
        %v3425 = vsel %vm1163, %v3421, %v3417
        %v3426 = vmul.f32 %v3422, %v1166
        %v3427 = vmul.f32 %v3424, %v1167
        %v3428 = vmul.f32 %v3423, %v1166
        %v3429 = vmul.f32 %v3425, %v1167
        %v3431 = vsel %vm2613, %v3413, 0
        %3433 = vmatprep.subr.mxu0 %v3427
        %3434 = vmatpush1.msra.mxu0 %v3426
        %3435 = vmatprep.subr.mxu0 %v3429
        %3436 = vmatpush1.msra.mxu0 %v3428
        %3437 = vmatprep.subr.mxu0 0.0
        %3438 = vmatpush1.msra.mxu0 0.0
        %3439 = vmatprep.subr.mxu0 0.0
        %3440 = vmatpush1.msra.mxu0 0.0
        %3441 = vmatprep.subr.mxu0 0.0
        %3442 = vmatpush1.msra.mxu0 0.0
        %3443 = vmatprep.subr.mxu0 0.0
        %3444 = vmatpush1.msra.mxu0 0.0
        %3445 = vmatprep.subr.mxu0 0.0
        %3446 = vmatpush1.msra.mxu0 0.0
        %3447 = vmatprep.subr.mxu0 0.0
        %3448 = vmatpush1.msra.mxu0 0.0
        %3449 = vmatprep.subr.mxu0 0.0
        %3450 = vmatpush1.msra.mxu0 0.0
        %3451 = vmatprep.subr.mxu0 0.0
        %3452 = vmatpush1.msra.mxu0 0.0
        %3453 = vmatprep.subr.mxu0 0.0
        %3454 = vmatpush1.msra.mxu0 0.0
        %3455 = vmatprep.subr.mxu0 0.0
        %3456 = vmatpush1.msra.mxu0 0.0
        %3457 = vmatprep.subr.mxu0 0.0
        %3458 = vmatpush1.msra.mxu0 0.0
        %3459 = vmatprep.subr.mxu0 0.0
        %3460 = vmatpush1.msra.mxu0 0.0
        %3461 = vmatprep.subr.mxu0 0.0
        %3462 = vmatpush1.msra.mxu0 0.0
        %3463 = vmatprep.subr.mxu0 0.0
        %3464 = vmatpush1.msra.mxu0 0.0
        %3465 = vmatprep.subr.mxu0 0.0
        %3466 = vmatpush1.msra.mxu0 0.0
        %3467 = vmatprep.subr.mxu0 0.0
        %3468 = vmatpush1.msra.mxu0 0.0
        %3469 = vmatprep.subr.mxu0 0.0
        %3470 = vmatpush1.msra.mxu0 0.0
        %3471 = vmatprep.subr.mxu0 0.0
        %3472 = vmatpush1.msra.mxu0 0.0
        %3473 = vmatprep.subr.mxu0 0.0
        %3474 = vmatpush1.msra.mxu0 0.0
        %3475 = vmatprep.subr.mxu0 0.0
        %3476 = vmatpush1.msra.mxu0 0.0
        %3477 = vmatprep.subr.mxu0 0.0
        %3478 = vmatpush1.msra.mxu0 0.0
        %3479 = vmatprep.subr.mxu0 0.0
        %3480 = vmatpush1.msra.mxu0 0.0
        %3481 = vmatprep.subr.mxu0 0.0
        %3482 = vmatpush1.msra.mxu0 0.0
        %3483 = vmatprep.subr.mxu0 0.0
        %3484 = vmatpush1.msra.mxu0 0.0
        %3485 = vmatprep.subr.mxu0 0.0
        %3486 = vmatpush1.msra.mxu0 0.0
        %3487 = vmatprep.subr.mxu0 0.0
        %3488 = vmatpush1.msra.mxu0 0.0
        %3489 = vmatprep.subr.mxu0 0.0
        %3490 = vmatpush1.msra.mxu0 0.0
        %3491 = vmatprep.subr.mxu0 0.0
        %3492 = vmatpush1.msra.mxu0 0.0
        %3493 = vmatprep.subr.mxu0 0.0
        %3494 = vmatpush1.msra.mxu0 0.0
        %3495 = vmatprep.subr.mxu0 0.0
        %3496 = vmatpush1.msra.mxu0 0.0
        %3497 = vmatprep.mubr.f32.mxu0 0.0
        %3498 = vmatmul.mubr.f32.gmra.mrb[0].mxu0 %v3431
        %v3499 = vpop.f32.mrb[0].mxu0
        %v3500 = vadd.f32 0.0, %v3499
        %v3501 = vpop.f32.mrb[0].mxu0
        %v3502 = vadd.f32 0.0, %v3501
        %3503 = vdwg.mxu0
        %v3504 = vadd.f32 %v3410, %v3500
        %v3505 = vadd.f32 %v3411, %v3502
        %v3506 = vld [vmem:[%s8] sm:$0xff]
        %3508 = vset.pattern.permute.xlu0 0
        %3509 = vperm.xlu0 %3508, %v3506
        %v3510 = vpop.permute.xlu0 %3509
        %v3512 = vadd.f32 %v3504, %v3510
        %v3513 = vadd.f32 %v3505, %v3510
        %v3514 = vld [vmem:[%s10] sm:$0xff]
        %3516 = vset.pattern.permute.xlu0 0
        %3517 = vperm.xlu0 %3516, %v3514
        %v3518 = vpop.permute.xlu0 %3517
        %v3520 = vadd.f32 %v3512, %v3518
        %v3521 = vadd.f32 %v3513, %v3518
        %3522 = vst [vmem:[%s379] sm:$0xff] %v3520
        %3523 = vst [vmem:[%s379 + $0x8] sm:$0xff] %v3521
        %s3524 = sand.u32 %s269, 1
        %s3525 = scalar_lea.sflag [#allocation3], %s3524
        %s3526 = sand.u32 %s269, 1
        %s3527 = smul.addr %s3526, 16
        %s3528 = scalar_lea.vmem [#allocation2], %s3527
        // Predicated region
        $region65: #{tpu_custom_call.1} parent=63 // pred_check
          %p3529 = pneg %p279
        $region66: #{tpu_custom_call.1} parent=63 // pred_check_branch
          %3531 = sbr.rel (%p3529) target = $region68
        $region67: #{tpu_custom_call.1} parent=63 // pred_region
          %s3533 = ssub.s32 256, 256
          %3534 = vsyncadd %s3525, %s3533
          %s3535 = smul.addr %s25, 2
          %s3536 = smul.addr %s3535, 128
          %s3537 = scalar_lea.hbm %s11, %s3536
          %s3539 = sshll.u32 %s3528, 4
          %s3540 = int_to_ptr.vmem [resolvable:$true] %s3539
          %3542 = dma.vmem_to_hbm [thread:$0]  %s3540, 256, %s3537, %s3525
        $region68: #{tpu_custom_call.1} parent=63 // pred_fallthru
          _
      $region64: #{tpu_custom_call.1} parent=5 // pred_fallthru
        _
      %p3543 = scmp.le.s32.totalorder 2, %s20
      // Predicated region
      $region69: #{tpu_custom_call.1} parent=5 // pred_check
        %p3544 = pneg %p3543
      $region70: #{tpu_custom_call.1} parent=5 // pred_check_branch
        %3546 = sbr.rel (%p3544) target = $region72
      $region71: #{tpu_custom_call.1} parent=5 // pred_region
        %s3547 = ssub.s32 %s20, 2
        // Predicated region
        $region73: #{tpu_custom_call.1} parent=71 // pred_check
          %p3548 = pneg %p285
        $region74: #{tpu_custom_call.1} parent=71 // pred_check_branch
          %3550 = sbr.rel (%p3548) target = $region76
        $region75: #{tpu_custom_call.1} parent=71 // pred_region
          %s3551 = sand.u32 %s270, 1
          %s3552 = scalar_lea.sflag [#allocation3], %s3551
          %s3553 = sand.u32 %s270, 1
          %s3554 = smul.addr %s3553, 16
          %s3555 = scalar_lea.vmem [#allocation2], %s3554
          %3556 = dma.done %s3552, 256
        $region76: #{tpu_custom_call.1} parent=71 // pred_fallthru
          _
      $region72: #{tpu_custom_call.1} parent=5 // pred_fallthru
        _
    $region6: #{tpu_custom_call.1} parent=1 // loop_footer
      %s24 = sadd.s32 1, %s20
    $region7: #{tpu_custom_call.1} parent=1 // loop_footer_branch
      %19 = sbr.rel target = $region3
    $region8: #{tpu_custom_call.1} parent=1 // loop_exit
      _
    %3557 = vsyncpa [#allocation3], 1
    %s3558 = scalar_lea.sflag [#allocation3], 1
    %3559 = vsyncpa %s3558, 1

</llo_original>
